<compile_context>
chip_gen: v7x
topology: tpu7x:2x2x1
jax: 0.10.0
libtpu: 0.0.40
codegen_flags: <defaults>
</compile_context>

<pallas_src>
import functools
import math

import jax
import jax.numpy as jnp
from jax.experimental import pallas as pl
from jax.experimental.pallas import tpu as pltpu

NUM_HEADS = 4

# Row layout of the packed f32 "vecs" slab (width = max(3*D, DFF), zero padded):
_ROW_B_QKV_SELF = 0    # [3D]  (q|k|v) self-attention biases, q part pre-scaled
_ROW_B_KV_CROSS = 1    # [2D]  (k|v) cross-attention biases
_ROW_B_Q_CROSS = 2     # [D]   q cross-attention bias, pre-scaled
_ROW_BO_SELF = 3       # [D]
_ROW_BO_CROSS = 4      # [D]
_ROW_B_FF1 = 5         # [DFF]
_ROW_B_FF2 = 6         # [D]
_ROW_LN1 = 7           # (gamma, beta) pairs at rows 7/8, 9/10, 11/12
_ROW_LN2 = 9
_ROW_LN3 = 11
_NUM_VEC_ROWS = 13


def decoder_block_kernel(num_heads,
                         tgt_ref, enc_ref, tbias_ref, sbias_ref,
                         w_qkv_self_ref, w_q_cross_ref, w_kv_cross_ref,
                         w_o_self_ref, w_o_cross_ref, w_ff1_ref, w_ff2_ref, vecs_ref,
                         out_ref):
    H = num_heads
    Bb, T, D = tgt_ref.shape
    S = enc_ref.shape[1]
    hd = D // H
    DFF = w_ff1_ref.shape[1]

    # Residual stream kept flat as [Bb*T, D] f32 so every projection / FFN matmul contracts
    # the full D with M = Bb*T rows (T, S are multiples of 8 -> layout-trivial reshapes).
    x = tgt_ref[...].reshape(Bb * T, D).astype(jnp.float32)
    enc16 = enc_ref[...].reshape(Bb * S, D).astype(jnp.bfloat16)
    tbias = tbias_ref[...]          # [Bb, T, T] bf16 additive bias (0 / -1e9)
    sbias = sbias_ref[...]          # [Bb, T, S] bf16
    V = vecs_ref[...]               # [13, W] f32 packed biases + LayerNorm params

    def vec(row, width):            # one packed row -> [1, width]
        return V[row:row + 1, 0:width]

    def layernorm(v, row, eps=1e-5):  # f32 math (VPU/EUP); gamma at `row`, beta at `row+1`
        g, b = vec(row, D), vec(row + 1, D)
        mu = jnp.mean(v, axis=-1, keepdims=True)
        var = jnp.mean((v - mu) ** 2, axis=-1, keepdims=True)
        return (v - mu) * jax.lax.rsqrt(var + eps) * g + b

    def matmul(a16, w_ref, bias_row, width):   # lane-dense [M,K]@[K,width] + bias
        return (jnp.dot(a16, w_ref[...], preferred_element_type=jnp.float32)
                + vec(bias_row, width))

    def bdot(a, b):        # [G,M,K] x [G,K,N] -> [G,M,N]
        return jax.lax.dot_general(a, b, (((2,), (1,)), ((0,), (0,))),
                                   preferred_element_type=jnp.float32)

    def bdot_nt(a, b):     # [G,M,K] x [G,N,K] -> [G,M,N]   (Q . K^T)
        return jax.lax.dot_general(a, b, (((2,), (2,)), ((0,), (0,))),
                                   preferred_element_type=jnp.float32)

    def split_heads(z16):  # [M, D] bf16 -> [H, M, hd] (static lane slices + leading stack)
        return jnp.stack([z16[:, h * hd:(h + 1) * hd] for h in range(H)], axis=0)

    def attention(q_h, k_h, v_h, bias, Tk):
        # q_h: [H, Bb*T, hd] bf16, k_h/v_h: [H, Bb*Tk, hd] bf16, bias: [Bb, T, Tk] bf16.
        # Per-batch (Bb is 1 or 2) loop keeps the score/PV matmuls head-batched while the
        # projections above stay batch-folded; heads are merged back along lanes so the
        # output projection is a single full-K [D,D] matmul (head-sum fused).
        rows = []
        for b in range(Bb):
            qb = q_h[:, b * T:(b + 1) * T, :]
            kb = k_h[:, b * Tk:(b + 1) * Tk, :]
            vb = v_h[:, b * Tk:(b + 1) * Tk, :]
            s = bdot_nt(qb, kb) + bias[b][None].astype(jnp.float32)   # [H, T, Tk] f32
            m = jnp.max(s, axis=-1, keepdims=True)
            p = jnp.exp(s - m)
            p = p / jnp.sum(p, axis=-1, keepdims=True)                 # exact softmax
            ob = bdot(p.astype(jnp.bfloat16), vb)                      # [H, T, hd] f32
            rows.append(jnp.concatenate([ob[h] for h in range(H)], axis=-1))  # [T, D]
        return jnp.concatenate(rows, axis=0)                           # [Bb*T, D] f32

    # residual 1: pre-norm self-attention (dropout p=0 -> identity)
    y16 = layernorm(x, _ROW_LN1).astype(jnp.bfloat16)
    qkv = matmul(y16, w_qkv_self_ref, _ROW_B_QKV_SELF, 3 * D).astype(jnp.bfloat16)  # [M, 3D]
    a = attention(split_heads(qkv[:, 0:D]),
                  split_heads(qkv[:, D:2 * D]),
                  split_heads(qkv[:, 2 * D:3 * D]),
                  tbias, T)
    x = x + matmul(a.astype(jnp.bfloat16), w_o_self_ref, _ROW_BO_SELF, D)

    # residual 2: pre-norm cross-attention against the encoder output
    y16 = layernorm(x, _ROW_LN2).astype(jnp.bfloat16)
    qc = matmul(y16, w_q_cross_ref, _ROW_B_Q_CROSS, D).astype(jnp.bfloat16)          # [M, D]
    kv = matmul(enc16, w_kv_cross_ref, _ROW_B_KV_CROSS, 2 * D).astype(jnp.bfloat16)  # [Bb*S, 2D]
    a = attention(split_heads(qc),
                  split_heads(kv[:, 0:D]),
                  split_heads(kv[:, D:2 * D]),
                  sbias, S)
    x = x + matmul(a.astype(jnp.bfloat16), w_o_cross_ref, _ROW_BO_CROSS, D)

    # residual 3: pre-norm position-wise feed-forward (Linear-ReLU-Linear)
    y16 = layernorm(x, _ROW_LN3).astype(jnp.bfloat16)
    h = matmul(y16, w_ff1_ref, _ROW_B_FF1, DFF)
    h16 = jnp.maximum(h, 0.0).astype(jnp.bfloat16)
    x = x + matmul(h16, w_ff2_ref, _ROW_B_FF2, D)

    out_ref[...] = x.reshape(Bb, T, D).astype(out_ref.dtype)


def prepare_params(params, num_heads, d_model, d_ff):
    """Pack the 26 PyTorch-style parameter arrays into 8 TPU-friendly slabs.

    Call this ONCE (outside the hot path); the returned tuple is constant across calls.
    """
    (wq1, bq1, wk1, bk1, wv1, bv1, wo1, bo1,
     wq2, bq2, wk2, bk2, wv2, bv2, wo2, bo2,
     w1, b1, w2, b2,
     g1, be1, g2, be2, g3, be3) = params
    hd = d_model // num_heads
    scale = float(hd) ** -0.5

    w_qkv_self = jnp.concatenate([wq1 * scale, wk1, wv1], axis=1).astype(jnp.bfloat16)  # [D,3D]
    w_q_cross = (wq2 * scale).astype(jnp.bfloat16)                                      # [D, D]
    w_kv_cross = jnp.concatenate([wk2, wv2], axis=1).astype(jnp.bfloat16)               # [D,2D]
    w_o_self = wo1.astype(jnp.bfloat16)                                                 # [D, D]
    w_o_cross = wo2.astype(jnp.bfloat16)                                                # [D, D]
    w_ff1 = w1.astype(jnp.bfloat16)                                                     # [D,DFF]
    w_ff2 = w2.astype(jnp.bfloat16)                                                     # [DFF,D]

    width = max(3 * d_model, d_ff)

    def row(v):
        v = v.astype(jnp.float32).reshape(1, -1)
        return jnp.pad(v, ((0, 0), (0, width - v.shape[-1])))

    vecs = jnp.concatenate([
        row(jnp.concatenate([bq1 * scale, bk1, bv1], axis=1)),   # 0: b_qkv_self
        row(jnp.concatenate([bk2, bv2], axis=1)),                # 1: b_kv_cross
        row(bq2 * scale),                                        # 2: b_q_cross
        row(bo1),                                                # 3: bo_self
        row(bo2),                                                # 4: bo_cross
        row(b1),                                                 # 5: b_ff1
        row(b2),                                                 # 6: b_ff2
        row(g1), row(be1), row(g2), row(be2), row(g3), row(be3)  # 7-12: LayerNorm params
    ], axis=0)                                                   # [13, width] f32
    assert vecs.shape[0] == _NUM_VEC_ROWS

    return (w_qkv_self, w_q_cross, w_kv_cross, w_o_self, w_o_cross, w_ff1, w_ff2, vecs)


def _tensorcores_per_chip():
    # Heuristic: v4 / v5p / v7x expose 2 TensorCores per chip; v5e / v6e have one.
    try:
        kind = jax.devices()[0].device_kind.lower()
    except Exception:
        return 1
    return 2 if any(tag in kind for tag in ("v7", "v5p", "v4")) else 1


def decoder_block(tgt, encoder_out, tgt_mask, src_tgt_mask, packed_params,
                  num_heads=NUM_HEADS, batch_block=None):
    B, T, D = tgt.shape
    S = encoder_out.shape[1]

    if batch_block is None:
        # Single grid step (whole batch) on single-TC chips; >=2 parallel steps on 2-TC chips.
        steps = math.gcd(B, _tensorcores_per_chip())
        batch_block = B // steps
    assert B % batch_block == 0
    bb = batch_block
    steps = B // bb

    # {0,1} masks -> bf16 additive biases (half the DMA of f32); 0 kept visible, -1e9 masked,
    # matching masked_fill(mask == 0, -1e9).  If masks are static across calls, the caller can
    # precompute these once and pass them instead.
    tbias = jnp.where(tgt_mask == 0, -1e9, 0.0).astype(jnp.bfloat16)
    sbias = jnp.where(src_tgt_mask == 0, -1e9, 0.0).astype(jnp.bfloat16)

    def batched(arr):      # per-grid-step block of `bb` batch elements, full trailing dims
        shp = arr.shape
        return pl.BlockSpec((bb,) + tuple(shp[1:]), lambda g: (g, 0, 0))

    def whole(arr):        # grid-invariant weight slab
        nd = arr.ndim
        return pl.BlockSpec(arr.shape, lambda g, _nd=nd: (0,) * _nd)

    in_specs = ([batched(tgt), batched(encoder_out), batched(tbias), batched(sbias)]
                + [whole(p) for p in packed_params])

    kernel = functools.partial(decoder_block_kernel, num_heads)
    return pl.pallas_call(
        kernel,
        out_shape=jax.ShapeDtypeStruct((B, T, D), tgt.dtype),
        grid=(steps,),
        in_specs=in_specs,
        out_specs=pl.BlockSpec((bb, T, D), lambda g: (g, 0, 0)),
        compiler_params=pltpu.CompilerParams(dimension_semantics=("parallel",)),
    )(tgt, encoder_out, tbias, sbias, *packed_params)


def reference_forward(tgt, enc, tgt_mask, src_tgt_mask, params, num_heads):
    """Pure-JAX f32 reference mirroring the PyTorch DecoderBlock (pre-norm, dropout p=0)."""
    (wq1, bq1, wk1, bk1, wv1, bv1, wo1, bo1,
     wq2, bq2, wk2, bk2, wv2, bv2, wo2, bo2,
     w1, b1, w2, b2,
     g1, be1, g2, be2, g3, be3) = params
    D = tgt.shape[-1]
    H = num_heads
    hd = D // H

    def ln(x, g, b, eps=1e-5):
        mu = x.mean(-1, keepdims=True)
        var = ((x - mu) ** 2).mean(-1, keepdims=True)
        return (x - mu) / jnp.sqrt(var + eps) * g + b

    def split(x):
        Bq, L, _ = x.shape
        return x.reshape(Bq, L, H, hd).transpose(0, 2, 1, 3)

    def mha(q_in, kv_in, wq, bq, wk, bk, wv, bv, wo, bo, mask):
        q = split(q_in @ wq + bq)
        k = split(kv_in @ wk + bk)
        v = split(kv_in @ wv + bv)
        s = jnp.einsum('bhqd,bhkd->bhqk', q, k) / jnp.sqrt(float(hd))
        s = jnp.where(mask[:, None] == 0, -1e9, s)
        p = jax.nn.softmax(s, axis=-1)
        o = jnp.einsum('bhqk,bhkd->bhqd', p, v)
        Bq, _, L, _ = o.shape
        o = o.transpose(0, 2, 1, 3).reshape(Bq, L, D)
        return o @ wo + bo

    x = tgt
    y = ln(x, g1, be1)
    x = x + mha(y, y, wq1, bq1, wk1, bk1, wv1, bv1, wo1, bo1, tgt_mask)
    y = ln(x, g2, be2)
    x = x + mha(y, enc, wq2, bq2, wk2, bk2, wv2, bv2, wo2, bo2, src_tgt_mask)
    y = ln(x, g3, be3)
    x = x + (jnp.maximum(y @ w1 + b1, 0.0) @ w2 + b2)
    return x


if __name__ == "__main__":
    B, T, S, D, DFF = 2, 8, 16, 32, 64

    key = jax.random.PRNGKey(0)
    ks = jax.random.split(key, 24)

    def w(k, shape, scale=0.05):
        return jax.random.normal(k, shape, jnp.float32) * scale

    params = [
        # self-attention: Wq,bq, Wk,bk, Wv,bv, Wo,bo  ([in, out] layout -> x @ W + b)
        w(ks[0], (D, D)), w(ks[1], (1, D)),
        w(ks[2], (D, D)), w(ks[3], (1, D)),
        w(ks[4], (D, D)), w(ks[5], (1, D)),
        w(ks[6], (D, D)), w(ks[7], (1, D)),
        # cross-attention: Wq,bq, Wk,bk, Wv,bv, Wo,bo
        w(ks[8], (D, D)), w(ks[9], (1, D)),
        w(ks[10], (D, D)), w(ks[11], (1, D)),
        w(ks[12], (D, D)), w(ks[13], (1, D)),
        w(ks[14], (D, D)), w(ks[15], (1, D)),
        # position-wise FF: W1,b1, W2,b2
        w(ks[16], (D, DFF)), w(ks[17], (1, DFF)),
        w(ks[18], (DFF, D)), w(ks[19], (1, D)),
        # LayerNorm gamma/beta x 3 (deep-copied norm in the PyTorch module)
        jnp.ones((1, D), jnp.float32), jnp.zeros((1, D), jnp.float32),
        jnp.ones((1, D), jnp.float32), jnp.zeros((1, D), jnp.float32),
        jnp.ones((1, D), jnp.float32), jnp.zeros((1, D), jnp.float32),
    ]

    tgt = jax.random.normal(ks[20], (B, T, D), jnp.float32)
    encoder_out = jax.random.normal(ks[21], (B, S, D), jnp.float32)
    # causal target mask, all-ones source-target mask (0 == masked position)
    tgt_mask = jnp.tile(jnp.tril(jnp.ones((T, T), jnp.float32))[None], (B, 1, 1))
    src_tgt_mask = jnp.ones((B, T, S), jnp.float32)

    # Parameter packing is done ONCE, outside the jitted per-call path.
    packed = prepare_params(params, NUM_HEADS, D, DFF)

    @jax.jit
    def fwd(t, e, tm, sm, p):
        return decoder_block(t, e, tm, sm, p, num_heads=NUM_HEADS)

    out = fwd(tgt, encoder_out, tgt_mask, src_tgt_mask, packed)
    jax.block_until_ready(out)
    assert out.shape == (B, T, D)

    # Loose-tolerance check against an f32 reference (kernel runs MXU operands in bf16).
    ref = reference_forward(tgt, encoder_out, tgt_mask, src_tgt_mask, params, NUM_HEADS)
    max_err = float(jnp.max(jnp.abs(out - ref)))
    assert max_err < 1e-1, f"max abs error vs f32 reference: {max_err}"

    print("KERNEL_OK")
</pallas_src>

<mosaic_0001>
module attributes {stable_mosaic.version = 11 : i64} {
  func.func @decoder_block_kernel(%arg0: i32, %arg1: memref<2x8x32xf32, #tpu.memory_space<vmem>>, %arg2: memref<2x16x32xf32, #tpu.memory_space<vmem>>, %arg3: memref<2x8x8xbf16, #tpu.memory_space<vmem>>, %arg4: memref<2x8x16xbf16, #tpu.memory_space<vmem>>, %arg5: memref<32x96xbf16, #tpu.memory_space<vmem>>, %arg6: memref<32x32xbf16, #tpu.memory_space<vmem>>, %arg7: memref<32x64xbf16, #tpu.memory_space<vmem>>, %arg8: memref<32x32xbf16, #tpu.memory_space<vmem>>, %arg9: memref<32x32xbf16, #tpu.memory_space<vmem>>, %arg10: memref<32x64xbf16, #tpu.memory_space<vmem>>, %arg11: memref<64x32xbf16, #tpu.memory_space<vmem>>, %arg12: memref<13x96xf32, #tpu.memory_space<vmem>>, %arg13: memref<2x8x32xf32, #tpu.memory_space<vmem>>) attributes {dimension_semantics = [#tpu.dimension_semantics<parallel>], iteration_bounds = array<i64: 1>, scalar_prefetch = 0 : i64, scratch_operands = 0 : i64, tpu.core_type = #tpu.core_type<tc>, window_params = [{transform_indices = @transform_0, window_bounds = array<i64: 2, 8, 32>}, {transform_indices = @transform_1, window_bounds = array<i64: 2, 16, 32>}, {transform_indices = @transform_2, window_bounds = array<i64: 2, 8, 8>}, {transform_indices = @transform_3, window_bounds = array<i64: 2, 8, 16>}, {pipeline_mode = #tpu.pipeline_mode<synchronous>, transform_indices = @transform_4, window_bounds = array<i64: 32, 96>}, {pipeline_mode = #tpu.pipeline_mode<synchronous>, transform_indices = @transform_5, window_bounds = array<i64: 32, 32>}, {pipeline_mode = #tpu.pipeline_mode<synchronous>, transform_indices = @transform_6, window_bounds = array<i64: 32, 64>}, {pipeline_mode = #tpu.pipeline_mode<synchronous>, transform_indices = @transform_7, window_bounds = array<i64: 32, 32>}, {pipeline_mode = #tpu.pipeline_mode<synchronous>, transform_indices = @transform_8, window_bounds = array<i64: 32, 32>}, {pipeline_mode = #tpu.pipeline_mode<synchronous>, transform_indices = @transform_9, window_bounds = array<i64: 32, 64>}, {pipeline_mode = #tpu.pipeline_mode<synchronous>, transform_indices = @transform_10, window_bounds = array<i64: 64, 32>}, {pipeline_mode = #tpu.pipeline_mode<synchronous>, transform_indices = @transform_11, window_bounds = array<i64: 13, 96>}, {transform_indices = @transform_12, window_bounds = array<i64: 2, 8, 32>}]} {
    %c0 = arith.constant 0 : index
    %c0_0 = arith.constant 0 : index
    %c0_1 = arith.constant 0 : index
    %0 = vector.load %arg1[%c0, %c0_0, %c0_1] : memref<2x8x32xf32, #tpu.memory_space<vmem>>, vector<2x8x32xf32>
    %1 = vector.shape_cast %0 : vector<2x8x32xf32> to vector<16x32xf32>
    %c0_2 = arith.constant 0 : index
    %c0_3 = arith.constant 0 : index
    %c0_4 = arith.constant 0 : index
    %2 = vector.load %arg2[%c0_2, %c0_3, %c0_4] : memref<2x16x32xf32, #tpu.memory_space<vmem>>, vector<2x16x32xf32>
    %3 = vector.shape_cast %2 : vector<2x16x32xf32> to vector<32x32xf32>
    %4 = arith.truncf %3 : vector<32x32xf32> to vector<32x32xbf16>
    %c0_5 = arith.constant 0 : index
    %c0_6 = arith.constant 0 : index
    %c0_7 = arith.constant 0 : index
    %5 = vector.load %arg3[%c0_5, %c0_6, %c0_7] : memref<2x8x8xbf16, #tpu.memory_space<vmem>>, vector<2x8x8xbf16>
    %c0_8 = arith.constant 0 : index
    %c0_9 = arith.constant 0 : index
    %c0_10 = arith.constant 0 : index
    %6 = vector.load %arg4[%c0_8, %c0_9, %c0_10] : memref<2x8x16xbf16, #tpu.memory_space<vmem>>, vector<2x8x16xbf16>
    %c0_11 = arith.constant 0 : index
    %c0_12 = arith.constant 0 : index
    %7 = vector.load %arg12[%c0_11, %c0_12] : memref<13x96xf32, #tpu.memory_space<vmem>>, vector<13x96xf32>
    %8 = vector.extract_strided_slice %7 {offsets = [7, 0], sizes = [1, 32], strides = [1, 1]} : vector<13x96xf32> to vector<1x32xf32>
    %9 = vector.extract_strided_slice %7 {offsets = [8, 0], sizes = [1, 32], strides = [1, 1]} : vector<13x96xf32> to vector<1x32xf32>
    %cst = arith.constant dense<0.000000e+00> : vector<16xf32>
    %10 = vector.multi_reduction <add>, %1, %cst [1] : vector<16x32xf32> to vector<16xf32>
    %11 = vector.shape_cast %10 : vector<16xf32> to vector<16x1xf32>
    %cst_13 = arith.constant 3.200000e+01 : f32
    %12 = vector.broadcast %cst_13 : f32 to vector<16x1xf32>
    %13 = arith.divf %11, %12 : vector<16x1xf32>
    %14 = vector.broadcast %13 : vector<16x1xf32> to vector<16x32xf32>
    %15 = arith.subf %1, %14 : vector<16x32xf32>
    %16 = arith.mulf %15, %15 : vector<16x32xf32>
    %cst_14 = arith.constant dense<0.000000e+00> : vector<16xf32>
    %17 = vector.multi_reduction <add>, %16, %cst_14 [1] : vector<16x32xf32> to vector<16xf32>
    %18 = vector.shape_cast %17 : vector<16xf32> to vector<16x1xf32>
    %cst_15 = arith.constant 3.200000e+01 : f32
    %19 = vector.broadcast %cst_15 : f32 to vector<16x1xf32>
    %20 = arith.divf %18, %19 : vector<16x1xf32>
    %21 = vector.broadcast %13 : vector<16x1xf32> to vector<16x32xf32>
    %22 = arith.subf %1, %21 : vector<16x32xf32>
    %cst_16 = arith.constant 9.99999974E-6 : f32
    %23 = vector.broadcast %cst_16 : f32 to vector<16x1xf32>
    %24 = arith.addf %20, %23 : vector<16x1xf32>
    %25 = math.rsqrt %24 : vector<16x1xf32>
    %26 = vector.broadcast %25 : vector<16x1xf32> to vector<16x32xf32>
    %27 = arith.mulf %22, %26 : vector<16x32xf32>
    %28 = vector.broadcast %8 : vector<1x32xf32> to vector<16x32xf32>
    %29 = arith.mulf %27, %28 : vector<16x32xf32>
    %30 = vector.broadcast %9 : vector<1x32xf32> to vector<16x32xf32>
    %31 = arith.addf %29, %30 : vector<16x32xf32>
    %32 = arith.truncf %31 : vector<16x32xf32> to vector<16x32xbf16>
    %c0_17 = arith.constant 0 : index
    %c0_18 = arith.constant 0 : index
    %33 = vector.load %arg5[%c0_17, %c0_18] : memref<32x96xbf16, #tpu.memory_space<vmem>>, vector<32x96xbf16>
    %cst_19 = arith.constant dense<0.000000e+00> : vector<16x96xf32>
    %34 = tpu.matmul %32, %33, %cst_19 {dimension_numbers = #tpu.dot_dimension_numbers<[1], [0], [0], [1], [0, 0, 1, 1], [], []>} : vector<16x32xbf16>, vector<32x96xbf16>, vector<16x96xf32> -> vector<16x96xf32>
    %35 = vector.extract_strided_slice %7 {offsets = [0, 0], sizes = [1, 96], strides = [1, 1]} : vector<13x96xf32> to vector<1x96xf32>
    %36 = vector.broadcast %35 : vector<1x96xf32> to vector<16x96xf32>
    %37 = arith.addf %34, %36 : vector<16x96xf32>
    %38 = arith.truncf %37 : vector<16x96xf32> to vector<16x96xbf16>
    %39 = vector.extract_strided_slice %38 {offsets = [0, 0], sizes = [16, 32], strides = [1, 1]} : vector<16x96xbf16> to vector<16x32xbf16>
    %40 = vector.extract_strided_slice %39 {offsets = [0, 0], sizes = [16, 8], strides = [1, 1]} : vector<16x32xbf16> to vector<16x8xbf16>
    %41 = vector.extract_strided_slice %39 {offsets = [0, 8], sizes = [16, 8], strides = [1, 1]} : vector<16x32xbf16> to vector<16x8xbf16>
    %42 = vector.extract_strided_slice %39 {offsets = [0, 16], sizes = [16, 8], strides = [1, 1]} : vector<16x32xbf16> to vector<16x8xbf16>
    %43 = vector.extract_strided_slice %39 {offsets = [0, 24], sizes = [16, 8], strides = [1, 1]} : vector<16x32xbf16> to vector<16x8xbf16>
    %44 = vector.shape_cast %40 : vector<16x8xbf16> to vector<1x16x8xbf16>
    %45 = vector.shape_cast %41 : vector<16x8xbf16> to vector<1x16x8xbf16>
    %46 = vector.shape_cast %42 : vector<16x8xbf16> to vector<1x16x8xbf16>
    %47 = vector.shape_cast %43 : vector<16x8xbf16> to vector<1x16x8xbf16>
    %48 = tpu.concatenate %44, %45, %46, %47 in 0 : vector<1x16x8xbf16>, vector<1x16x8xbf16>, vector<1x16x8xbf16>, vector<1x16x8xbf16> -> vector<4x16x8xbf16>
    %49 = vector.extract_strided_slice %38 {offsets = [0, 32], sizes = [16, 32], strides = [1, 1]} : vector<16x96xbf16> to vector<16x32xbf16>
    %50 = vector.extract_strided_slice %49 {offsets = [0, 0], sizes = [16, 8], strides = [1, 1]} : vector<16x32xbf16> to vector<16x8xbf16>
    %51 = vector.extract_strided_slice %49 {offsets = [0, 8], sizes = [16, 8], strides = [1, 1]} : vector<16x32xbf16> to vector<16x8xbf16>
    %52 = vector.extract_strided_slice %49 {offsets = [0, 16], sizes = [16, 8], strides = [1, 1]} : vector<16x32xbf16> to vector<16x8xbf16>
    %53 = vector.extract_strided_slice %49 {offsets = [0, 24], sizes = [16, 8], strides = [1, 1]} : vector<16x32xbf16> to vector<16x8xbf16>
    %54 = vector.shape_cast %50 : vector<16x8xbf16> to vector<1x16x8xbf16>
    %55 = vector.shape_cast %51 : vector<16x8xbf16> to vector<1x16x8xbf16>
    %56 = vector.shape_cast %52 : vector<16x8xbf16> to vector<1x16x8xbf16>
    %57 = vector.shape_cast %53 : vector<16x8xbf16> to vector<1x16x8xbf16>
    %58 = tpu.concatenate %54, %55, %56, %57 in 0 : vector<1x16x8xbf16>, vector<1x16x8xbf16>, vector<1x16x8xbf16>, vector<1x16x8xbf16> -> vector<4x16x8xbf16>
    %59 = vector.extract_strided_slice %38 {offsets = [0, 64], sizes = [16, 32], strides = [1, 1]} : vector<16x96xbf16> to vector<16x32xbf16>
    %60 = vector.extract_strided_slice %59 {offsets = [0, 0], sizes = [16, 8], strides = [1, 1]} : vector<16x32xbf16> to vector<16x8xbf16>
    %61 = vector.extract_strided_slice %59 {offsets = [0, 8], sizes = [16, 8], strides = [1, 1]} : vector<16x32xbf16> to vector<16x8xbf16>
    %62 = vector.extract_strided_slice %59 {offsets = [0, 16], sizes = [16, 8], strides = [1, 1]} : vector<16x32xbf16> to vector<16x8xbf16>
    %63 = vector.extract_strided_slice %59 {offsets = [0, 24], sizes = [16, 8], strides = [1, 1]} : vector<16x32xbf16> to vector<16x8xbf16>
    %64 = vector.shape_cast %60 : vector<16x8xbf16> to vector<1x16x8xbf16>
    %65 = vector.shape_cast %61 : vector<16x8xbf16> to vector<1x16x8xbf16>
    %66 = vector.shape_cast %62 : vector<16x8xbf16> to vector<1x16x8xbf16>
    %67 = vector.shape_cast %63 : vector<16x8xbf16> to vector<1x16x8xbf16>
    %68 = tpu.concatenate %64, %65, %66, %67 in 0 : vector<1x16x8xbf16>, vector<1x16x8xbf16>, vector<1x16x8xbf16>, vector<1x16x8xbf16> -> vector<4x16x8xbf16>
    %69 = vector.extract_strided_slice %48 {offsets = [0, 0, 0], sizes = [4, 8, 8], strides = [1, 1, 1]} : vector<4x16x8xbf16> to vector<4x8x8xbf16>
    %70 = vector.extract_strided_slice %58 {offsets = [0, 0, 0], sizes = [4, 8, 8], strides = [1, 1, 1]} : vector<4x16x8xbf16> to vector<4x8x8xbf16>
    %71 = vector.extract_strided_slice %68 {offsets = [0, 0, 0], sizes = [4, 8, 8], strides = [1, 1, 1]} : vector<4x16x8xbf16> to vector<4x8x8xbf16>
    %cst_20 = arith.constant dense<0.000000e+00> : vector<4x8x8xf32>
    %72 = tpu.matmul %69, %70, %cst_20 {dimension_numbers = #tpu.dot_dimension_numbers<[2], [2], [1], [1], [0, 0, 0, 1, 1, 1], [0], [0]>} : vector<4x8x8xbf16>, vector<4x8x8xbf16>, vector<4x8x8xf32> -> vector<4x8x8xf32>
    %73 = vector.extract_strided_slice %5 {offsets = [0, 0, 0], sizes = [1, 8, 8], strides = [1, 1, 1]} : vector<2x8x8xbf16> to vector<1x8x8xbf16>
    %74 = vector.shape_cast %73 : vector<1x8x8xbf16> to vector<8x8xbf16>
    %75 = vector.shape_cast %74 : vector<8x8xbf16> to vector<1x8x8xbf16>
    %76 = arith.extf %75 : vector<1x8x8xbf16> to vector<1x8x8xf32>
    %77 = vector.broadcast %76 : vector<1x8x8xf32> to vector<4x8x8xf32>
    %78 = arith.addf %72, %77 : vector<4x8x8xf32>
    %cst_21 = arith.constant dense<0xFF800000> : vector<4x8xf32>
    %79 = vector.multi_reduction <maximumf>, %78, %cst_21 [2] : vector<4x8x8xf32> to vector<4x8xf32>
    %80 = vector.shape_cast %79 : vector<4x8xf32> to vector<4x8x1xf32>
    %81 = vector.broadcast %80 : vector<4x8x1xf32> to vector<4x8x8xf32>
    %82 = arith.subf %78, %81 : vector<4x8x8xf32>
    %83 = math.exp %82 : vector<4x8x8xf32>
    %cst_22 = arith.constant dense<0.000000e+00> : vector<4x8xf32>
    %84 = vector.multi_reduction <add>, %83, %cst_22 [2] : vector<4x8x8xf32> to vector<4x8xf32>
    %85 = vector.shape_cast %84 : vector<4x8xf32> to vector<4x8x1xf32>
    %86 = vector.broadcast %85 : vector<4x8x1xf32> to vector<4x8x8xf32>
    %87 = arith.divf %83, %86 : vector<4x8x8xf32>
    %88 = arith.truncf %87 : vector<4x8x8xf32> to vector<4x8x8xbf16>
    %cst_23 = arith.constant dense<0.000000e+00> : vector<4x8x8xf32>
    %89 = tpu.matmul %88, %71, %cst_23 {dimension_numbers = #tpu.dot_dimension_numbers<[2], [1], [1], [2], [0, 0, 0, 1, 1, 2], [0], [0]>} : vector<4x8x8xbf16>, vector<4x8x8xbf16>, vector<4x8x8xf32> -> vector<4x8x8xf32>
    %90 = vector.extract_strided_slice %89 {offsets = [0, 0, 0], sizes = [1, 8, 8], strides = [1, 1, 1]} : vector<4x8x8xf32> to vector<1x8x8xf32>
    %91 = vector.shape_cast %90 : vector<1x8x8xf32> to vector<8x8xf32>
    %92 = vector.extract_strided_slice %89 {offsets = [1, 0, 0], sizes = [1, 8, 8], strides = [1, 1, 1]} : vector<4x8x8xf32> to vector<1x8x8xf32>
    %93 = vector.shape_cast %92 : vector<1x8x8xf32> to vector<8x8xf32>
    %94 = vector.extract_strided_slice %89 {offsets = [2, 0, 0], sizes = [1, 8, 8], strides = [1, 1, 1]} : vector<4x8x8xf32> to vector<1x8x8xf32>
    %95 = vector.shape_cast %94 : vector<1x8x8xf32> to vector<8x8xf32>
    %96 = vector.extract_strided_slice %89 {offsets = [3, 0, 0], sizes = [1, 8, 8], strides = [1, 1, 1]} : vector<4x8x8xf32> to vector<1x8x8xf32>
    %97 = vector.shape_cast %96 : vector<1x8x8xf32> to vector<8x8xf32>
    %98 = tpu.concatenate %91, %93, %95, %97 in 1 : vector<8x8xf32>, vector<8x8xf32>, vector<8x8xf32>, vector<8x8xf32> -> vector<8x32xf32>
    %99 = vector.extract_strided_slice %48 {offsets = [0, 8, 0], sizes = [4, 8, 8], strides = [1, 1, 1]} : vector<4x16x8xbf16> to vector<4x8x8xbf16>
    %100 = vector.extract_strided_slice %58 {offsets = [0, 8, 0], sizes = [4, 8, 8], strides = [1, 1, 1]} : vector<4x16x8xbf16> to vector<4x8x8xbf16>
    %101 = vector.extract_strided_slice %68 {offsets = [0, 8, 0], sizes = [4, 8, 8], strides = [1, 1, 1]} : vector<4x16x8xbf16> to vector<4x8x8xbf16>
    %cst_24 = arith.constant dense<0.000000e+00> : vector<4x8x8xf32>
    %102 = tpu.matmul %99, %100, %cst_24 {dimension_numbers = #tpu.dot_dimension_numbers<[2], [2], [1], [1], [0, 0, 0, 1, 1, 1], [0], [0]>} : vector<4x8x8xbf16>, vector<4x8x8xbf16>, vector<4x8x8xf32> -> vector<4x8x8xf32>
    %103 = vector.extract_strided_slice %5 {offsets = [1, 0, 0], sizes = [1, 8, 8], strides = [1, 1, 1]} : vector<2x8x8xbf16> to vector<1x8x8xbf16>
    %104 = vector.shape_cast %103 : vector<1x8x8xbf16> to vector<8x8xbf16>
    %105 = vector.shape_cast %104 : vector<8x8xbf16> to vector<1x8x8xbf16>
    %106 = arith.extf %105 : vector<1x8x8xbf16> to vector<1x8x8xf32>
    %107 = vector.broadcast %106 : vector<1x8x8xf32> to vector<4x8x8xf32>
    %108 = arith.addf %102, %107 : vector<4x8x8xf32>
    %cst_25 = arith.constant dense<0xFF800000> : vector<4x8xf32>
    %109 = vector.multi_reduction <maximumf>, %108, %cst_25 [2] : vector<4x8x8xf32> to vector<4x8xf32>
    %110 = vector.shape_cast %109 : vector<4x8xf32> to vector<4x8x1xf32>
    %111 = vector.broadcast %110 : vector<4x8x1xf32> to vector<4x8x8xf32>
    %112 = arith.subf %108, %111 : vector<4x8x8xf32>
    %113 = math.exp %112 : vector<4x8x8xf32>
    %cst_26 = arith.constant dense<0.000000e+00> : vector<4x8xf32>
    %114 = vector.multi_reduction <add>, %113, %cst_26 [2] : vector<4x8x8xf32> to vector<4x8xf32>
    %115 = vector.shape_cast %114 : vector<4x8xf32> to vector<4x8x1xf32>
    %116 = vector.broadcast %115 : vector<4x8x1xf32> to vector<4x8x8xf32>
    %117 = arith.divf %113, %116 : vector<4x8x8xf32>
    %118 = arith.truncf %117 : vector<4x8x8xf32> to vector<4x8x8xbf16>
    %cst_27 = arith.constant dense<0.000000e+00> : vector<4x8x8xf32>
    %119 = tpu.matmul %118, %101, %cst_27 {dimension_numbers = #tpu.dot_dimension_numbers<[2], [1], [1], [2], [0, 0, 0, 1, 1, 2], [0], [0]>} : vector<4x8x8xbf16>, vector<4x8x8xbf16>, vector<4x8x8xf32> -> vector<4x8x8xf32>
    %120 = vector.extract_strided_slice %119 {offsets = [0, 0, 0], sizes = [1, 8, 8], strides = [1, 1, 1]} : vector<4x8x8xf32> to vector<1x8x8xf32>
    %121 = vector.shape_cast %120 : vector<1x8x8xf32> to vector<8x8xf32>
    %122 = vector.extract_strided_slice %119 {offsets = [1, 0, 0], sizes = [1, 8, 8], strides = [1, 1, 1]} : vector<4x8x8xf32> to vector<1x8x8xf32>
    %123 = vector.shape_cast %122 : vector<1x8x8xf32> to vector<8x8xf32>
    %124 = vector.extract_strided_slice %119 {offsets = [2, 0, 0], sizes = [1, 8, 8], strides = [1, 1, 1]} : vector<4x8x8xf32> to vector<1x8x8xf32>
    %125 = vector.shape_cast %124 : vector<1x8x8xf32> to vector<8x8xf32>
    %126 = vector.extract_strided_slice %119 {offsets = [3, 0, 0], sizes = [1, 8, 8], strides = [1, 1, 1]} : vector<4x8x8xf32> to vector<1x8x8xf32>
    %127 = vector.shape_cast %126 : vector<1x8x8xf32> to vector<8x8xf32>
    %128 = tpu.concatenate %121, %123, %125, %127 in 1 : vector<8x8xf32>, vector<8x8xf32>, vector<8x8xf32>, vector<8x8xf32> -> vector<8x32xf32>
    %129 = tpu.concatenate %98, %128 in 0 : vector<8x32xf32>, vector<8x32xf32> -> vector<16x32xf32>
    %130 = arith.truncf %129 : vector<16x32xf32> to vector<16x32xbf16>
    %c0_28 = arith.constant 0 : index
    %c0_29 = arith.constant 0 : index
    %131 = vector.load %arg8[%c0_28, %c0_29] : memref<32x32xbf16, #tpu.memory_space<vmem>>, vector<32x32xbf16>
    %cst_30 = arith.constant dense<0.000000e+00> : vector<16x32xf32>
    %132 = tpu.matmul %130, %131, %cst_30 {dimension_numbers = #tpu.dot_dimension_numbers<[1], [0], [0], [1], [0, 0, 1, 1], [], []>} : vector<16x32xbf16>, vector<32x32xbf16>, vector<16x32xf32> -> vector<16x32xf32>
    %133 = vector.extract_strided_slice %7 {offsets = [3, 0], sizes = [1, 32], strides = [1, 1]} : vector<13x96xf32> to vector<1x32xf32>
    %134 = vector.broadcast %133 : vector<1x32xf32> to vector<16x32xf32>
    %135 = arith.addf %132, %134 : vector<16x32xf32>
    %136 = arith.addf %1, %135 : vector<16x32xf32>
    %137 = vector.extract_strided_slice %7 {offsets = [9, 0], sizes = [1, 32], strides = [1, 1]} : vector<13x96xf32> to vector<1x32xf32>
    %138 = vector.extract_strided_slice %7 {offsets = [10, 0], sizes = [1, 32], strides = [1, 1]} : vector<13x96xf32> to vector<1x32xf32>
    %cst_31 = arith.constant dense<0.000000e+00> : vector<16xf32>
    %139 = vector.multi_reduction <add>, %136, %cst_31 [1] : vector<16x32xf32> to vector<16xf32>
    %140 = vector.shape_cast %139 : vector<16xf32> to vector<16x1xf32>
    %cst_32 = arith.constant 3.200000e+01 : f32
    %141 = vector.broadcast %cst_32 : f32 to vector<16x1xf32>
    %142 = arith.divf %140, %141 : vector<16x1xf32>
    %143 = vector.broadcast %142 : vector<16x1xf32> to vector<16x32xf32>
    %144 = arith.subf %136, %143 : vector<16x32xf32>
    %145 = arith.mulf %144, %144 : vector<16x32xf32>
    %cst_33 = arith.constant dense<0.000000e+00> : vector<16xf32>
    %146 = vector.multi_reduction <add>, %145, %cst_33 [1] : vector<16x32xf32> to vector<16xf32>
    %147 = vector.shape_cast %146 : vector<16xf32> to vector<16x1xf32>
    %cst_34 = arith.constant 3.200000e+01 : f32
    %148 = vector.broadcast %cst_34 : f32 to vector<16x1xf32>
    %149 = arith.divf %147, %148 : vector<16x1xf32>
    %150 = vector.broadcast %142 : vector<16x1xf32> to vector<16x32xf32>
    %151 = arith.subf %136, %150 : vector<16x32xf32>
    %cst_35 = arith.constant 9.99999974E-6 : f32
    %152 = vector.broadcast %cst_35 : f32 to vector<16x1xf32>
    %153 = arith.addf %149, %152 : vector<16x1xf32>
    %154 = math.rsqrt %153 : vector<16x1xf32>
    %155 = vector.broadcast %154 : vector<16x1xf32> to vector<16x32xf32>
    %156 = arith.mulf %151, %155 : vector<16x32xf32>
    %157 = vector.broadcast %137 : vector<1x32xf32> to vector<16x32xf32>
    %158 = arith.mulf %156, %157 : vector<16x32xf32>
    %159 = vector.broadcast %138 : vector<1x32xf32> to vector<16x32xf32>
    %160 = arith.addf %158, %159 : vector<16x32xf32>
    %161 = arith.truncf %160 : vector<16x32xf32> to vector<16x32xbf16>
    %c0_36 = arith.constant 0 : index
    %c0_37 = arith.constant 0 : index
    %162 = vector.load %arg6[%c0_36, %c0_37] : memref<32x32xbf16, #tpu.memory_space<vmem>>, vector<32x32xbf16>
    %cst_38 = arith.constant dense<0.000000e+00> : vector<16x32xf32>
    %163 = tpu.matmul %161, %162, %cst_38 {dimension_numbers = #tpu.dot_dimension_numbers<[1], [0], [0], [1], [0, 0, 1, 1], [], []>} : vector<16x32xbf16>, vector<32x32xbf16>, vector<16x32xf32> -> vector<16x32xf32>
    %164 = vector.extract_strided_slice %7 {offsets = [2, 0], sizes = [1, 32], strides = [1, 1]} : vector<13x96xf32> to vector<1x32xf32>
    %165 = vector.broadcast %164 : vector<1x32xf32> to vector<16x32xf32>
    %166 = arith.addf %163, %165 : vector<16x32xf32>
    %167 = arith.truncf %166 : vector<16x32xf32> to vector<16x32xbf16>
    %c0_39 = arith.constant 0 : index
    %c0_40 = arith.constant 0 : index
    %168 = vector.load %arg7[%c0_39, %c0_40] : memref<32x64xbf16, #tpu.memory_space<vmem>>, vector<32x64xbf16>
    %cst_41 = arith.constant dense<0.000000e+00> : vector<32x64xf32>
    %169 = tpu.matmul %4, %168, %cst_41 {dimension_numbers = #tpu.dot_dimension_numbers<[1], [0], [0], [1], [0, 0, 1, 1], [], []>} : vector<32x32xbf16>, vector<32x64xbf16>, vector<32x64xf32> -> vector<32x64xf32>
    %170 = vector.extract_strided_slice %7 {offsets = [1, 0], sizes = [1, 64], strides = [1, 1]} : vector<13x96xf32> to vector<1x64xf32>
    %171 = vector.broadcast %170 : vector<1x64xf32> to vector<32x64xf32>
    %172 = arith.addf %169, %171 : vector<32x64xf32>
    %173 = arith.truncf %172 : vector<32x64xf32> to vector<32x64xbf16>
    %174 = vector.extract_strided_slice %167 {offsets = [0, 0], sizes = [16, 8], strides = [1, 1]} : vector<16x32xbf16> to vector<16x8xbf16>
    %175 = vector.extract_strided_slice %167 {offsets = [0, 8], sizes = [16, 8], strides = [1, 1]} : vector<16x32xbf16> to vector<16x8xbf16>
    %176 = vector.extract_strided_slice %167 {offsets = [0, 16], sizes = [16, 8], strides = [1, 1]} : vector<16x32xbf16> to vector<16x8xbf16>
    %177 = vector.extract_strided_slice %167 {offsets = [0, 24], sizes = [16, 8], strides = [1, 1]} : vector<16x32xbf16> to vector<16x8xbf16>
    %178 = vector.shape_cast %174 : vector<16x8xbf16> to vector<1x16x8xbf16>
    %179 = vector.shape_cast %175 : vector<16x8xbf16> to vector<1x16x8xbf16>
    %180 = vector.shape_cast %176 : vector<16x8xbf16> to vector<1x16x8xbf16>
    %181 = vector.shape_cast %177 : vector<16x8xbf16> to vector<1x16x8xbf16>
    %182 = tpu.concatenate %178, %179, %180, %181 in 0 : vector<1x16x8xbf16>, vector<1x16x8xbf16>, vector<1x16x8xbf16>, vector<1x16x8xbf16> -> vector<4x16x8xbf16>
    %183 = vector.extract_strided_slice %173 {offsets = [0, 0], sizes = [32, 32], strides = [1, 1]} : vector<32x64xbf16> to vector<32x32xbf16>
    %184 = vector.extract_strided_slice %183 {offsets = [0, 0], sizes = [32, 8], strides = [1, 1]} : vector<32x32xbf16> to vector<32x8xbf16>
    %185 = vector.extract_strided_slice %183 {offsets = [0, 8], sizes = [32, 8], strides = [1, 1]} : vector<32x32xbf16> to vector<32x8xbf16>
    %186 = vector.extract_strided_slice %183 {offsets = [0, 16], sizes = [32, 8], strides = [1, 1]} : vector<32x32xbf16> to vector<32x8xbf16>
    %187 = vector.extract_strided_slice %183 {offsets = [0, 24], sizes = [32, 8], strides = [1, 1]} : vector<32x32xbf16> to vector<32x8xbf16>
    %188 = vector.shape_cast %184 : vector<32x8xbf16> to vector<1x32x8xbf16>
    %189 = vector.shape_cast %185 : vector<32x8xbf16> to vector<1x32x8xbf16>
    %190 = vector.shape_cast %186 : vector<32x8xbf16> to vector<1x32x8xbf16>
    %191 = vector.shape_cast %187 : vector<32x8xbf16> to vector<1x32x8xbf16>
    %192 = tpu.concatenate %188, %189, %190, %191 in 0 : vector<1x32x8xbf16>, vector<1x32x8xbf16>, vector<1x32x8xbf16>, vector<1x32x8xbf16> -> vector<4x32x8xbf16>
    %193 = vector.extract_strided_slice %173 {offsets = [0, 32], sizes = [32, 32], strides = [1, 1]} : vector<32x64xbf16> to vector<32x32xbf16>
    %194 = vector.extract_strided_slice %193 {offsets = [0, 0], sizes = [32, 8], strides = [1, 1]} : vector<32x32xbf16> to vector<32x8xbf16>
    %195 = vector.extract_strided_slice %193 {offsets = [0, 8], sizes = [32, 8], strides = [1, 1]} : vector<32x32xbf16> to vector<32x8xbf16>
    %196 = vector.extract_strided_slice %193 {offsets = [0, 16], sizes = [32, 8], strides = [1, 1]} : vector<32x32xbf16> to vector<32x8xbf16>
    %197 = vector.extract_strided_slice %193 {offsets = [0, 24], sizes = [32, 8], strides = [1, 1]} : vector<32x32xbf16> to vector<32x8xbf16>
    %198 = vector.shape_cast %194 : vector<32x8xbf16> to vector<1x32x8xbf16>
    %199 = vector.shape_cast %195 : vector<32x8xbf16> to vector<1x32x8xbf16>
    %200 = vector.shape_cast %196 : vector<32x8xbf16> to vector<1x32x8xbf16>
    %201 = vector.shape_cast %197 : vector<32x8xbf16> to vector<1x32x8xbf16>
    %202 = tpu.concatenate %198, %199, %200, %201 in 0 : vector<1x32x8xbf16>, vector<1x32x8xbf16>, vector<1x32x8xbf16>, vector<1x32x8xbf16> -> vector<4x32x8xbf16>
    %203 = vector.extract_strided_slice %182 {offsets = [0, 0, 0], sizes = [4, 8, 8], strides = [1, 1, 1]} : vector<4x16x8xbf16> to vector<4x8x8xbf16>
    %204 = vector.extract_strided_slice %192 {offsets = [0, 0, 0], sizes = [4, 16, 8], strides = [1, 1, 1]} : vector<4x32x8xbf16> to vector<4x16x8xbf16>
    %205 = vector.extract_strided_slice %202 {offsets = [0, 0, 0], sizes = [4, 16, 8], strides = [1, 1, 1]} : vector<4x32x8xbf16> to vector<4x16x8xbf16>
    %cst_42 = arith.constant dense<0.000000e+00> : vector<4x8x16xf32>
    %206 = tpu.matmul %203, %204, %cst_42 {dimension_numbers = #tpu.dot_dimension_numbers<[2], [2], [1], [1], [0, 0, 0, 1, 1, 1], [0], [0]>} : vector<4x8x8xbf16>, vector<4x16x8xbf16>, vector<4x8x16xf32> -> vector<4x8x16xf32>
    %207 = vector.extract_strided_slice %6 {offsets = [0, 0, 0], sizes = [1, 8, 16], strides = [1, 1, 1]} : vector<2x8x16xbf16> to vector<1x8x16xbf16>
    %208 = vector.shape_cast %207 : vector<1x8x16xbf16> to vector<8x16xbf16>
    %209 = vector.shape_cast %208 : vector<8x16xbf16> to vector<1x8x16xbf16>
    %210 = arith.extf %209 : vector<1x8x16xbf16> to vector<1x8x16xf32>
    %211 = vector.broadcast %210 : vector<1x8x16xf32> to vector<4x8x16xf32>
    %212 = arith.addf %206, %211 : vector<4x8x16xf32>
    %cst_43 = arith.constant dense<0xFF800000> : vector<4x8xf32>
    %213 = vector.multi_reduction <maximumf>, %212, %cst_43 [2] : vector<4x8x16xf32> to vector<4x8xf32>
    %214 = vector.shape_cast %213 : vector<4x8xf32> to vector<4x8x1xf32>
    %215 = vector.broadcast %214 : vector<4x8x1xf32> to vector<4x8x16xf32>
    %216 = arith.subf %212, %215 : vector<4x8x16xf32>
    %217 = math.exp %216 : vector<4x8x16xf32>
    %cst_44 = arith.constant dense<0.000000e+00> : vector<4x8xf32>
    %218 = vector.multi_reduction <add>, %217, %cst_44 [2] : vector<4x8x16xf32> to vector<4x8xf32>
    %219 = vector.shape_cast %218 : vector<4x8xf32> to vector<4x8x1xf32>
    %220 = vector.broadcast %219 : vector<4x8x1xf32> to vector<4x8x16xf32>
    %221 = arith.divf %217, %220 : vector<4x8x16xf32>
    %222 = arith.truncf %221 : vector<4x8x16xf32> to vector<4x8x16xbf16>
    %cst_45 = arith.constant dense<0.000000e+00> : vector<4x8x8xf32>
    %223 = tpu.matmul %222, %205, %cst_45 {dimension_numbers = #tpu.dot_dimension_numbers<[2], [1], [1], [2], [0, 0, 0, 1, 1, 2], [0], [0]>} : vector<4x8x16xbf16>, vector<4x16x8xbf16>, vector<4x8x8xf32> -> vector<4x8x8xf32>
    %224 = vector.extract_strided_slice %223 {offsets = [0, 0, 0], sizes = [1, 8, 8], strides = [1, 1, 1]} : vector<4x8x8xf32> to vector<1x8x8xf32>
    %225 = vector.shape_cast %224 : vector<1x8x8xf32> to vector<8x8xf32>
    %226 = vector.extract_strided_slice %223 {offsets = [1, 0, 0], sizes = [1, 8, 8], strides = [1, 1, 1]} : vector<4x8x8xf32> to vector<1x8x8xf32>
    %227 = vector.shape_cast %226 : vector<1x8x8xf32> to vector<8x8xf32>
    %228 = vector.extract_strided_slice %223 {offsets = [2, 0, 0], sizes = [1, 8, 8], strides = [1, 1, 1]} : vector<4x8x8xf32> to vector<1x8x8xf32>
    %229 = vector.shape_cast %228 : vector<1x8x8xf32> to vector<8x8xf32>
    %230 = vector.extract_strided_slice %223 {offsets = [3, 0, 0], sizes = [1, 8, 8], strides = [1, 1, 1]} : vector<4x8x8xf32> to vector<1x8x8xf32>
    %231 = vector.shape_cast %230 : vector<1x8x8xf32> to vector<8x8xf32>
    %232 = tpu.concatenate %225, %227, %229, %231 in 1 : vector<8x8xf32>, vector<8x8xf32>, vector<8x8xf32>, vector<8x8xf32> -> vector<8x32xf32>
    %233 = vector.extract_strided_slice %182 {offsets = [0, 8, 0], sizes = [4, 8, 8], strides = [1, 1, 1]} : vector<4x16x8xbf16> to vector<4x8x8xbf16>
    %234 = vector.extract_strided_slice %192 {offsets = [0, 16, 0], sizes = [4, 16, 8], strides = [1, 1, 1]} : vector<4x32x8xbf16> to vector<4x16x8xbf16>
    %235 = vector.extract_strided_slice %202 {offsets = [0, 16, 0], sizes = [4, 16, 8], strides = [1, 1, 1]} : vector<4x32x8xbf16> to vector<4x16x8xbf16>
    %cst_46 = arith.constant dense<0.000000e+00> : vector<4x8x16xf32>
    %236 = tpu.matmul %233, %234, %cst_46 {dimension_numbers = #tpu.dot_dimension_numbers<[2], [2], [1], [1], [0, 0, 0, 1, 1, 1], [0], [0]>} : vector<4x8x8xbf16>, vector<4x16x8xbf16>, vector<4x8x16xf32> -> vector<4x8x16xf32>
    %237 = vector.extract_strided_slice %6 {offsets = [1, 0, 0], sizes = [1, 8, 16], strides = [1, 1, 1]} : vector<2x8x16xbf16> to vector<1x8x16xbf16>
    %238 = vector.shape_cast %237 : vector<1x8x16xbf16> to vector<8x16xbf16>
    %239 = vector.shape_cast %238 : vector<8x16xbf16> to vector<1x8x16xbf16>
    %240 = arith.extf %239 : vector<1x8x16xbf16> to vector<1x8x16xf32>
    %241 = vector.broadcast %240 : vector<1x8x16xf32> to vector<4x8x16xf32>
    %242 = arith.addf %236, %241 : vector<4x8x16xf32>
    %cst_47 = arith.constant dense<0xFF800000> : vector<4x8xf32>
    %243 = vector.multi_reduction <maximumf>, %242, %cst_47 [2] : vector<4x8x16xf32> to vector<4x8xf32>
    %244 = vector.shape_cast %243 : vector<4x8xf32> to vector<4x8x1xf32>
    %245 = vector.broadcast %244 : vector<4x8x1xf32> to vector<4x8x16xf32>
    %246 = arith.subf %242, %245 : vector<4x8x16xf32>
    %247 = math.exp %246 : vector<4x8x16xf32>
    %cst_48 = arith.constant dense<0.000000e+00> : vector<4x8xf32>
    %248 = vector.multi_reduction <add>, %247, %cst_48 [2] : vector<4x8x16xf32> to vector<4x8xf32>
    %249 = vector.shape_cast %248 : vector<4x8xf32> to vector<4x8x1xf32>
    %250 = vector.broadcast %249 : vector<4x8x1xf32> to vector<4x8x16xf32>
    %251 = arith.divf %247, %250 : vector<4x8x16xf32>
    %252 = arith.truncf %251 : vector<4x8x16xf32> to vector<4x8x16xbf16>
    %cst_49 = arith.constant dense<0.000000e+00> : vector<4x8x8xf32>
    %253 = tpu.matmul %252, %235, %cst_49 {dimension_numbers = #tpu.dot_dimension_numbers<[2], [1], [1], [2], [0, 0, 0, 1, 1, 2], [0], [0]>} : vector<4x8x16xbf16>, vector<4x16x8xbf16>, vector<4x8x8xf32> -> vector<4x8x8xf32>
    %254 = vector.extract_strided_slice %253 {offsets = [0, 0, 0], sizes = [1, 8, 8], strides = [1, 1, 1]} : vector<4x8x8xf32> to vector<1x8x8xf32>
    %255 = vector.shape_cast %254 : vector<1x8x8xf32> to vector<8x8xf32>
    %256 = vector.extract_strided_slice %253 {offsets = [1, 0, 0], sizes = [1, 8, 8], strides = [1, 1, 1]} : vector<4x8x8xf32> to vector<1x8x8xf32>
    %257 = vector.shape_cast %256 : vector<1x8x8xf32> to vector<8x8xf32>
    %258 = vector.extract_strided_slice %253 {offsets = [2, 0, 0], sizes = [1, 8, 8], strides = [1, 1, 1]} : vector<4x8x8xf32> to vector<1x8x8xf32>
    %259 = vector.shape_cast %258 : vector<1x8x8xf32> to vector<8x8xf32>
    %260 = vector.extract_strided_slice %253 {offsets = [3, 0, 0], sizes = [1, 8, 8], strides = [1, 1, 1]} : vector<4x8x8xf32> to vector<1x8x8xf32>
    %261 = vector.shape_cast %260 : vector<1x8x8xf32> to vector<8x8xf32>
    %262 = tpu.concatenate %255, %257, %259, %261 in 1 : vector<8x8xf32>, vector<8x8xf32>, vector<8x8xf32>, vector<8x8xf32> -> vector<8x32xf32>
    %263 = tpu.concatenate %232, %262 in 0 : vector<8x32xf32>, vector<8x32xf32> -> vector<16x32xf32>
    %264 = arith.truncf %263 : vector<16x32xf32> to vector<16x32xbf16>
    %c0_50 = arith.constant 0 : index
    %c0_51 = arith.constant 0 : index
    %265 = vector.load %arg9[%c0_50, %c0_51] : memref<32x32xbf16, #tpu.memory_space<vmem>>, vector<32x32xbf16>
    %cst_52 = arith.constant dense<0.000000e+00> : vector<16x32xf32>
    %266 = tpu.matmul %264, %265, %cst_52 {dimension_numbers = #tpu.dot_dimension_numbers<[1], [0], [0], [1], [0, 0, 1, 1], [], []>} : vector<16x32xbf16>, vector<32x32xbf16>, vector<16x32xf32> -> vector<16x32xf32>
    %267 = vector.extract_strided_slice %7 {offsets = [4, 0], sizes = [1, 32], strides = [1, 1]} : vector<13x96xf32> to vector<1x32xf32>
    %268 = vector.broadcast %267 : vector<1x32xf32> to vector<16x32xf32>
    %269 = arith.addf %266, %268 : vector<16x32xf32>
    %270 = arith.addf %136, %269 : vector<16x32xf32>
    %271 = vector.extract_strided_slice %7 {offsets = [11, 0], sizes = [1, 32], strides = [1, 1]} : vector<13x96xf32> to vector<1x32xf32>
    %272 = vector.extract_strided_slice %7 {offsets = [12, 0], sizes = [1, 32], strides = [1, 1]} : vector<13x96xf32> to vector<1x32xf32>
    %cst_53 = arith.constant dense<0.000000e+00> : vector<16xf32>
    %273 = vector.multi_reduction <add>, %270, %cst_53 [1] : vector<16x32xf32> to vector<16xf32>
    %274 = vector.shape_cast %273 : vector<16xf32> to vector<16x1xf32>
    %cst_54 = arith.constant 3.200000e+01 : f32
    %275 = vector.broadcast %cst_54 : f32 to vector<16x1xf32>
    %276 = arith.divf %274, %275 : vector<16x1xf32>
    %277 = vector.broadcast %276 : vector<16x1xf32> to vector<16x32xf32>
    %278 = arith.subf %270, %277 : vector<16x32xf32>
    %279 = arith.mulf %278, %278 : vector<16x32xf32>
    %cst_55 = arith.constant dense<0.000000e+00> : vector<16xf32>
    %280 = vector.multi_reduction <add>, %279, %cst_55 [1] : vector<16x32xf32> to vector<16xf32>
    %281 = vector.shape_cast %280 : vector<16xf32> to vector<16x1xf32>
    %cst_56 = arith.constant 3.200000e+01 : f32
    %282 = vector.broadcast %cst_56 : f32 to vector<16x1xf32>
    %283 = arith.divf %281, %282 : vector<16x1xf32>
    %284 = vector.broadcast %276 : vector<16x1xf32> to vector<16x32xf32>
    %285 = arith.subf %270, %284 : vector<16x32xf32>
    %cst_57 = arith.constant 9.99999974E-6 : f32
    %286 = vector.broadcast %cst_57 : f32 to vector<16x1xf32>
    %287 = arith.addf %283, %286 : vector<16x1xf32>
    %288 = math.rsqrt %287 : vector<16x1xf32>
    %289 = vector.broadcast %288 : vector<16x1xf32> to vector<16x32xf32>
    %290 = arith.mulf %285, %289 : vector<16x32xf32>
    %291 = vector.broadcast %271 : vector<1x32xf32> to vector<16x32xf32>
    %292 = arith.mulf %290, %291 : vector<16x32xf32>
    %293 = vector.broadcast %272 : vector<1x32xf32> to vector<16x32xf32>
    %294 = arith.addf %292, %293 : vector<16x32xf32>
    %295 = arith.truncf %294 : vector<16x32xf32> to vector<16x32xbf16>
    %c0_58 = arith.constant 0 : index
    %c0_59 = arith.constant 0 : index
    %296 = vector.load %arg10[%c0_58, %c0_59] : memref<32x64xbf16, #tpu.memory_space<vmem>>, vector<32x64xbf16>
    %cst_60 = arith.constant dense<0.000000e+00> : vector<16x64xf32>
    %297 = tpu.matmul %295, %296, %cst_60 {dimension_numbers = #tpu.dot_dimension_numbers<[1], [0], [0], [1], [0, 0, 1, 1], [], []>} : vector<16x32xbf16>, vector<32x64xbf16>, vector<16x64xf32> -> vector<16x64xf32>
    %298 = vector.extract_strided_slice %7 {offsets = [5, 0], sizes = [1, 64], strides = [1, 1]} : vector<13x96xf32> to vector<1x64xf32>
    %299 = vector.broadcast %298 : vector<1x64xf32> to vector<16x64xf32>
    %300 = arith.addf %297, %299 : vector<16x64xf32>
    %cst_61 = arith.constant 0.000000e+00 : f32
    %301 = vector.broadcast %cst_61 : f32 to vector<16x64xf32>
    %302 = arith.maximumf %300, %301 : vector<16x64xf32>
    %303 = arith.truncf %302 : vector<16x64xf32> to vector<16x64xbf16>
    %c0_62 = arith.constant 0 : index
    %c0_63 = arith.constant 0 : index
    %304 = vector.load %arg11[%c0_62, %c0_63] : memref<64x32xbf16, #tpu.memory_space<vmem>>, vector<64x32xbf16>
    %cst_64 = arith.constant dense<0.000000e+00> : vector<16x32xf32>
    %305 = tpu.matmul %303, %304, %cst_64 {dimension_numbers = #tpu.dot_dimension_numbers<[1], [0], [0], [1], [0, 0, 1, 1], [], []>} : vector<16x64xbf16>, vector<64x32xbf16>, vector<16x32xf32> -> vector<16x32xf32>
    %306 = vector.extract_strided_slice %7 {offsets = [6, 0], sizes = [1, 32], strides = [1, 1]} : vector<13x96xf32> to vector<1x32xf32>
    %307 = vector.broadcast %306 : vector<1x32xf32> to vector<16x32xf32>
    %308 = arith.addf %305, %307 : vector<16x32xf32>
    %309 = arith.addf %270, %308 : vector<16x32xf32>
    %310 = vector.shape_cast %309 : vector<16x32xf32> to vector<2x8x32xf32>
    %c0_65 = arith.constant 0 : index
    %c0_66 = arith.constant 0 : index
    %c0_67 = arith.constant 0 : index
    %311 = vector.load %arg13[%c0_65, %c0_66, %c0_67] : memref<2x8x32xf32, #tpu.memory_space<vmem>>, vector<2x8x32xf32>
    tpu.vector_store %arg13[%c0_65, %c0_66, %c0_67], %310 {strides = array<i32>} : memref<2x8x32xf32, #tpu.memory_space<vmem>>, vector<2x8x32xf32>,
    return
  }
  func.func @transform_0(%arg0: i32) -> (i32, i32, i32) {
    %c0_i32 = arith.constant 0 : i32
    %c0_i32_0 = arith.constant 0 : i32
    %c0_i32_1 = arith.constant 0 : i32
    return %arg0, %c0_i32, %c0_i32_0 : i32, i32, i32
  }
  func.func @transform_1(%arg0: i32) -> (i32, i32, i32) {
    %c0_i32 = arith.constant 0 : i32
    %c0_i32_0 = arith.constant 0 : i32
    %c0_i32_1 = arith.constant 0 : i32
    return %arg0, %c0_i32, %c0_i32_0 : i32, i32, i32
  }
  func.func @transform_2(%arg0: i32) -> (i32, i32, i32) {
    %c0_i32 = arith.constant 0 : i32
    %c0_i32_0 = arith.constant 0 : i32
    %c0_i32_1 = arith.constant 0 : i32
    return %arg0, %c0_i32, %c0_i32_0 : i32, i32, i32
  }
  func.func @transform_3(%arg0: i32) -> (i32, i32, i32) {
    %c0_i32 = arith.constant 0 : i32
    %c0_i32_0 = arith.constant 0 : i32
    %c0_i32_1 = arith.constant 0 : i32
    return %arg0, %c0_i32, %c0_i32_0 : i32, i32, i32
  }
  func.func @transform_4(%arg0: i32) -> (i32, i32) {
    %c0_i32 = arith.constant 0 : i32
    %c0_i32_0 = arith.constant 0 : i32
    %c0_i32_1 = arith.constant 0 : i32
    return %c0_i32, %c0_i32_0 : i32, i32
  }
  func.func @transform_5(%arg0: i32) -> (i32, i32) {
    %c0_i32 = arith.constant 0 : i32
    %c0_i32_0 = arith.constant 0 : i32
    %c0_i32_1 = arith.constant 0 : i32
    return %c0_i32, %c0_i32_0 : i32, i32
  }
  func.func @transform_6(%arg0: i32) -> (i32, i32) {
    %c0_i32 = arith.constant 0 : i32
    %c0_i32_0 = arith.constant 0 : i32
    %c0_i32_1 = arith.constant 0 : i32
    return %c0_i32, %c0_i32_0 : i32, i32
  }
  func.func @transform_7(%arg0: i32) -> (i32, i32) {
    %c0_i32 = arith.constant 0 : i32
    %c0_i32_0 = arith.constant 0 : i32
    %c0_i32_1 = arith.constant 0 : i32
    return %c0_i32, %c0_i32_0 : i32, i32
  }
  func.func @transform_8(%arg0: i32) -> (i32, i32) {
    %c0_i32 = arith.constant 0 : i32
    %c0_i32_0 = arith.constant 0 : i32
    %c0_i32_1 = arith.constant 0 : i32
    return %c0_i32, %c0_i32_0 : i32, i32
  }
  func.func @transform_9(%arg0: i32) -> (i32, i32) {
    %c0_i32 = arith.constant 0 : i32
    %c0_i32_0 = arith.constant 0 : i32
    %c0_i32_1 = arith.constant 0 : i32
    return %c0_i32, %c0_i32_0 : i32, i32
  }
  func.func @transform_10(%arg0: i32) -> (i32, i32) {
    %c0_i32 = arith.constant 0 : i32
    %c0_i32_0 = arith.constant 0 : i32
    %c0_i32_1 = arith.constant 0 : i32
    return %c0_i32, %c0_i32_0 : i32, i32
  }
  func.func @transform_11(%arg0: i32) -> (i32, i32) {
    %c0_i32 = arith.constant 0 : i32
    %c0_i32_0 = arith.constant 0 : i32
    %c0_i32_1 = arith.constant 0 : i32
    return %c0_i32, %c0_i32_0 : i32, i32
  }
  func.func @transform_12(%arg0: i32) -> (i32, i32, i32) {
    %c0_i32 = arith.constant 0 : i32
    %c0_i32_0 = arith.constant 0 : i32
    %c0_i32_1 = arith.constant 0 : i32
    return %arg0, %c0_i32, %c0_i32_0 : i32, i32, i32
  }
}

</mosaic_0001>

<llo_original>
// kernel: fwd.1
$region0: #{fwd.1}
  #allocation0 [shape = 'u32[]', space=smem, size = 0x4, offset = 0x4, fixed_abs, tag = 'smem constant byte address 0x4 - core index']
  #allocation1 [shape = 'u32[144,128]{1,0:T(1,128)}', space=vmem, size = 0x12000, scoped, tag = 'internal scratch']
  %s0 = inlined_call_operand.vmem [shape: f32[2,8,32], index: 0, kind: input, shape index: {}]
  %s1 = inlined_call_operand.vmem [shape: f32[2,16,32], index: 1, kind: input, shape index: {}]
  %s2 = inlined_call_operand.vmem [shape: bf16[2,8,8], index: 2, kind: input, shape index: {}]
  %s3 = inlined_call_operand.vmem [shape: bf16[2,8,16], index: 3, kind: input, shape index: {}]
  %s4 = inlined_call_operand.vmem [shape: bf16[32,96], index: 4, kind: input, shape index: {}]
  %s5 = inlined_call_operand.vmem [shape: bf16[32,32], index: 5, kind: input, shape index: {}]
  %s6 = inlined_call_operand.vmem [shape: bf16[32,64], index: 6, kind: input, shape index: {}]
  %s7 = inlined_call_operand.vmem [shape: bf16[32,32], index: 7, kind: input, shape index: {}]
  %s8 = inlined_call_operand.hbm [shape: bf16[32,32], index: 8, kind: input, shape index: {}]
  %s9 = inlined_call_operand.vmem [shape: bf16[32,64], index: 9, kind: input, shape index: {}]
  %s10 = inlined_call_operand.vmem [shape: bf16[64,32], index: 10, kind: input, shape index: {}]
  %s11 = inlined_call_operand.hbm [shape: f32[13,96], index: 11, kind: input, shape index: {}]
  %s12 = inlined_call_operand.hbm [shape: f32[2,8,32], index: 12, kind: output, shape index: {}]
  %s13 = sld [smem:[#allocation0]]
  $region66: #{fwd.1} parent=0
    _
  %s15 = ssub.s32 1, %s13
  %s16 = scalar_select 0, %s15, %s13
  $region1: #{fwd.1} parent=0
    #allocation2 [shape = 'u8[8192]{0}', space=vmem, size = 0x2000, scoped, tag = 'input window, operand 8, single buffered']
    #allocation3 [shape = 's32[1]{0}', space=sflag, size = 0x4, scoped, tag = 'scoped memory for fwd.1']
    #allocation4 [shape = 's32[1]{0}', space=sflag, size = 0x4, scoped, tag = 'scoped memory for fwd.1']
    #allocation5 [shape = 'u8[8192]{0}', space=vmem, size = 0x2000, scoped, tag = 'input window, operand 11, single buffered']
    #allocation6 [shape = 's32[1]{0}', space=sflag, size = 0x4, scoped, tag = 'scoped memory for fwd.1']
    #allocation7 [shape = 'u8[8192]{0}', space=vmem, size = 0x2000, scoped, tag = 'output window, operand 0, single buffered']
    %17 = vsyncpa [#allocation3], 0
    %18 = vsyncpa [#allocation6], 0
    %19 = vsyncpa [#allocation4], 0
    // Predicated region
    $region2: #{fwd.1} parent=1 // pred_check
      _
    $region3: #{fwd.1} parent=1 // pred_check_branch
      %21 = sbr.rel (0) target = $region5
    $region4: #{fwd.1} parent=1 // pred_region
      _
    $region5: #{fwd.1} parent=1 // pred_fallthru
      _
    // Predicated region
    $region6: #{fwd.1} parent=1 // pred_check
      _
    $region7: #{fwd.1} parent=1 // pred_check_branch
      %23 = sbr.rel (0) target = $region9
    $region8: #{fwd.1} parent=1 // pred_region
      _
    $region9: #{fwd.1} parent=1 // pred_fallthru
      _
    // Predicated region
    $region10: #{fwd.1} parent=1 // pred_check
      _
    $region11: #{fwd.1} parent=1 // pred_check_branch
      %25 = sbr.rel (0) target = $region13
    $region12: #{fwd.1} parent=1 // pred_region
      _
    $region13: #{fwd.1} parent=1 // pred_fallthru
      _
    // Predicated region
    $region14: #{fwd.1} parent=1 // pred_check
      _
    $region15: #{fwd.1} parent=1 // pred_check_branch
      %27 = sbr.rel (0) target = $region17
    $region16: #{fwd.1} parent=1 // pred_region
      _
    $region17: #{fwd.1} parent=1 // pred_fallthru
      _
    // Predicated region
    $region18: #{fwd.1} parent=1 // pred_check
      _
    $region19: #{fwd.1} parent=1 // pred_check_branch
      %29 = sbr.rel (0) target = $region21
    $region20: #{fwd.1} parent=1 // pred_region
      _
    $region21: #{fwd.1} parent=1 // pred_fallthru
      _
    // Predicated region
    $region22: #{fwd.1} parent=1 // pred_check
      _
    $region23: #{fwd.1} parent=1 // pred_check_branch
      %31 = sbr.rel (0) target = $region25
    $region24: #{fwd.1} parent=1 // pred_region
      _
    $region25: #{fwd.1} parent=1 // pred_fallthru
      _
    // Predicated region
    $region26: #{fwd.1} parent=1 // pred_check
      _
    $region27: #{fwd.1} parent=1 // pred_check_branch
      %33 = sbr.rel (0) target = $region29
    $region28: #{fwd.1} parent=1 // pred_region
      _
    $region29: #{fwd.1} parent=1 // pred_fallthru
      _
    // Predicated region
    $region30: #{fwd.1} parent=1 // pred_check
      _
    $region31: #{fwd.1} parent=1 // pred_check_branch
      %35 = sbr.rel (0) target = $region33
    $region32: #{fwd.1} parent=1 // pred_region
      _
    $region33: #{fwd.1} parent=1 // pred_fallthru
      _
    // Predicated region
    $region34: #{fwd.1} parent=1 // pred_check
      _
    $region35: #{fwd.1} parent=1 // pred_check_branch
      %37 = sbr.rel (0) target = $region37
    $region36: #{fwd.1} parent=1 // pred_region
      %s39 = ssub.s32 256, 256
      %40 = vsyncadd [#allocation3], %s39
      %s41 = sshll.u32 [#allocation2], 4
      %s42 = int_to_ptr.vmem [resolvable:$true] %s41
      %47 = dma.hbm_to_vmem [thread:$0]  %s8, 256, %s42, [#allocation3], 64, 64, 4
    $region37: #{fwd.1} parent=1 // pred_fallthru
      _
    // Predicated region
    $region38: #{fwd.1} parent=1 // pred_check
      _
    $region39: #{fwd.1} parent=1 // pred_check_branch
      %49 = sbr.rel (0) target = $region41
    $region40: #{fwd.1} parent=1 // pred_region
      _
    $region41: #{fwd.1} parent=1 // pred_fallthru
      _
    // Predicated region
    $region42: #{fwd.1} parent=1 // pred_check
      _
    $region43: #{fwd.1} parent=1 // pred_check_branch
      %51 = sbr.rel (0) target = $region45
    $region44: #{fwd.1} parent=1 // pred_region
      _
    $region45: #{fwd.1} parent=1 // pred_fallthru
      _
    // Predicated region
    $region46: #{fwd.1} parent=1 // pred_check
      _
    $region47: #{fwd.1} parent=1 // pred_check_branch
      %53 = sbr.rel (0) target = $region49
    $region48: #{fwd.1} parent=1 // pred_region
      %s55 = ssub.s32 256, 256
      %56 = vsyncadd [#allocation6], %s55
      %s57 = sshll.u32 [#allocation5], 4
      %s58 = int_to_ptr.vmem [resolvable:$true] %s57
      %63 = dma.hbm_to_vmem [thread:$0]  %s11, 256, %s58, [#allocation6], 128, 128, 8
    $region49: #{fwd.1} parent=1 // pred_fallthru
      _
    // Predicated region
    $region50: #{fwd.1} parent=1 // pred_check
      _
    $region51: #{fwd.1} parent=1 // pred_check_branch
      %65 = sbr.rel (0) target = $region53
    $region52: #{fwd.1} parent=1 // pred_region
      %66 = dma.done [#allocation3], 256
    $region53: #{fwd.1} parent=1 // pred_fallthru
      _
    // Predicated region
    $region54: #{fwd.1} parent=1 // pred_check
      _
    $region55: #{fwd.1} parent=1 // pred_check_branch
      %68 = sbr.rel (0) target = $region57
    $region56: #{fwd.1} parent=1 // pred_region
      %69 = dma.done [#allocation6], 256
    $region57: #{fwd.1} parent=1 // pred_fallthru
      _
    %v71 = vld [vmem:[%s0] sm:$0xff]
    %v72 = vld [vmem:[%s0 + $0x8] sm:$0xff]
    %v73 = vld [vmem:[%s1] sm:$0xff]
    %v74 = vld [vmem:[%s1 + $0x8] sm:$0xff]
    %v75 = vld [vmem:[%s1 + $0x10] sm:$0xff]
    %v76 = vld [vmem:[%s1 + $0x18] sm:$0xff]
    %v77 = vpack.c.bf16 %v74, %v73
    %v78 = vpack.c.bf16 %v76, %v75
    %v79 = vld [vmem:[%s2] sm:$0xf]
    %v80 = vld [vmem:[%s2 + $0x4] sm:$0xf]
    %v81 = vld [vmem:[%s3] sm:$0xf]
    %v82 = vld [vmem:[%s3 + $0x4] sm:$0xf]
    %v83 = vld [vmem:[#allocation5] sm:$0xff]
    %v84 = vld [vmem:[#allocation5 + $0x8] sm:$0x1f]
    %vm85 = vcmask 261120
    %v86 = vsel %vm85, %v71, 0.0
    %87 = vadd.xlane.f32.xlu0 %v86
    %v88 = vpop.xlane.xlu0 %87
    %v89 = vsel %vm85, %v72, 0.0
    %90 = vadd.xlane.f32.xlu0 %v89
    %v91 = vpop.xlane.xlu0 %90
    %v92 = vrcp.pop 32.0
    %v93 = vmul.f32 %v88, %v92
    %v94 = vmul.f32 %v91, %v92
    %v95 = vsub.f32 %v71, %v93
    %v96 = vsub.f32 %v72, %v94
    %v97 = vmul.f32 %v95, %v95
    %v98 = vmul.f32 %v96, %v96
    %v99 = vsel %vm85, %v97, 0.0
    %100 = vadd.xlane.f32.xlu0 %v99
    %v101 = vpop.xlane.xlu0 %100
    %v102 = vsel %vm85, %v98, 0.0
    %103 = vadd.xlane.f32.xlu0 %v102
    %v104 = vpop.xlane.xlu0 %103
    %v105 = vmul.f32 %v101, %v92
    %v106 = vmul.f32 %v104, %v92
    %v107 = vadd.f32 %v105, 1e-05
    %v108 = vadd.f32 %v106, 1e-05
    %v109 = vrsqrt.pop %v107
    %v110 = vrsqrt.pop %v108
    %v111 = vmul.f32 %v95, %v109
    %v112 = vmul.f32 %v96, %v110
    %v113 = vlaneseq
    %v114 = vshrl.u32 %v113, 7
    %v115 = vsub.s32 7, %v114
    %v116 = vrot.slane %v83, %v115
    %v117 = vmul.f32 %v111, %v116
    %v118 = vmul.f32 %v112, %v116
    %v119 = vlaneseq
    %v120 = vshrl.u32 %v119, 7
    %v121 = vsub.s32 0, %v120
    %v122 = vrot.slane %v84, %v121
    %v123 = vadd.f32 %v117, %v122
    %v124 = vadd.f32 %v118, %v122
    %v125 = vpack.c.bf16 %v124, %v123
    %v126 = vld [vmem:[%s4] sm:$0xf]
    %v127 = vld [vmem:[%s4 + $0x4] sm:$0xf]
    %v128 = vld [vmem:[%s4 + $0x8] sm:$0xf]
    %v129 = vld [vmem:[%s4 + $0xc] sm:$0xf]
    %v130 = vlaneseq
    %v131 = vshrl.u32 %v130, 7
    %v132 = vsub.s32 0, %v131
    %v133 = vrot.slane %v83, %v132
    %v138 = vunpack.c.l.b16 %v126
    %v139 = vunpack.c.l.b16 %v127
    %v140 = vunpack.c.l.b16 %v128
    %v141 = vunpack.c.l.b16 %v129
    %v142 = vpack.c.b16 %v139, %v138
    %v143 = vpack.c.b16 %v141, %v140
    %v147 = vsel %vm85, %v125, 0
    %149 = vmatprep.subr.bf16.mxu0 0
    %150 = vmatpush1.bf16.msra.mxu0 %v142
    %151 = vmatprep.subr.bf16.mxu0 0
    %152 = vmatpush1.bf16.msra.mxu0 %v143
    %153 = vmatprep.subr.bf16.mxu0 0
    %154 = vmatpush1.bf16.msra.mxu0 0
    %155 = vmatprep.subr.bf16.mxu0 0
    %156 = vmatpush1.bf16.msra.mxu0 0
    %157 = vmatprep.subr.bf16.mxu0 0
    %158 = vmatpush1.bf16.msra.mxu0 0
    %159 = vmatprep.subr.bf16.mxu0 0
    %160 = vmatpush1.bf16.msra.mxu0 0
    %161 = vmatprep.subr.bf16.mxu0 0
    %162 = vmatpush1.bf16.msra.mxu0 0
    %163 = vmatprep.subr.bf16.mxu0 0
    %164 = vmatpush1.bf16.msra.mxu0 0
    %165 = vmatprep.subr.bf16.mxu0 0
    %166 = vmatpush1.bf16.msra.mxu0 0
    %167 = vmatprep.subr.bf16.mxu0 0
    %168 = vmatpush1.bf16.msra.mxu0 0
    %169 = vmatprep.subr.bf16.mxu0 0
    %170 = vmatpush1.bf16.msra.mxu0 0
    %171 = vmatprep.subr.bf16.mxu0 0
    %172 = vmatpush1.bf16.msra.mxu0 0
    %173 = vmatprep.subr.bf16.mxu0 0
    %174 = vmatpush1.bf16.msra.mxu0 0
    %175 = vmatprep.subr.bf16.mxu0 0
    %176 = vmatpush1.bf16.msra.mxu0 0
    %177 = vmatprep.subr.bf16.mxu0 0
    %178 = vmatpush1.bf16.msra.mxu0 0
    %179 = vmatprep.subr.bf16.mxu0 0
    %180 = vmatpush1.bf16.msra.mxu0 0
    %181 = vmatprep.mubr.bf16.mxu0 0
    %182 = vmatmul.mubr.bf16.gmra.mrb[0].mxu0 %v147
    %v183 = vpop.f32.mrb[0].mxu0
    %v184 = vadd.f32 %v133, %v183
    %v185 = vpop.f32.mrb[0].mxu0
    %v186 = vpop.f32.mrb[0].mxu0
    %v187 = vadd.f32 %v133, %v186
    %v188 = vpop.f32.mrb[0].mxu0
    %189 = vdwg.mxu0
    %v190 = vpack.c.bf16 %v187, %v184
    %192 = vrot.lane.b32.xlu0 %v190, 120
    %v193 = vpop.permute.xlu0 %192
    %194 = vrot.lane.b32.xlu0 %v190, 112
    %v195 = vpop.permute.xlu0 %194
    %196 = vrot.lane.b32.xlu0 %v190, 104
    %v197 = vpop.permute.xlu0 %196
    %v198 = vunpack.c.l.bf16 %v79
    %199 = vrot.lane.b32.xlu0 %v190, 96
    %v200 = vpop.permute.xlu0 %199
    %vm201 = vcmask 64512
    %v203 = vsel %vm201, %v190, 0
    %v206 = vsel %vm201, %v200, 0
    %208 = vmatprep.subr.bf16.mxu0 0
    %209 = vmatpush1.bf16.xpose.msra.mxu0 %v206
    %210 = vmatprep.subr.bf16.mxu0 0
    %211 = vmatpush1.bf16.xpose.msra.mxu0 0
    %212 = vmatprep.subr.bf16.mxu0 0
    %213 = vmatpush1.bf16.xpose.msra.mxu0 0
    %214 = vmatprep.subr.bf16.mxu0 0
    %215 = vmatpush1.bf16.xpose.msra.mxu0 0
    %216 = vmatprep.subr.bf16.mxu0 0
    %217 = vmatpush1.bf16.xpose.msra.mxu0 0
    %218 = vmatprep.subr.bf16.mxu0 0
    %219 = vmatpush1.bf16.xpose.msra.mxu0 0
    %220 = vmatprep.subr.bf16.mxu0 0
    %221 = vmatpush1.bf16.xpose.msra.mxu0 0
    %222 = vmatprep.subr.bf16.mxu0 0
    %223 = vmatpush1.bf16.xpose.msra.mxu0 0
    %224 = vmatprep.subr.bf16.mxu0 0
    %225 = vmatpush1.bf16.xpose.msra.mxu0 0
    %226 = vmatprep.subr.bf16.mxu0 0
    %227 = vmatpush1.bf16.xpose.msra.mxu0 0
    %228 = vmatprep.subr.bf16.mxu0 0
    %229 = vmatpush1.bf16.xpose.msra.mxu0 0
    %230 = vmatprep.subr.bf16.mxu0 0
    %231 = vmatpush1.bf16.xpose.msra.mxu0 0
    %232 = vmatprep.subr.bf16.mxu0 0
    %233 = vmatpush1.bf16.xpose.msra.mxu0 0
    %234 = vmatprep.subr.bf16.mxu0 0
    %235 = vmatpush1.bf16.xpose.msra.mxu0 0
    %236 = vmatprep.subr.bf16.mxu0 0
    %237 = vmatpush1.bf16.xpose.msra.mxu0 0
    %238 = vmatprep.subr.bf16.mxu0 0
    %239 = vmatpush1.bf16.xpose.msra.mxu0 0
    %240 = vmatprep.mubr.bf16.mxu0 0
    %241 = vmatmul.mubr.bf16.gmra.mrb[0].mxu0 %v203
    %v242 = vpop.f32.mrb[0].mxu0
    %v243 = vadd.f32 %v198, %v242
    %v244 = vpop.f32.mrb[0].mxu0
    %v245 = vpop.f32.mrb[0].mxu0
    %v246 = vpop.f32.mrb[0].mxu0
    %247 = vdwg.mxu0
    %248 = vrot.lane.b32.xlu0 %v193, 96
    %v249 = vpop.permute.xlu0 %248
    %v251 = vsel %vm201, %v193, 0
    %v254 = vsel %vm201, %v249, 0
    %256 = vmatprep.subr.bf16.mxu0 0
    %257 = vmatpush1.bf16.xpose.msra.mxu0 %v254
    %258 = vmatprep.subr.bf16.mxu0 0
    %259 = vmatpush1.bf16.xpose.msra.mxu0 0
    %260 = vmatprep.subr.bf16.mxu0 0
    %261 = vmatpush1.bf16.xpose.msra.mxu0 0
    %262 = vmatprep.subr.bf16.mxu0 0
    %263 = vmatpush1.bf16.xpose.msra.mxu0 0
    %264 = vmatprep.subr.bf16.mxu0 0
    %265 = vmatpush1.bf16.xpose.msra.mxu0 0
    %266 = vmatprep.subr.bf16.mxu0 0
    %267 = vmatpush1.bf16.xpose.msra.mxu0 0
    %268 = vmatprep.subr.bf16.mxu0 0
    %269 = vmatpush1.bf16.xpose.msra.mxu0 0
    %270 = vmatprep.subr.bf16.mxu0 0
    %271 = vmatpush1.bf16.xpose.msra.mxu0 0
    %272 = vmatprep.subr.bf16.mxu0 0
    %273 = vmatpush1.bf16.xpose.msra.mxu0 0
    %274 = vmatprep.subr.bf16.mxu0 0
    %275 = vmatpush1.bf16.xpose.msra.mxu0 0
    %276 = vmatprep.subr.bf16.mxu0 0
    %277 = vmatpush1.bf16.xpose.msra.mxu0 0
    %278 = vmatprep.subr.bf16.mxu0 0
    %279 = vmatpush1.bf16.xpose.msra.mxu0 0
    %280 = vmatprep.subr.bf16.mxu0 0
    %281 = vmatpush1.bf16.xpose.msra.mxu0 0
    %282 = vmatprep.subr.bf16.mxu0 0
    %283 = vmatpush1.bf16.xpose.msra.mxu0 0
    %284 = vmatprep.subr.bf16.mxu0 0
    %285 = vmatpush1.bf16.xpose.msra.mxu0 0
    %286 = vmatprep.subr.bf16.mxu0 0
    %287 = vmatpush1.bf16.xpose.msra.mxu0 0
    %288 = vmatprep.mubr.bf16.mxu0 0
    %289 = vmatmul.mubr.bf16.gmra.mrb[0].mxu0 %v251
    %v290 = vpop.f32.mrb[0].mxu0
    %v291 = vadd.f32 %v198, %v290
    %v292 = vpop.f32.mrb[0].mxu0
    %v293 = vpop.f32.mrb[0].mxu0
    %v294 = vpop.f32.mrb[0].mxu0
    %295 = vdwg.mxu0
    %296 = vrot.lane.b32.xlu0 %v195, 96
    %v297 = vpop.permute.xlu0 %296
    %v299 = vsel %vm201, %v195, 0
    %v302 = vsel %vm201, %v297, 0
    %304 = vmatprep.subr.bf16.mxu0 0
    %305 = vmatpush1.bf16.xpose.msra.mxu0 %v302
    %306 = vmatprep.subr.bf16.mxu0 0
    %307 = vmatpush1.bf16.xpose.msra.mxu0 0
    %308 = vmatprep.subr.bf16.mxu0 0
    %309 = vmatpush1.bf16.xpose.msra.mxu0 0
    %310 = vmatprep.subr.bf16.mxu0 0
    %311 = vmatpush1.bf16.xpose.msra.mxu0 0
    %312 = vmatprep.subr.bf16.mxu0 0
    %313 = vmatpush1.bf16.xpose.msra.mxu0 0
    %314 = vmatprep.subr.bf16.mxu0 0
    %315 = vmatpush1.bf16.xpose.msra.mxu0 0
    %316 = vmatprep.subr.bf16.mxu0 0
    %317 = vmatpush1.bf16.xpose.msra.mxu0 0
    %318 = vmatprep.subr.bf16.mxu0 0
    %319 = vmatpush1.bf16.xpose.msra.mxu0 0
    %320 = vmatprep.subr.bf16.mxu0 0
    %321 = vmatpush1.bf16.xpose.msra.mxu0 0
    %322 = vmatprep.subr.bf16.mxu0 0
    %323 = vmatpush1.bf16.xpose.msra.mxu0 0
    %324 = vmatprep.subr.bf16.mxu0 0
    %325 = vmatpush1.bf16.xpose.msra.mxu0 0
    %326 = vmatprep.subr.bf16.mxu0 0
    %327 = vmatpush1.bf16.xpose.msra.mxu0 0
    %328 = vmatprep.subr.bf16.mxu0 0
    %329 = vmatpush1.bf16.xpose.msra.mxu0 0
    %330 = vmatprep.subr.bf16.mxu0 0
    %331 = vmatpush1.bf16.xpose.msra.mxu0 0
    %332 = vmatprep.subr.bf16.mxu0 0
    %333 = vmatpush1.bf16.xpose.msra.mxu0 0
    %334 = vmatprep.subr.bf16.mxu0 0
    %335 = vmatpush1.bf16.xpose.msra.mxu0 0
    %336 = vmatprep.mubr.bf16.mxu0 0
    %337 = vmatmul.mubr.bf16.gmra.mrb[0].mxu0 %v299
    %v338 = vpop.f32.mrb[0].mxu0
    %v339 = vadd.f32 %v198, %v338
    %v340 = vpop.f32.mrb[0].mxu0
    %v341 = vpop.f32.mrb[0].mxu0
    %v342 = vpop.f32.mrb[0].mxu0
    %343 = vdwg.mxu0
    %344 = vrot.lane.b32.xlu0 %v197, 96
    %v345 = vpop.permute.xlu0 %344
    %v347 = vsel %vm201, %v197, 0
    %v350 = vsel %vm201, %v345, 0
    %352 = vmatprep.subr.bf16.mxu0 0
    %353 = vmatpush1.bf16.xpose.msra.mxu0 %v350
    %354 = vmatprep.subr.bf16.mxu0 0
    %355 = vmatpush1.bf16.xpose.msra.mxu0 0
    %356 = vmatprep.subr.bf16.mxu0 0
    %357 = vmatpush1.bf16.xpose.msra.mxu0 0
    %358 = vmatprep.subr.bf16.mxu0 0
    %359 = vmatpush1.bf16.xpose.msra.mxu0 0
    %360 = vmatprep.subr.bf16.mxu0 0
    %361 = vmatpush1.bf16.xpose.msra.mxu0 0
    %362 = vmatprep.subr.bf16.mxu0 0
    %363 = vmatpush1.bf16.xpose.msra.mxu0 0
    %364 = vmatprep.subr.bf16.mxu0 0
    %365 = vmatpush1.bf16.xpose.msra.mxu0 0
    %366 = vmatprep.subr.bf16.mxu0 0
    %367 = vmatpush1.bf16.xpose.msra.mxu0 0
    %368 = vmatprep.subr.bf16.mxu0 0
    %369 = vmatpush1.bf16.xpose.msra.mxu0 0
    %370 = vmatprep.subr.bf16.mxu0 0
    %371 = vmatpush1.bf16.xpose.msra.mxu0 0
    %372 = vmatprep.subr.bf16.mxu0 0
    %373 = vmatpush1.bf16.xpose.msra.mxu0 0
    %374 = vmatprep.subr.bf16.mxu0 0
    %375 = vmatpush1.bf16.xpose.msra.mxu0 0
    %376 = vmatprep.subr.bf16.mxu0 0
    %377 = vmatpush1.bf16.xpose.msra.mxu0 0
    %378 = vmatprep.subr.bf16.mxu0 0
    %379 = vmatpush1.bf16.xpose.msra.mxu0 0
    %380 = vmatprep.subr.bf16.mxu0 0
    %381 = vmatpush1.bf16.xpose.msra.mxu0 0
    %382 = vmatprep.subr.bf16.mxu0 0
    %383 = vmatpush1.bf16.xpose.msra.mxu0 0
    %384 = vmatprep.mubr.bf16.mxu0 0
    %385 = vmatmul.mubr.bf16.gmra.mrb[0].mxu0 %v347
    %v386 = vpop.f32.mrb[0].mxu0
    %v387 = vadd.f32 %v198, %v386
    %v388 = vpop.f32.mrb[0].mxu0
    %v389 = vpop.f32.mrb[0].mxu0
    %v390 = vpop.f32.mrb[0].mxu0
    %391 = vdwg.mxu0
    %v392 = vsel %vm201, %v243, -inf
    %393 = vmax.xlane.f32.xlu0 %v392
    %v394 = vpop.xlane.xlu0 %393
    %v395 = vsel %vm201, %v291, -inf
    %396 = vmax.xlane.f32.xlu0 %v395
    %v397 = vpop.xlane.xlu0 %396
    %v398 = vsel %vm201, %v339, -inf
    %399 = vmax.xlane.f32.xlu0 %v398
    %v400 = vpop.xlane.xlu0 %399
    %v401 = vsel %vm201, %v387, -inf
    %402 = vmax.xlane.f32.xlu0 %v401
    %v403 = vpop.xlane.xlu0 %402
    %v404 = vsub.f32 %v243, %v394
    %v405 = vsub.f32 %v291, %v397
    %v406 = vsub.f32 %v339, %v400
    %v407 = vsub.f32 %v387, %v403
    %v408 = vmul.f32 %v404, 1.442695
    %v409 = vpow.pop %v408
    %v410 = vmul.f32 %v405, 1.442695
    %v411 = vpow.pop %v410
    %v412 = vmul.f32 %v406, 1.442695
    %v413 = vpow.pop %v412
    %v414 = vmul.f32 %v407, 1.442695
    %v415 = vpow.pop %v414
    %v416 = vsel %vm201, %v409, 0.0
    %417 = vadd.xlane.f32.xlu0 %v416
    %v418 = vpop.xlane.xlu0 %417
    %v419 = vsel %vm201, %v411, 0.0
    %420 = vadd.xlane.f32.xlu0 %v419
    %v421 = vpop.xlane.xlu0 %420
    %v422 = vsel %vm201, %v413, 0.0
    %423 = vadd.xlane.f32.xlu0 %v422
    %v424 = vpop.xlane.xlu0 %423
    %v425 = vsel %vm201, %v415, 0.0
    %426 = vadd.xlane.f32.xlu0 %v425
    %v427 = vpop.xlane.xlu0 %426
    %v428 = vrcp.pop %v418
    %v429 = vmul.f32 %v409, %v428
    %v430 = vrcp.pop %v421
    %v431 = vmul.f32 %v411, %v430
    %v432 = vrcp.pop %v424
    %v433 = vmul.f32 %v413, %v432
    %v434 = vrcp.pop %v427
    %v435 = vmul.f32 %v415, %v434
    %v436 = vpack.c.bf16 %v429, %v429
    %v437 = vpack.c.bf16 %v431, %v431
    %v438 = vpack.c.bf16 %v433, %v433
    %v439 = vpack.c.bf16 %v435, %v435
    %440 = vrot.lane.b32.xlu0 %v190, 64
    %v441 = vpop.permute.xlu0 %440
    %v443 = vsel %vm201, %v436, 0
    %vm445 = vcmask 1043456
    %v447 = vsel %vm445, %v441, 0
    %449 = vmatprep.subr.bf16.mxu0 0
    %450 = vmatpush1.bf16.msra.mxu0 %v447
    %451 = vmatprep.subr.bf16.mxu0 0
    %452 = vmatpush1.bf16.msra.mxu0 0
    %453 = vmatprep.subr.bf16.mxu0 0
    %454 = vmatpush1.bf16.msra.mxu0 0
    %455 = vmatprep.subr.bf16.mxu0 0
    %456 = vmatpush1.bf16.msra.mxu0 0
    %457 = vmatprep.subr.bf16.mxu0 0
    %458 = vmatpush1.bf16.msra.mxu0 0
    %459 = vmatprep.subr.bf16.mxu0 0
    %460 = vmatpush1.bf16.msra.mxu0 0
    %461 = vmatprep.subr.bf16.mxu0 0
    %462 = vmatpush1.bf16.msra.mxu0 0
    %463 = vmatprep.subr.bf16.mxu0 0
    %464 = vmatpush1.bf16.msra.mxu0 0
    %465 = vmatprep.subr.bf16.mxu0 0
    %466 = vmatpush1.bf16.msra.mxu0 0
    %467 = vmatprep.subr.bf16.mxu0 0
    %468 = vmatpush1.bf16.msra.mxu0 0
    %469 = vmatprep.subr.bf16.mxu0 0
    %470 = vmatpush1.bf16.msra.mxu0 0
    %471 = vmatprep.subr.bf16.mxu0 0
    %472 = vmatpush1.bf16.msra.mxu0 0
    %473 = vmatprep.subr.bf16.mxu0 0
    %474 = vmatpush1.bf16.msra.mxu0 0
    %475 = vmatprep.subr.bf16.mxu0 0
    %476 = vmatpush1.bf16.msra.mxu0 0
    %477 = vmatprep.subr.bf16.mxu0 0
    %478 = vmatpush1.bf16.msra.mxu0 0
    %479 = vmatprep.subr.bf16.mxu0 0
    %480 = vmatpush1.bf16.msra.mxu0 0
    %481 = vmatprep.mubr.bf16.mxu0 0
    %482 = vmatmul.mubr.bf16.gmra.mrb[0].mxu0 %v443
    %v483 = vpop.f32.mrb[0].mxu0
    %v484 = vadd.f32 0.0, %v483
    %v485 = vpop.f32.mrb[0].mxu0
    %v486 = vpop.f32.mrb[0].mxu0
    %v487 = vpop.f32.mrb[0].mxu0
    %488 = vdwg.mxu0
    %489 = vrot.lane.b32.xlu0 %v193, 64
    %v490 = vpop.permute.xlu0 %489
    %v492 = vsel %vm201, %v437, 0
    %v495 = vsel %vm445, %v490, 0
    %497 = vmatprep.subr.bf16.mxu0 0
    %498 = vmatpush1.bf16.msra.mxu0 %v495
    %499 = vmatprep.subr.bf16.mxu0 0
    %500 = vmatpush1.bf16.msra.mxu0 0
    %501 = vmatprep.subr.bf16.mxu0 0
    %502 = vmatpush1.bf16.msra.mxu0 0
    %503 = vmatprep.subr.bf16.mxu0 0
    %504 = vmatpush1.bf16.msra.mxu0 0
    %505 = vmatprep.subr.bf16.mxu0 0
    %506 = vmatpush1.bf16.msra.mxu0 0
    %507 = vmatprep.subr.bf16.mxu0 0
    %508 = vmatpush1.bf16.msra.mxu0 0
    %509 = vmatprep.subr.bf16.mxu0 0
    %510 = vmatpush1.bf16.msra.mxu0 0
    %511 = vmatprep.subr.bf16.mxu0 0
    %512 = vmatpush1.bf16.msra.mxu0 0
    %513 = vmatprep.subr.bf16.mxu0 0
    %514 = vmatpush1.bf16.msra.mxu0 0
    %515 = vmatprep.subr.bf16.mxu0 0
    %516 = vmatpush1.bf16.msra.mxu0 0
    %517 = vmatprep.subr.bf16.mxu0 0
    %518 = vmatpush1.bf16.msra.mxu0 0
    %519 = vmatprep.subr.bf16.mxu0 0
    %520 = vmatpush1.bf16.msra.mxu0 0
    %521 = vmatprep.subr.bf16.mxu0 0
    %522 = vmatpush1.bf16.msra.mxu0 0
    %523 = vmatprep.subr.bf16.mxu0 0
    %524 = vmatpush1.bf16.msra.mxu0 0
    %525 = vmatprep.subr.bf16.mxu0 0
    %526 = vmatpush1.bf16.msra.mxu0 0
    %527 = vmatprep.subr.bf16.mxu0 0
    %528 = vmatpush1.bf16.msra.mxu0 0
    %529 = vmatprep.mubr.bf16.mxu0 0
    %530 = vmatmul.mubr.bf16.gmra.mrb[0].mxu0 %v492
    %v531 = vpop.f32.mrb[0].mxu0
    %v532 = vadd.f32 0.0, %v531
    %v533 = vpop.f32.mrb[0].mxu0
    %v534 = vpop.f32.mrb[0].mxu0
    %v535 = vpop.f32.mrb[0].mxu0
    %536 = vdwg.mxu0
    %537 = vrot.lane.b32.xlu0 %v195, 64
    %v538 = vpop.permute.xlu0 %537
    %v540 = vsel %vm201, %v438, 0
    %v543 = vsel %vm445, %v538, 0
    %545 = vmatprep.subr.bf16.mxu0 0
    %546 = vmatpush1.bf16.msra.mxu0 %v543
    %547 = vmatprep.subr.bf16.mxu0 0
    %548 = vmatpush1.bf16.msra.mxu0 0
    %549 = vmatprep.subr.bf16.mxu0 0
    %550 = vmatpush1.bf16.msra.mxu0 0
    %551 = vmatprep.subr.bf16.mxu0 0
    %552 = vmatpush1.bf16.msra.mxu0 0
    %553 = vmatprep.subr.bf16.mxu0 0
    %554 = vmatpush1.bf16.msra.mxu0 0
    %555 = vmatprep.subr.bf16.mxu0 0
    %556 = vmatpush1.bf16.msra.mxu0 0
    %557 = vmatprep.subr.bf16.mxu0 0
    %558 = vmatpush1.bf16.msra.mxu0 0
    %559 = vmatprep.subr.bf16.mxu0 0
    %560 = vmatpush1.bf16.msra.mxu0 0
    %561 = vmatprep.subr.bf16.mxu0 0
    %562 = vmatpush1.bf16.msra.mxu0 0
    %563 = vmatprep.subr.bf16.mxu0 0
    %564 = vmatpush1.bf16.msra.mxu0 0
    %565 = vmatprep.subr.bf16.mxu0 0
    %566 = vmatpush1.bf16.msra.mxu0 0
    %567 = vmatprep.subr.bf16.mxu0 0
    %568 = vmatpush1.bf16.msra.mxu0 0
    %569 = vmatprep.subr.bf16.mxu0 0
    %570 = vmatpush1.bf16.msra.mxu0 0
    %571 = vmatprep.subr.bf16.mxu0 0
    %572 = vmatpush1.bf16.msra.mxu0 0
    %573 = vmatprep.subr.bf16.mxu0 0
    %574 = vmatpush1.bf16.msra.mxu0 0
    %575 = vmatprep.subr.bf16.mxu0 0
    %576 = vmatpush1.bf16.msra.mxu0 0
    %577 = vmatprep.mubr.bf16.mxu0 0
    %578 = vmatmul.mubr.bf16.gmra.mrb[0].mxu0 %v540
    %v579 = vpop.f32.mrb[0].mxu0
    %v580 = vadd.f32 0.0, %v579
    %v581 = vpop.f32.mrb[0].mxu0
    %v582 = vpop.f32.mrb[0].mxu0
    %v583 = vpop.f32.mrb[0].mxu0
    %584 = vdwg.mxu0
    %585 = vrot.lane.b32.xlu0 %v197, 64
    %v586 = vpop.permute.xlu0 %585
    %v588 = vsel %vm201, %v439, 0
    %v591 = vsel %vm445, %v586, 0
    %593 = vmatprep.subr.bf16.mxu0 0
    %594 = vmatpush1.bf16.msra.mxu0 %v591
    %595 = vmatprep.subr.bf16.mxu0 0
    %596 = vmatpush1.bf16.msra.mxu0 0
    %597 = vmatprep.subr.bf16.mxu0 0
    %598 = vmatpush1.bf16.msra.mxu0 0
    %599 = vmatprep.subr.bf16.mxu0 0
    %600 = vmatpush1.bf16.msra.mxu0 0
    %601 = vmatprep.subr.bf16.mxu0 0
    %602 = vmatpush1.bf16.msra.mxu0 0
    %603 = vmatprep.subr.bf16.mxu0 0
    %604 = vmatpush1.bf16.msra.mxu0 0
    %605 = vmatprep.subr.bf16.mxu0 0
    %606 = vmatpush1.bf16.msra.mxu0 0
    %607 = vmatprep.subr.bf16.mxu0 0
    %608 = vmatpush1.bf16.msra.mxu0 0
    %609 = vmatprep.subr.bf16.mxu0 0
    %610 = vmatpush1.bf16.msra.mxu0 0
    %611 = vmatprep.subr.bf16.mxu0 0
    %612 = vmatpush1.bf16.msra.mxu0 0
    %613 = vmatprep.subr.bf16.mxu0 0
    %614 = vmatpush1.bf16.msra.mxu0 0
    %615 = vmatprep.subr.bf16.mxu0 0
    %616 = vmatpush1.bf16.msra.mxu0 0
    %617 = vmatprep.subr.bf16.mxu0 0
    %618 = vmatpush1.bf16.msra.mxu0 0
    %619 = vmatprep.subr.bf16.mxu0 0
    %620 = vmatpush1.bf16.msra.mxu0 0
    %621 = vmatprep.subr.bf16.mxu0 0
    %622 = vmatpush1.bf16.msra.mxu0 0
    %623 = vmatprep.subr.bf16.mxu0 0
    %624 = vmatpush1.bf16.msra.mxu0 0
    %625 = vmatprep.mubr.bf16.mxu0 0
    %626 = vmatmul.mubr.bf16.gmra.mrb[0].mxu0 %v588
    %v627 = vpop.f32.mrb[0].mxu0
    %v628 = vadd.f32 0.0, %v627
    %v629 = vpop.f32.mrb[0].mxu0
    %v630 = vpop.f32.mrb[0].mxu0
    %v631 = vpop.f32.mrb[0].mxu0
    %632 = vdwg.mxu0
    %634 = vrot.lane.b32.xlu0 %v532, 8
    %v635 = vpop.permute.xlu0 %634
    %638 = vrot.lane.b32.xlu0 %v580, 16
    %v639 = vpop.permute.xlu0 %638
    %642 = vrot.lane.b32.xlu0 %v628, 24
    %v643 = vpop.permute.xlu0 %642
    %v645 = vsel %vm201, %v484, %v635
    %vm646 = vcmask 130048
    %v647 = vsel %vm646, %v645, %v639
    %vm648 = vcmask 195584
    %v649 = vsel %vm648, %v647, %v643
    %v650 = vunpack.c.l.bf16 %v80
    %v651 = vrot.slane %v190, 4
    %652 = vrot.lane.b32.xlu0 %v651, 96
    %v653 = vpop.permute.xlu0 %652
    %v655 = vsel %vm201, %v651, 0
    %v658 = vsel %vm201, %v653, 0
    %660 = vmatprep.subr.bf16.mxu0 0
    %661 = vmatpush1.bf16.xpose.msra.mxu0 %v658
    %662 = vmatprep.subr.bf16.mxu0 0
    %663 = vmatpush1.bf16.xpose.msra.mxu0 0
    %664 = vmatprep.subr.bf16.mxu0 0
    %665 = vmatpush1.bf16.xpose.msra.mxu0 0
    %666 = vmatprep.subr.bf16.mxu0 0
    %667 = vmatpush1.bf16.xpose.msra.mxu0 0
    %668 = vmatprep.subr.bf16.mxu0 0
    %669 = vmatpush1.bf16.xpose.msra.mxu0 0
    %670 = vmatprep.subr.bf16.mxu0 0
    %671 = vmatpush1.bf16.xpose.msra.mxu0 0
    %672 = vmatprep.subr.bf16.mxu0 0
    %673 = vmatpush1.bf16.xpose.msra.mxu0 0
    %674 = vmatprep.subr.bf16.mxu0 0
    %675 = vmatpush1.bf16.xpose.msra.mxu0 0
    %676 = vmatprep.subr.bf16.mxu0 0
    %677 = vmatpush1.bf16.xpose.msra.mxu0 0
    %678 = vmatprep.subr.bf16.mxu0 0
    %679 = vmatpush1.bf16.xpose.msra.mxu0 0
    %680 = vmatprep.subr.bf16.mxu0 0
    %681 = vmatpush1.bf16.xpose.msra.mxu0 0
    %682 = vmatprep.subr.bf16.mxu0 0
    %683 = vmatpush1.bf16.xpose.msra.mxu0 0
    %684 = vmatprep.subr.bf16.mxu0 0
    %685 = vmatpush1.bf16.xpose.msra.mxu0 0
    %686 = vmatprep.subr.bf16.mxu0 0
    %687 = vmatpush1.bf16.xpose.msra.mxu0 0
    %688 = vmatprep.subr.bf16.mxu0 0
    %689 = vmatpush1.bf16.xpose.msra.mxu0 0
    %690 = vmatprep.subr.bf16.mxu0 0
    %691 = vmatpush1.bf16.xpose.msra.mxu0 0
    %692 = vmatprep.mubr.bf16.mxu0 0
    %693 = vmatmul.mubr.bf16.gmra.mrb[0].mxu0 %v655
    %v694 = vpop.f32.mrb[0].mxu0
    %v695 = vadd.f32 %v650, %v694
    %v696 = vpop.f32.mrb[0].mxu0
    %v697 = vpop.f32.mrb[0].mxu0
    %v698 = vpop.f32.mrb[0].mxu0
    %699 = vdwg.mxu0
    %v700 = vrot.slane %v193, 4
    %701 = vrot.lane.b32.xlu0 %v700, 96
    %v702 = vpop.permute.xlu0 %701
    %v704 = vsel %vm201, %v700, 0
    %v707 = vsel %vm201, %v702, 0
    %709 = vmatprep.subr.bf16.mxu0 0
    %710 = vmatpush1.bf16.xpose.msra.mxu0 %v707
    %711 = vmatprep.subr.bf16.mxu0 0
    %712 = vmatpush1.bf16.xpose.msra.mxu0 0
    %713 = vmatprep.subr.bf16.mxu0 0
    %714 = vmatpush1.bf16.xpose.msra.mxu0 0
    %715 = vmatprep.subr.bf16.mxu0 0
    %716 = vmatpush1.bf16.xpose.msra.mxu0 0
    %717 = vmatprep.subr.bf16.mxu0 0
    %718 = vmatpush1.bf16.xpose.msra.mxu0 0
    %719 = vmatprep.subr.bf16.mxu0 0
    %720 = vmatpush1.bf16.xpose.msra.mxu0 0
    %721 = vmatprep.subr.bf16.mxu0 0
    %722 = vmatpush1.bf16.xpose.msra.mxu0 0
    %723 = vmatprep.subr.bf16.mxu0 0
    %724 = vmatpush1.bf16.xpose.msra.mxu0 0
    %725 = vmatprep.subr.bf16.mxu0 0
    %726 = vmatpush1.bf16.xpose.msra.mxu0 0
    %727 = vmatprep.subr.bf16.mxu0 0
    %728 = vmatpush1.bf16.xpose.msra.mxu0 0
    %729 = vmatprep.subr.bf16.mxu0 0
    %730 = vmatpush1.bf16.xpose.msra.mxu0 0
    %731 = vmatprep.subr.bf16.mxu0 0
    %732 = vmatpush1.bf16.xpose.msra.mxu0 0
    %733 = vmatprep.subr.bf16.mxu0 0
    %734 = vmatpush1.bf16.xpose.msra.mxu0 0
    %735 = vmatprep.subr.bf16.mxu0 0
    %736 = vmatpush1.bf16.xpose.msra.mxu0 0
    %737 = vmatprep.subr.bf16.mxu0 0
    %738 = vmatpush1.bf16.xpose.msra.mxu0 0
    %739 = vmatprep.subr.bf16.mxu0 0
    %740 = vmatpush1.bf16.xpose.msra.mxu0 0
    %741 = vmatprep.mubr.bf16.mxu0 0
    %742 = vmatmul.mubr.bf16.gmra.mrb[0].mxu0 %v704
    %v743 = vpop.f32.mrb[0].mxu0
    %v744 = vadd.f32 %v650, %v743
    %v745 = vpop.f32.mrb[0].mxu0
    %v746 = vpop.f32.mrb[0].mxu0
    %v747 = vpop.f32.mrb[0].mxu0
    %748 = vdwg.mxu0
    %v749 = vrot.slane %v195, 4
    %750 = vrot.lane.b32.xlu0 %v749, 96
    %v751 = vpop.permute.xlu0 %750
    %v753 = vsel %vm201, %v749, 0
    %v756 = vsel %vm201, %v751, 0
    %758 = vmatprep.subr.bf16.mxu0 0
    %759 = vmatpush1.bf16.xpose.msra.mxu0 %v756
    %760 = vmatprep.subr.bf16.mxu0 0
    %761 = vmatpush1.bf16.xpose.msra.mxu0 0
    %762 = vmatprep.subr.bf16.mxu0 0
    %763 = vmatpush1.bf16.xpose.msra.mxu0 0
    %764 = vmatprep.subr.bf16.mxu0 0
    %765 = vmatpush1.bf16.xpose.msra.mxu0 0
    %766 = vmatprep.subr.bf16.mxu0 0
    %767 = vmatpush1.bf16.xpose.msra.mxu0 0
    %768 = vmatprep.subr.bf16.mxu0 0
    %769 = vmatpush1.bf16.xpose.msra.mxu0 0
    %770 = vmatprep.subr.bf16.mxu0 0
    %771 = vmatpush1.bf16.xpose.msra.mxu0 0
    %772 = vmatprep.subr.bf16.mxu0 0
    %773 = vmatpush1.bf16.xpose.msra.mxu0 0
    %774 = vmatprep.subr.bf16.mxu0 0
    %775 = vmatpush1.bf16.xpose.msra.mxu0 0
    %776 = vmatprep.subr.bf16.mxu0 0
    %777 = vmatpush1.bf16.xpose.msra.mxu0 0
    %778 = vmatprep.subr.bf16.mxu0 0
    %779 = vmatpush1.bf16.xpose.msra.mxu0 0
    %780 = vmatprep.subr.bf16.mxu0 0
    %781 = vmatpush1.bf16.xpose.msra.mxu0 0
    %782 = vmatprep.subr.bf16.mxu0 0
    %783 = vmatpush1.bf16.xpose.msra.mxu0 0
    %784 = vmatprep.subr.bf16.mxu0 0
    %785 = vmatpush1.bf16.xpose.msra.mxu0 0
    %786 = vmatprep.subr.bf16.mxu0 0
    %787 = vmatpush1.bf16.xpose.msra.mxu0 0
    %788 = vmatprep.subr.bf16.mxu0 0
    %789 = vmatpush1.bf16.xpose.msra.mxu0 0
    %790 = vmatprep.mubr.bf16.mxu0 0
    %791 = vmatmul.mubr.bf16.gmra.mrb[0].mxu0 %v753
    %v792 = vpop.f32.mrb[0].mxu0
    %v793 = vadd.f32 %v650, %v792
    %v794 = vpop.f32.mrb[0].mxu0
    %v795 = vpop.f32.mrb[0].mxu0
    %v796 = vpop.f32.mrb[0].mxu0
    %797 = vdwg.mxu0
    %v798 = vrot.slane %v197, 4
    %799 = vrot.lane.b32.xlu0 %v798, 96
    %v800 = vpop.permute.xlu0 %799
    %v802 = vsel %vm201, %v798, 0
    %v805 = vsel %vm201, %v800, 0
    %807 = vmatprep.subr.bf16.mxu0 0
    %808 = vmatpush1.bf16.xpose.msra.mxu0 %v805
    %809 = vmatprep.subr.bf16.mxu0 0
    %810 = vmatpush1.bf16.xpose.msra.mxu0 0
    %811 = vmatprep.subr.bf16.mxu0 0
    %812 = vmatpush1.bf16.xpose.msra.mxu0 0
    %813 = vmatprep.subr.bf16.mxu0 0
    %814 = vmatpush1.bf16.xpose.msra.mxu0 0
    %815 = vmatprep.subr.bf16.mxu0 0
    %816 = vmatpush1.bf16.xpose.msra.mxu0 0
    %817 = vmatprep.subr.bf16.mxu0 0
    %818 = vmatpush1.bf16.xpose.msra.mxu0 0
    %819 = vmatprep.subr.bf16.mxu0 0
    %820 = vmatpush1.bf16.xpose.msra.mxu0 0
    %821 = vmatprep.subr.bf16.mxu0 0
    %822 = vmatpush1.bf16.xpose.msra.mxu0 0
    %823 = vmatprep.subr.bf16.mxu0 0
    %824 = vmatpush1.bf16.xpose.msra.mxu0 0
    %825 = vmatprep.subr.bf16.mxu0 0
    %826 = vmatpush1.bf16.xpose.msra.mxu0 0
    %827 = vmatprep.subr.bf16.mxu0 0
    %828 = vmatpush1.bf16.xpose.msra.mxu0 0
    %829 = vmatprep.subr.bf16.mxu0 0
    %830 = vmatpush1.bf16.xpose.msra.mxu0 0
    %831 = vmatprep.subr.bf16.mxu0 0
    %832 = vmatpush1.bf16.xpose.msra.mxu0 0
    %833 = vmatprep.subr.bf16.mxu0 0
    %834 = vmatpush1.bf16.xpose.msra.mxu0 0
    %835 = vmatprep.subr.bf16.mxu0 0
    %836 = vmatpush1.bf16.xpose.msra.mxu0 0
    %837 = vmatprep.subr.bf16.mxu0 0
    %838 = vmatpush1.bf16.xpose.msra.mxu0 0
    %839 = vmatprep.mubr.bf16.mxu0 0
    %840 = vmatmul.mubr.bf16.gmra.mrb[0].mxu0 %v802
    %v841 = vpop.f32.mrb[0].mxu0
    %v842 = vadd.f32 %v650, %v841
    %v843 = vpop.f32.mrb[0].mxu0
    %v844 = vpop.f32.mrb[0].mxu0
    %v845 = vpop.f32.mrb[0].mxu0
    %846 = vdwg.mxu0
    %v847 = vsel %vm201, %v695, -inf
    %848 = vmax.xlane.f32.xlu0 %v847
    %v849 = vpop.xlane.xlu0 %848
    %v850 = vsel %vm201, %v744, -inf
    %851 = vmax.xlane.f32.xlu0 %v850
    %v852 = vpop.xlane.xlu0 %851
    %v853 = vsel %vm201, %v793, -inf
    %854 = vmax.xlane.f32.xlu0 %v853
    %v855 = vpop.xlane.xlu0 %854
    %v856 = vsel %vm201, %v842, -inf
    %857 = vmax.xlane.f32.xlu0 %v856
    %v858 = vpop.xlane.xlu0 %857
    %v859 = vsub.f32 %v695, %v849
    %v860 = vsub.f32 %v744, %v852
    %v861 = vsub.f32 %v793, %v855
    %v862 = vsub.f32 %v842, %v858
    %v863 = vmul.f32 %v859, 1.442695
    %v864 = vpow.pop %v863
    %v865 = vmul.f32 %v860, 1.442695
    %v866 = vpow.pop %v865
    %v867 = vmul.f32 %v861, 1.442695
    %v868 = vpow.pop %v867
    %v869 = vmul.f32 %v862, 1.442695
    %v870 = vpow.pop %v869
    %v871 = vsel %vm201, %v864, 0.0
    %872 = vadd.xlane.f32.xlu0 %v871
    %v873 = vpop.xlane.xlu0 %872
    %v874 = vsel %vm201, %v866, 0.0
    %875 = vadd.xlane.f32.xlu0 %v874
    %v876 = vpop.xlane.xlu0 %875
    %v877 = vsel %vm201, %v868, 0.0
    %878 = vadd.xlane.f32.xlu0 %v877
    %v879 = vpop.xlane.xlu0 %878
    %v880 = vsel %vm201, %v870, 0.0
    %881 = vadd.xlane.f32.xlu0 %v880
    %v882 = vpop.xlane.xlu0 %881
    %v883 = vrcp.pop %v873
    %v884 = vmul.f32 %v864, %v883
    %v885 = vrcp.pop %v876
    %v886 = vmul.f32 %v866, %v885
    %v887 = vrcp.pop %v879
    %v888 = vmul.f32 %v868, %v887
    %v889 = vrcp.pop %v882
    %v890 = vmul.f32 %v870, %v889
    %v891 = vpack.c.bf16 %v884, %v884
    %v892 = vpack.c.bf16 %v886, %v886
    %v893 = vpack.c.bf16 %v888, %v888
    %v894 = vpack.c.bf16 %v890, %v890
    %895 = vrot.lane.b32.xlu0 %v651, 64
    %v896 = vpop.permute.xlu0 %895
    %v898 = vsel %vm201, %v891, 0
    %v901 = vsel %vm445, %v896, 0
    %903 = vmatprep.subr.bf16.mxu0 0
    %904 = vmatpush1.bf16.msra.mxu0 %v901
    %905 = vmatprep.subr.bf16.mxu0 0
    %906 = vmatpush1.bf16.msra.mxu0 0
    %907 = vmatprep.subr.bf16.mxu0 0
    %908 = vmatpush1.bf16.msra.mxu0 0
    %909 = vmatprep.subr.bf16.mxu0 0
    %910 = vmatpush1.bf16.msra.mxu0 0
    %911 = vmatprep.subr.bf16.mxu0 0
    %912 = vmatpush1.bf16.msra.mxu0 0
    %913 = vmatprep.subr.bf16.mxu0 0
    %914 = vmatpush1.bf16.msra.mxu0 0
    %915 = vmatprep.subr.bf16.mxu0 0
    %916 = vmatpush1.bf16.msra.mxu0 0
    %917 = vmatprep.subr.bf16.mxu0 0
    %918 = vmatpush1.bf16.msra.mxu0 0
    %919 = vmatprep.subr.bf16.mxu0 0
    %920 = vmatpush1.bf16.msra.mxu0 0
    %921 = vmatprep.subr.bf16.mxu0 0
    %922 = vmatpush1.bf16.msra.mxu0 0
    %923 = vmatprep.subr.bf16.mxu0 0
    %924 = vmatpush1.bf16.msra.mxu0 0
    %925 = vmatprep.subr.bf16.mxu0 0
    %926 = vmatpush1.bf16.msra.mxu0 0
    %927 = vmatprep.subr.bf16.mxu0 0
    %928 = vmatpush1.bf16.msra.mxu0 0
    %929 = vmatprep.subr.bf16.mxu0 0
    %930 = vmatpush1.bf16.msra.mxu0 0
    %931 = vmatprep.subr.bf16.mxu0 0
    %932 = vmatpush1.bf16.msra.mxu0 0
    %933 = vmatprep.subr.bf16.mxu0 0
    %934 = vmatpush1.bf16.msra.mxu0 0
    %935 = vmatprep.mubr.bf16.mxu0 0
    %936 = vmatmul.mubr.bf16.gmra.mrb[0].mxu0 %v898
    %v937 = vpop.f32.mrb[0].mxu0
    %v938 = vadd.f32 0.0, %v937
    %v939 = vpop.f32.mrb[0].mxu0
    %v940 = vpop.f32.mrb[0].mxu0
    %v941 = vpop.f32.mrb[0].mxu0
    %942 = vdwg.mxu0
    %943 = vrot.lane.b32.xlu0 %v700, 64
    %v944 = vpop.permute.xlu0 %943
    %v946 = vsel %vm201, %v892, 0
    %v949 = vsel %vm445, %v944, 0
    %951 = vmatprep.subr.bf16.mxu0 0
    %952 = vmatpush1.bf16.msra.mxu0 %v949
    %953 = vmatprep.subr.bf16.mxu0 0
    %954 = vmatpush1.bf16.msra.mxu0 0
    %955 = vmatprep.subr.bf16.mxu0 0
    %956 = vmatpush1.bf16.msra.mxu0 0
    %957 = vmatprep.subr.bf16.mxu0 0
    %958 = vmatpush1.bf16.msra.mxu0 0
    %959 = vmatprep.subr.bf16.mxu0 0
    %960 = vmatpush1.bf16.msra.mxu0 0
    %961 = vmatprep.subr.bf16.mxu0 0
    %962 = vmatpush1.bf16.msra.mxu0 0
    %963 = vmatprep.subr.bf16.mxu0 0
    %964 = vmatpush1.bf16.msra.mxu0 0
    %965 = vmatprep.subr.bf16.mxu0 0
    %966 = vmatpush1.bf16.msra.mxu0 0
    %967 = vmatprep.subr.bf16.mxu0 0
    %968 = vmatpush1.bf16.msra.mxu0 0
    %969 = vmatprep.subr.bf16.mxu0 0
    %970 = vmatpush1.bf16.msra.mxu0 0
    %971 = vmatprep.subr.bf16.mxu0 0
    %972 = vmatpush1.bf16.msra.mxu0 0
    %973 = vmatprep.subr.bf16.mxu0 0
    %974 = vmatpush1.bf16.msra.mxu0 0
    %975 = vmatprep.subr.bf16.mxu0 0
    %976 = vmatpush1.bf16.msra.mxu0 0
    %977 = vmatprep.subr.bf16.mxu0 0
    %978 = vmatpush1.bf16.msra.mxu0 0
    %979 = vmatprep.subr.bf16.mxu0 0
    %980 = vmatpush1.bf16.msra.mxu0 0
    %981 = vmatprep.subr.bf16.mxu0 0
    %982 = vmatpush1.bf16.msra.mxu0 0
    %983 = vmatprep.mubr.bf16.mxu0 0
    %984 = vmatmul.mubr.bf16.gmra.mrb[0].mxu0 %v946
    %v985 = vpop.f32.mrb[0].mxu0
    %v986 = vadd.f32 0.0, %v985
    %v987 = vpop.f32.mrb[0].mxu0
    %v988 = vpop.f32.mrb[0].mxu0
    %v989 = vpop.f32.mrb[0].mxu0
    %990 = vdwg.mxu0
    %991 = vrot.lane.b32.xlu0 %v749, 64
    %v992 = vpop.permute.xlu0 %991
    %v994 = vsel %vm201, %v893, 0
    %v997 = vsel %vm445, %v992, 0
    %999 = vmatprep.subr.bf16.mxu0 0
    %1000 = vmatpush1.bf16.msra.mxu0 %v997
    %1001 = vmatprep.subr.bf16.mxu0 0
    %1002 = vmatpush1.bf16.msra.mxu0 0
    %1003 = vmatprep.subr.bf16.mxu0 0
    %1004 = vmatpush1.bf16.msra.mxu0 0
    %1005 = vmatprep.subr.bf16.mxu0 0
    %1006 = vmatpush1.bf16.msra.mxu0 0
    %1007 = vmatprep.subr.bf16.mxu0 0
    %1008 = vmatpush1.bf16.msra.mxu0 0
    %1009 = vmatprep.subr.bf16.mxu0 0
    %1010 = vmatpush1.bf16.msra.mxu0 0
    %1011 = vmatprep.subr.bf16.mxu0 0
    %1012 = vmatpush1.bf16.msra.mxu0 0
    %1013 = vmatprep.subr.bf16.mxu0 0
    %1014 = vmatpush1.bf16.msra.mxu0 0
    %1015 = vmatprep.subr.bf16.mxu0 0
    %1016 = vmatpush1.bf16.msra.mxu0 0
    %1017 = vmatprep.subr.bf16.mxu0 0
    %1018 = vmatpush1.bf16.msra.mxu0 0
    %1019 = vmatprep.subr.bf16.mxu0 0
    %1020 = vmatpush1.bf16.msra.mxu0 0
    %1021 = vmatprep.subr.bf16.mxu0 0
    %1022 = vmatpush1.bf16.msra.mxu0 0
    %1023 = vmatprep.subr.bf16.mxu0 0
    %1024 = vmatpush1.bf16.msra.mxu0 0
    %1025 = vmatprep.subr.bf16.mxu0 0
    %1026 = vmatpush1.bf16.msra.mxu0 0
    %1027 = vmatprep.subr.bf16.mxu0 0
    %1028 = vmatpush1.bf16.msra.mxu0 0
    %1029 = vmatprep.subr.bf16.mxu0 0
    %1030 = vmatpush1.bf16.msra.mxu0 0
    %1031 = vmatprep.mubr.bf16.mxu0 0
    %1032 = vmatmul.mubr.bf16.gmra.mrb[0].mxu0 %v994
    %v1033 = vpop.f32.mrb[0].mxu0
    %v1034 = vadd.f32 0.0, %v1033
    %v1035 = vpop.f32.mrb[0].mxu0
    %v1036 = vpop.f32.mrb[0].mxu0
    %v1037 = vpop.f32.mrb[0].mxu0
    %1038 = vdwg.mxu0
    %1039 = vrot.lane.b32.xlu0 %v798, 64
    %v1040 = vpop.permute.xlu0 %1039
    %v1042 = vsel %vm201, %v894, 0
    %v1045 = vsel %vm445, %v1040, 0
    %1047 = vmatprep.subr.bf16.mxu0 0
    %1048 = vmatpush1.bf16.msra.mxu0 %v1045
    %1049 = vmatprep.subr.bf16.mxu0 0
    %1050 = vmatpush1.bf16.msra.mxu0 0
    %1051 = vmatprep.subr.bf16.mxu0 0
    %1052 = vmatpush1.bf16.msra.mxu0 0
    %1053 = vmatprep.subr.bf16.mxu0 0
    %1054 = vmatpush1.bf16.msra.mxu0 0
    %1055 = vmatprep.subr.bf16.mxu0 0
    %1056 = vmatpush1.bf16.msra.mxu0 0
    %1057 = vmatprep.subr.bf16.mxu0 0
    %1058 = vmatpush1.bf16.msra.mxu0 0
    %1059 = vmatprep.subr.bf16.mxu0 0
    %1060 = vmatpush1.bf16.msra.mxu0 0
    %1061 = vmatprep.subr.bf16.mxu0 0
    %1062 = vmatpush1.bf16.msra.mxu0 0
    %1063 = vmatprep.subr.bf16.mxu0 0
    %1064 = vmatpush1.bf16.msra.mxu0 0
    %1065 = vmatprep.subr.bf16.mxu0 0
    %1066 = vmatpush1.bf16.msra.mxu0 0
    %1067 = vmatprep.subr.bf16.mxu0 0
    %1068 = vmatpush1.bf16.msra.mxu0 0
    %1069 = vmatprep.subr.bf16.mxu0 0
    %1070 = vmatpush1.bf16.msra.mxu0 0
    %1071 = vmatprep.subr.bf16.mxu0 0
    %1072 = vmatpush1.bf16.msra.mxu0 0
    %1073 = vmatprep.subr.bf16.mxu0 0
    %1074 = vmatpush1.bf16.msra.mxu0 0
    %1075 = vmatprep.subr.bf16.mxu0 0
    %1076 = vmatpush1.bf16.msra.mxu0 0
    %1077 = vmatprep.subr.bf16.mxu0 0
    %1078 = vmatpush1.bf16.msra.mxu0 0
    %1079 = vmatprep.mubr.bf16.mxu0 0
    %1080 = vmatmul.mubr.bf16.gmra.mrb[0].mxu0 %v1042
    %v1081 = vpop.f32.mrb[0].mxu0
    %v1082 = vadd.f32 0.0, %v1081
    %v1083 = vpop.f32.mrb[0].mxu0
    %v1084 = vpop.f32.mrb[0].mxu0
    %v1085 = vpop.f32.mrb[0].mxu0
    %1086 = vdwg.mxu0
    %1088 = vrot.lane.b32.xlu0 %v986, 8
    %v1089 = vpop.permute.xlu0 %1088
    %1092 = vrot.lane.b32.xlu0 %v1034, 16
    %v1093 = vpop.permute.xlu0 %1092
    %1096 = vrot.lane.b32.xlu0 %v1082, 24
    %v1097 = vpop.permute.xlu0 %1096
    %v1099 = vsel %vm201, %v938, %v1089
    %v1100 = vsel %vm646, %v1099, %v1093
    %v1101 = vsel %vm648, %v1100, %v1097
    %v1102 = vpack.c.bf16 %v1101, %v649
    %v1103 = vld [vmem:[%s7] sm:$0xf]
    %v1104 = vld [vmem:[%s7 + $0x4] sm:$0xf]
    %v1105 = vld [vmem:[%s7 + $0x8] sm:$0xf]
    %v1106 = vld [vmem:[%s7 + $0xc] sm:$0xf]
    %v1107 = vlaneseq
    %v1108 = vshrl.u32 %v1107, 7
    %v1109 = vsub.s32 3, %v1108
    %v1110 = vrot.slane %v83, %v1109
    %v1115 = vunpack.c.l.b16 %v1103
    %v1116 = vunpack.c.l.b16 %v1104
    %v1117 = vunpack.c.l.b16 %v1105
    %v1118 = vunpack.c.l.b16 %v1106
    %v1119 = vpack.c.b16 %v1116, %v1115
    %v1120 = vpack.c.b16 %v1118, %v1117
    %v1124 = vsel %vm85, %v1102, 0
    %1126 = vmatprep.subr.bf16.mxu0 0
    %1127 = vmatpush1.bf16.msra.mxu0 %v1119
    %1128 = vmatprep.subr.bf16.mxu0 0
    %1129 = vmatpush1.bf16.msra.mxu0 %v1120
    %1130 = vmatprep.subr.bf16.mxu0 0
    %1131 = vmatpush1.bf16.msra.mxu0 0
    %1132 = vmatprep.subr.bf16.mxu0 0
    %1133 = vmatpush1.bf16.msra.mxu0 0
    %1134 = vmatprep.subr.bf16.mxu0 0
    %1135 = vmatpush1.bf16.msra.mxu0 0
    %1136 = vmatprep.subr.bf16.mxu0 0
    %1137 = vmatpush1.bf16.msra.mxu0 0
    %1138 = vmatprep.subr.bf16.mxu0 0
    %1139 = vmatpush1.bf16.msra.mxu0 0
    %1140 = vmatprep.subr.bf16.mxu0 0
    %1141 = vmatpush1.bf16.msra.mxu0 0
    %1142 = vmatprep.subr.bf16.mxu0 0
    %1143 = vmatpush1.bf16.msra.mxu0 0
    %1144 = vmatprep.subr.bf16.mxu0 0
    %1145 = vmatpush1.bf16.msra.mxu0 0
    %1146 = vmatprep.subr.bf16.mxu0 0
    %1147 = vmatpush1.bf16.msra.mxu0 0
    %1148 = vmatprep.subr.bf16.mxu0 0
    %1149 = vmatpush1.bf16.msra.mxu0 0
    %1150 = vmatprep.subr.bf16.mxu0 0
    %1151 = vmatpush1.bf16.msra.mxu0 0
    %1152 = vmatprep.subr.bf16.mxu0 0
    %1153 = vmatpush1.bf16.msra.mxu0 0
    %1154 = vmatprep.subr.bf16.mxu0 0
    %1155 = vmatpush1.bf16.msra.mxu0 0
    %1156 = vmatprep.subr.bf16.mxu0 0
    %1157 = vmatpush1.bf16.msra.mxu0 0
    %1158 = vmatprep.mubr.bf16.mxu0 0
    %1159 = vmatmul.mubr.bf16.gmra.mrb[0].mxu0 %v1124
    %v1160 = vpop.f32.mrb[0].mxu0
    %v1161 = vadd.f32 %v1110, %v1160
    %v1162 = vpop.f32.mrb[0].mxu0
    %v1163 = vpop.f32.mrb[0].mxu0
    %v1164 = vadd.f32 %v1110, %v1163
    %v1165 = vpop.f32.mrb[0].mxu0
    %1166 = vdwg.mxu0
    %v1167 = vadd.f32 %v71, %v1161
    %v1168 = vadd.f32 %v72, %v1164
    %v1169 = vsel %vm85, %v1167, 0.0
    %1170 = vadd.xlane.f32.xlu0 %v1169
    %v1171 = vpop.xlane.xlu0 %1170
    %v1172 = vsel %vm85, %v1168, 0.0
    %1173 = vadd.xlane.f32.xlu0 %v1172
    %v1174 = vpop.xlane.xlu0 %1173
    %v1175 = vmul.f32 %v1171, %v92
    %v1176 = vmul.f32 %v1174, %v92
    %v1177 = vsub.f32 %v1167, %v1175
    %v1178 = vsub.f32 %v1168, %v1176
    %v1179 = vmul.f32 %v1177, %v1177
    %v1180 = vmul.f32 %v1178, %v1178
    %v1181 = vsel %vm85, %v1179, 0.0
    %1182 = vadd.xlane.f32.xlu0 %v1181
    %v1183 = vpop.xlane.xlu0 %1182
    %v1184 = vsel %vm85, %v1180, 0.0
    %1185 = vadd.xlane.f32.xlu0 %v1184
    %v1186 = vpop.xlane.xlu0 %1185
    %v1187 = vmul.f32 %v1183, %v92
    %v1188 = vmul.f32 %v1186, %v92
    %v1189 = vadd.f32 %v1187, 1e-05
    %v1190 = vadd.f32 %v1188, 1e-05
    %v1191 = vrsqrt.pop %v1189
    %v1192 = vrsqrt.pop %v1190
    %v1193 = vmul.f32 %v1177, %v1191
    %v1194 = vmul.f32 %v1178, %v1192
    %v1195 = vlaneseq
    %v1196 = vshrl.u32 %v1195, 7
    %v1197 = vsub.s32 1, %v1196
    %v1198 = vrot.slane %v84, %v1197
    %v1199 = vmul.f32 %v1193, %v1198
    %v1200 = vmul.f32 %v1194, %v1198
    %v1201 = vlaneseq
    %v1202 = vshrl.u32 %v1201, 7
    %v1203 = vsub.s32 2, %v1202
    %v1204 = vrot.slane %v84, %v1203
    %v1205 = vadd.f32 %v1199, %v1204
    %v1206 = vadd.f32 %v1200, %v1204
    %v1207 = vpack.c.bf16 %v1206, %v1205
    %v1208 = vld [vmem:[%s5] sm:$0xf]
    %v1209 = vld [vmem:[%s5 + $0x4] sm:$0xf]
    %v1210 = vld [vmem:[%s5 + $0x8] sm:$0xf]
    %v1211 = vld [vmem:[%s5 + $0xc] sm:$0xf]
    %v1212 = vlaneseq
    %v1213 = vshrl.u32 %v1212, 7
    %v1214 = vsub.s32 2, %v1213
    %v1215 = vrot.slane %v83, %v1214
    %v1220 = vunpack.c.l.b16 %v1208
    %v1221 = vunpack.c.l.b16 %v1209
    %v1222 = vunpack.c.l.b16 %v1210
    %v1223 = vunpack.c.l.b16 %v1211
    %v1224 = vpack.c.b16 %v1221, %v1220
    %v1225 = vpack.c.b16 %v1223, %v1222
    %v1229 = vsel %vm85, %v1207, 0
    %1231 = vmatprep.subr.bf16.mxu0 0
    %1232 = vmatpush1.bf16.msra.mxu0 %v1224
    %1233 = vmatprep.subr.bf16.mxu0 0
    %1234 = vmatpush1.bf16.msra.mxu0 %v1225
    %1235 = vmatprep.subr.bf16.mxu0 0
    %1236 = vmatpush1.bf16.msra.mxu0 0
    %1237 = vmatprep.subr.bf16.mxu0 0
    %1238 = vmatpush1.bf16.msra.mxu0 0
    %1239 = vmatprep.subr.bf16.mxu0 0
    %1240 = vmatpush1.bf16.msra.mxu0 0
    %1241 = vmatprep.subr.bf16.mxu0 0
    %1242 = vmatpush1.bf16.msra.mxu0 0
    %1243 = vmatprep.subr.bf16.mxu0 0
    %1244 = vmatpush1.bf16.msra.mxu0 0
    %1245 = vmatprep.subr.bf16.mxu0 0
    %1246 = vmatpush1.bf16.msra.mxu0 0
    %1247 = vmatprep.subr.bf16.mxu0 0
    %1248 = vmatpush1.bf16.msra.mxu0 0
    %1249 = vmatprep.subr.bf16.mxu0 0
    %1250 = vmatpush1.bf16.msra.mxu0 0
    %1251 = vmatprep.subr.bf16.mxu0 0
    %1252 = vmatpush1.bf16.msra.mxu0 0
    %1253 = vmatprep.subr.bf16.mxu0 0
    %1254 = vmatpush1.bf16.msra.mxu0 0
    %1255 = vmatprep.subr.bf16.mxu0 0
    %1256 = vmatpush1.bf16.msra.mxu0 0
    %1257 = vmatprep.subr.bf16.mxu0 0
    %1258 = vmatpush1.bf16.msra.mxu0 0
    %1259 = vmatprep.subr.bf16.mxu0 0
    %1260 = vmatpush1.bf16.msra.mxu0 0
    %1261 = vmatprep.subr.bf16.mxu0 0
    %1262 = vmatpush1.bf16.msra.mxu0 0
    %1263 = vmatprep.mubr.bf16.mxu0 0
    %1264 = vmatmul.mubr.bf16.gmra.mrb[0].mxu0 %v1229
    %v1265 = vpop.f32.mrb[0].mxu0
    %v1266 = vadd.f32 %v1215, %v1265
    %v1267 = vpop.f32.mrb[0].mxu0
    %v1268 = vpop.f32.mrb[0].mxu0
    %v1269 = vadd.f32 %v1215, %v1268
    %v1270 = vpop.f32.mrb[0].mxu0
    %1271 = vdwg.mxu0
    %v1272 = vpack.c.bf16 %v1269, %v1266
    %v1273 = vld [vmem:[%s6] sm:$0xf]
    %v1274 = vld [vmem:[%s6 + $0x4] sm:$0xf]
    %v1275 = vld [vmem:[%s6 + $0x8] sm:$0xf]
    %v1276 = vld [vmem:[%s6 + $0xc] sm:$0xf]
    %v1277 = vlaneseq
    %v1278 = vshrl.u32 %v1277, 7
    %v1279 = vsub.s32 1, %v1278
    %v1280 = vrot.slane %v83, %v1279
    %v1285 = vunpack.c.l.b16 %v1273
    %v1286 = vunpack.c.l.b16 %v1274
    %v1287 = vunpack.c.l.b16 %v1275
    %v1288 = vunpack.c.l.b16 %v1276
    %v1289 = vpack.c.b16 %v1286, %v1285
    %v1290 = vpack.c.b16 %v1288, %v1287
    %v1294 = vsel %vm85, %v77, 0
    %v1297 = vsel %vm85, %v78, 0
    %1299 = vmatprep.subr.bf16.mxu0 0
    %1300 = vmatpush1.bf16.msra.mxu0 %v1289
    %1301 = vmatprep.subr.bf16.mxu0 0
    %1302 = vmatpush1.bf16.msra.mxu0 %v1290
    %1303 = vmatprep.subr.bf16.mxu0 0
    %1304 = vmatpush1.bf16.msra.mxu0 0
    %1305 = vmatprep.subr.bf16.mxu0 0
    %1306 = vmatpush1.bf16.msra.mxu0 0
    %1307 = vmatprep.subr.bf16.mxu0 0
    %1308 = vmatpush1.bf16.msra.mxu0 0
    %1309 = vmatprep.subr.bf16.mxu0 0
    %1310 = vmatpush1.bf16.msra.mxu0 0
    %1311 = vmatprep.subr.bf16.mxu0 0
    %1312 = vmatpush1.bf16.msra.mxu0 0
    %1313 = vmatprep.subr.bf16.mxu0 0
    %1314 = vmatpush1.bf16.msra.mxu0 0
    %1315 = vmatprep.subr.bf16.mxu0 0
    %1316 = vmatpush1.bf16.msra.mxu0 0
    %1317 = vmatprep.subr.bf16.mxu0 0
    %1318 = vmatpush1.bf16.msra.mxu0 0
    %1319 = vmatprep.subr.bf16.mxu0 0
    %1320 = vmatpush1.bf16.msra.mxu0 0
    %1321 = vmatprep.subr.bf16.mxu0 0
    %1322 = vmatpush1.bf16.msra.mxu0 0
    %1323 = vmatprep.subr.bf16.mxu0 0
    %1324 = vmatpush1.bf16.msra.mxu0 0
    %1325 = vmatprep.subr.bf16.mxu0 0
    %1326 = vmatpush1.bf16.msra.mxu0 0
    %1327 = vmatprep.subr.bf16.mxu0 0
    %1328 = vmatpush1.bf16.msra.mxu0 0
    %1329 = vmatprep.subr.bf16.mxu0 0
    %1330 = vmatpush1.bf16.msra.mxu0 0
    %1331 = vmatprep.mubr.bf16.mxu0 0
    %1332 = vmatmul.mubr.bf16.gmra.mrb[0].mxu0 %v1294
    %v1333 = vpop.f32.mrb[0].mxu0
    %v1334 = vadd.f32 %v1280, %v1333
    %v1335 = vpop.f32.mrb[0].mxu0
    %v1336 = vpop.f32.mrb[0].mxu0
    %v1337 = vadd.f32 %v1280, %v1336
    %v1338 = vpop.f32.mrb[0].mxu0
    %1339 = vmatprep.mubr.bf16.mxu0 0
    %1340 = vmatmul.mubr.bf16.gmra.mrb[0].mxu0 %v1297
    %v1341 = vpop.f32.mrb[0].mxu0
    %v1342 = vadd.f32 %v1280, %v1341
    %v1343 = vpop.f32.mrb[0].mxu0
    %v1344 = vpop.f32.mrb[0].mxu0
    %v1345 = vadd.f32 %v1280, %v1344
    %v1346 = vpop.f32.mrb[0].mxu0
    %1347 = vdwg.mxu0
    %v1348 = vpack.c.bf16 %v1337, %v1334
    %v1349 = vpack.c.bf16 %v1345, %v1342
    %1351 = vrot.lane.b32.xlu0 %v1272, 120
    %v1352 = vpop.permute.xlu0 %1351
    %1353 = vrot.lane.b32.xlu0 %v1272, 112
    %v1354 = vpop.permute.xlu0 %1353
    %1355 = vrot.lane.b32.xlu0 %v1272, 104
    %v1356 = vpop.permute.xlu0 %1355
    %1359 = vrot.lane.b32.xlu0 %v1348, 120
    %v1360 = vpop.permute.xlu0 %1359
    %1361 = vrot.lane.b32.xlu0 %v1349, 120
    %v1362 = vpop.permute.xlu0 %1361
    %1363 = vrot.lane.b32.xlu0 %v1348, 112
    %v1364 = vpop.permute.xlu0 %1363
    %1365 = vrot.lane.b32.xlu0 %v1349, 112
    %v1366 = vpop.permute.xlu0 %1365
    %1367 = vrot.lane.b32.xlu0 %v1348, 104
    %v1368 = vpop.permute.xlu0 %1367
    %1369 = vrot.lane.b32.xlu0 %v1349, 104
    %v1370 = vpop.permute.xlu0 %1369
    %v1371 = vunpack.c.l.bf16 %v81
    %v1373 = vsel %vm201, %v1272, 0
    %v1376 = vsel %vm201, %v1348, 0
    %1378 = vmatprep.subr.bf16.mxu0 0
    %1379 = vmatpush1.bf16.xpose.msra.mxu0 %v1376
    %1380 = vmatprep.subr.bf16.mxu0 0
    %1381 = vmatpush1.bf16.xpose.msra.mxu0 0
    %1382 = vmatprep.subr.bf16.mxu0 0
    %1383 = vmatpush1.bf16.xpose.msra.mxu0 0
    %1384 = vmatprep.subr.bf16.mxu0 0
    %1385 = vmatpush1.bf16.xpose.msra.mxu0 0
    %1386 = vmatprep.subr.bf16.mxu0 0
    %1387 = vmatpush1.bf16.xpose.msra.mxu0 0
    %1388 = vmatprep.subr.bf16.mxu0 0
    %1389 = vmatpush1.bf16.xpose.msra.mxu0 0
    %1390 = vmatprep.subr.bf16.mxu0 0
    %1391 = vmatpush1.bf16.xpose.msra.mxu0 0
    %1392 = vmatprep.subr.bf16.mxu0 0
    %1393 = vmatpush1.bf16.xpose.msra.mxu0 0
    %1394 = vmatprep.subr.bf16.mxu0 0
    %1395 = vmatpush1.bf16.xpose.msra.mxu0 0
    %1396 = vmatprep.subr.bf16.mxu0 0
    %1397 = vmatpush1.bf16.xpose.msra.mxu0 0
    %1398 = vmatprep.subr.bf16.mxu0 0
    %1399 = vmatpush1.bf16.xpose.msra.mxu0 0
    %1400 = vmatprep.subr.bf16.mxu0 0
    %1401 = vmatpush1.bf16.xpose.msra.mxu0 0
    %1402 = vmatprep.subr.bf16.mxu0 0
    %1403 = vmatpush1.bf16.xpose.msra.mxu0 0
    %1404 = vmatprep.subr.bf16.mxu0 0
    %1405 = vmatpush1.bf16.xpose.msra.mxu0 0
    %1406 = vmatprep.subr.bf16.mxu0 0
    %1407 = vmatpush1.bf16.xpose.msra.mxu0 0
    %1408 = vmatprep.subr.bf16.mxu0 0
    %1409 = vmatpush1.bf16.xpose.msra.mxu0 0
    %1410 = vmatprep.mubr.bf16.mxu0 0
    %1411 = vmatmul.mubr.bf16.gmra.mrb[0].mxu0 %v1373
    %v1412 = vpop.f32.mrb[0].mxu0
    %v1413 = vadd.f32 %v1371, %v1412
    %v1414 = vpop.f32.mrb[0].mxu0
    %v1415 = vpop.f32.mrb[0].mxu0
    %v1416 = vpop.f32.mrb[0].mxu0
    %1417 = vdwg.mxu0
    %v1419 = vsel %vm201, %v1352, 0
    %v1422 = vsel %vm201, %v1360, 0
    %1424 = vmatprep.subr.bf16.mxu0 0
    %1425 = vmatpush1.bf16.xpose.msra.mxu0 %v1422
    %1426 = vmatprep.subr.bf16.mxu0 0
    %1427 = vmatpush1.bf16.xpose.msra.mxu0 0
    %1428 = vmatprep.subr.bf16.mxu0 0
    %1429 = vmatpush1.bf16.xpose.msra.mxu0 0
    %1430 = vmatprep.subr.bf16.mxu0 0
    %1431 = vmatpush1.bf16.xpose.msra.mxu0 0
    %1432 = vmatprep.subr.bf16.mxu0 0
    %1433 = vmatpush1.bf16.xpose.msra.mxu0 0
    %1434 = vmatprep.subr.bf16.mxu0 0
    %1435 = vmatpush1.bf16.xpose.msra.mxu0 0
    %1436 = vmatprep.subr.bf16.mxu0 0
    %1437 = vmatpush1.bf16.xpose.msra.mxu0 0
    %1438 = vmatprep.subr.bf16.mxu0 0
    %1439 = vmatpush1.bf16.xpose.msra.mxu0 0
    %1440 = vmatprep.subr.bf16.mxu0 0
    %1441 = vmatpush1.bf16.xpose.msra.mxu0 0
    %1442 = vmatprep.subr.bf16.mxu0 0
    %1443 = vmatpush1.bf16.xpose.msra.mxu0 0
    %1444 = vmatprep.subr.bf16.mxu0 0
    %1445 = vmatpush1.bf16.xpose.msra.mxu0 0
    %1446 = vmatprep.subr.bf16.mxu0 0
    %1447 = vmatpush1.bf16.xpose.msra.mxu0 0
    %1448 = vmatprep.subr.bf16.mxu0 0
    %1449 = vmatpush1.bf16.xpose.msra.mxu0 0
    %1450 = vmatprep.subr.bf16.mxu0 0
    %1451 = vmatpush1.bf16.xpose.msra.mxu0 0
    %1452 = vmatprep.subr.bf16.mxu0 0
    %1453 = vmatpush1.bf16.xpose.msra.mxu0 0
    %1454 = vmatprep.subr.bf16.mxu0 0
    %1455 = vmatpush1.bf16.xpose.msra.mxu0 0
    %1456 = vmatprep.mubr.bf16.mxu0 0
    %1457 = vmatmul.mubr.bf16.gmra.mrb[0].mxu0 %v1419
    %v1458 = vpop.f32.mrb[0].mxu0
    %v1459 = vadd.f32 %v1371, %v1458
    %v1460 = vpop.f32.mrb[0].mxu0
    %v1461 = vpop.f32.mrb[0].mxu0
    %v1462 = vpop.f32.mrb[0].mxu0
    %1463 = vdwg.mxu0
    %v1465 = vsel %vm201, %v1354, 0
    %v1468 = vsel %vm201, %v1364, 0
    %1470 = vmatprep.subr.bf16.mxu0 0
    %1471 = vmatpush1.bf16.xpose.msra.mxu0 %v1468
    %1472 = vmatprep.subr.bf16.mxu0 0
    %1473 = vmatpush1.bf16.xpose.msra.mxu0 0
    %1474 = vmatprep.subr.bf16.mxu0 0
    %1475 = vmatpush1.bf16.xpose.msra.mxu0 0
    %1476 = vmatprep.subr.bf16.mxu0 0
    %1477 = vmatpush1.bf16.xpose.msra.mxu0 0
    %1478 = vmatprep.subr.bf16.mxu0 0
    %1479 = vmatpush1.bf16.xpose.msra.mxu0 0
    %1480 = vmatprep.subr.bf16.mxu0 0
    %1481 = vmatpush1.bf16.xpose.msra.mxu0 0
    %1482 = vmatprep.subr.bf16.mxu0 0
    %1483 = vmatpush1.bf16.xpose.msra.mxu0 0
    %1484 = vmatprep.subr.bf16.mxu0 0
    %1485 = vmatpush1.bf16.xpose.msra.mxu0 0
    %1486 = vmatprep.subr.bf16.mxu0 0
    %1487 = vmatpush1.bf16.xpose.msra.mxu0 0
    %1488 = vmatprep.subr.bf16.mxu0 0
    %1489 = vmatpush1.bf16.xpose.msra.mxu0 0
    %1490 = vmatprep.subr.bf16.mxu0 0
    %1491 = vmatpush1.bf16.xpose.msra.mxu0 0
    %1492 = vmatprep.subr.bf16.mxu0 0
    %1493 = vmatpush1.bf16.xpose.msra.mxu0 0
    %1494 = vmatprep.subr.bf16.mxu0 0
    %1495 = vmatpush1.bf16.xpose.msra.mxu0 0
    %1496 = vmatprep.subr.bf16.mxu0 0
    %1497 = vmatpush1.bf16.xpose.msra.mxu0 0
    %1498 = vmatprep.subr.bf16.mxu0 0
    %1499 = vmatpush1.bf16.xpose.msra.mxu0 0
    %1500 = vmatprep.subr.bf16.mxu0 0
    %1501 = vmatpush1.bf16.xpose.msra.mxu0 0
    %1502 = vmatprep.mubr.bf16.mxu0 0
    %1503 = vmatmul.mubr.bf16.gmra.mrb[0].mxu0 %v1465
    %v1504 = vpop.f32.mrb[0].mxu0
    %v1505 = vadd.f32 %v1371, %v1504
    %v1506 = vpop.f32.mrb[0].mxu0
    %v1507 = vpop.f32.mrb[0].mxu0
    %v1508 = vpop.f32.mrb[0].mxu0
    %1509 = vdwg.mxu0
    %v1511 = vsel %vm201, %v1356, 0
    %v1514 = vsel %vm201, %v1368, 0
    %1516 = vmatprep.subr.bf16.mxu0 0
    %1517 = vmatpush1.bf16.xpose.msra.mxu0 %v1514
    %1518 = vmatprep.subr.bf16.mxu0 0
    %1519 = vmatpush1.bf16.xpose.msra.mxu0 0
    %1520 = vmatprep.subr.bf16.mxu0 0
    %1521 = vmatpush1.bf16.xpose.msra.mxu0 0
    %1522 = vmatprep.subr.bf16.mxu0 0
    %1523 = vmatpush1.bf16.xpose.msra.mxu0 0
    %1524 = vmatprep.subr.bf16.mxu0 0
    %1525 = vmatpush1.bf16.xpose.msra.mxu0 0
    %1526 = vmatprep.subr.bf16.mxu0 0
    %1527 = vmatpush1.bf16.xpose.msra.mxu0 0
    %1528 = vmatprep.subr.bf16.mxu0 0
    %1529 = vmatpush1.bf16.xpose.msra.mxu0 0
    %1530 = vmatprep.subr.bf16.mxu0 0
    %1531 = vmatpush1.bf16.xpose.msra.mxu0 0
    %1532 = vmatprep.subr.bf16.mxu0 0
    %1533 = vmatpush1.bf16.xpose.msra.mxu0 0
    %1534 = vmatprep.subr.bf16.mxu0 0
    %1535 = vmatpush1.bf16.xpose.msra.mxu0 0
    %1536 = vmatprep.subr.bf16.mxu0 0
    %1537 = vmatpush1.bf16.xpose.msra.mxu0 0
    %1538 = vmatprep.subr.bf16.mxu0 0
    %1539 = vmatpush1.bf16.xpose.msra.mxu0 0
    %1540 = vmatprep.subr.bf16.mxu0 0
    %1541 = vmatpush1.bf16.xpose.msra.mxu0 0
    %1542 = vmatprep.subr.bf16.mxu0 0
    %1543 = vmatpush1.bf16.xpose.msra.mxu0 0
    %1544 = vmatprep.subr.bf16.mxu0 0
    %1545 = vmatpush1.bf16.xpose.msra.mxu0 0
    %1546 = vmatprep.subr.bf16.mxu0 0
    %1547 = vmatpush1.bf16.xpose.msra.mxu0 0
    %1548 = vmatprep.mubr.bf16.mxu0 0
    %1549 = vmatmul.mubr.bf16.gmra.mrb[0].mxu0 %v1511
    %v1550 = vpop.f32.mrb[0].mxu0
    %v1551 = vadd.f32 %v1371, %v1550
    %v1552 = vpop.f32.mrb[0].mxu0
    %v1553 = vpop.f32.mrb[0].mxu0
    %v1554 = vpop.f32.mrb[0].mxu0
    %1555 = vdwg.mxu0
    %v1556 = vsel %vm646, %v1413, -inf
    %1557 = vmax.xlane.f32.xlu0 %v1556
    %v1558 = vpop.xlane.xlu0 %1557
    %v1559 = vsel %vm646, %v1459, -inf
    %1560 = vmax.xlane.f32.xlu0 %v1559
    %v1561 = vpop.xlane.xlu0 %1560
    %v1562 = vsel %vm646, %v1505, -inf
    %1563 = vmax.xlane.f32.xlu0 %v1562
    %v1564 = vpop.xlane.xlu0 %1563
    %v1565 = vsel %vm646, %v1551, -inf
    %1566 = vmax.xlane.f32.xlu0 %v1565
    %v1567 = vpop.xlane.xlu0 %1566
    %v1568 = vsub.f32 %v1413, %v1558
    %v1569 = vsub.f32 %v1459, %v1561
    %v1570 = vsub.f32 %v1505, %v1564
    %v1571 = vsub.f32 %v1551, %v1567
    %v1572 = vmul.f32 %v1568, 1.442695
    %v1573 = vpow.pop %v1572
    %v1574 = vmul.f32 %v1569, 1.442695
    %v1575 = vpow.pop %v1574
    %v1576 = vmul.f32 %v1570, 1.442695
    %v1577 = vpow.pop %v1576
    %v1578 = vmul.f32 %v1571, 1.442695
    %v1579 = vpow.pop %v1578
    %v1580 = vsel %vm646, %v1573, 0.0
    %1581 = vadd.xlane.f32.xlu0 %v1580
    %v1582 = vpop.xlane.xlu0 %1581
    %v1583 = vsel %vm646, %v1575, 0.0
    %1584 = vadd.xlane.f32.xlu0 %v1583
    %v1585 = vpop.xlane.xlu0 %1584
    %v1586 = vsel %vm646, %v1577, 0.0
    %1587 = vadd.xlane.f32.xlu0 %v1586
    %v1588 = vpop.xlane.xlu0 %1587
    %v1589 = vsel %vm646, %v1579, 0.0
    %1590 = vadd.xlane.f32.xlu0 %v1589
    %v1591 = vpop.xlane.xlu0 %1590
    %v1592 = vrcp.pop %v1582
    %v1593 = vmul.f32 %v1573, %v1592
    %v1594 = vrcp.pop %v1585
    %v1595 = vmul.f32 %v1575, %v1594
    %v1596 = vrcp.pop %v1588
    %v1597 = vmul.f32 %v1577, %v1596
    %v1598 = vrcp.pop %v1591
    %v1599 = vmul.f32 %v1579, %v1598
    %v1600 = vpack.c.bf16 %v1593, %v1593
    %v1601 = vpack.c.bf16 %v1595, %v1595
    %v1602 = vpack.c.bf16 %v1597, %v1597
    %v1603 = vpack.c.bf16 %v1599, %v1599
    %1604 = vrot.lane.b32.xlu0 %v1348, 96
    %v1605 = vpop.permute.xlu0 %1604
    %v1608 = vsel %vm646, %v1600, 0
    %1610 = vmatprep.subr.bf16.mxu0 0
    %1611 = vmatpush1.bf16.msra.mxu0 %v1605
    %1612 = vmatprep.subr.bf16.mxu0 0
    %1613 = vmatpush1.bf16.msra.mxu0 0
    %1614 = vmatprep.subr.bf16.mxu0 0
    %1615 = vmatpush1.bf16.msra.mxu0 0
    %1616 = vmatprep.subr.bf16.mxu0 0
    %1617 = vmatpush1.bf16.msra.mxu0 0
    %1618 = vmatprep.subr.bf16.mxu0 0
    %1619 = vmatpush1.bf16.msra.mxu0 0
    %1620 = vmatprep.subr.bf16.mxu0 0
    %1621 = vmatpush1.bf16.msra.mxu0 0
    %1622 = vmatprep.subr.bf16.mxu0 0
    %1623 = vmatpush1.bf16.msra.mxu0 0
    %1624 = vmatprep.subr.bf16.mxu0 0
    %1625 = vmatpush1.bf16.msra.mxu0 0
    %1626 = vmatprep.subr.bf16.mxu0 0
    %1627 = vmatpush1.bf16.msra.mxu0 0
    %1628 = vmatprep.subr.bf16.mxu0 0
    %1629 = vmatpush1.bf16.msra.mxu0 0
    %1630 = vmatprep.subr.bf16.mxu0 0
    %1631 = vmatpush1.bf16.msra.mxu0 0
    %1632 = vmatprep.subr.bf16.mxu0 0
    %1633 = vmatpush1.bf16.msra.mxu0 0
    %1634 = vmatprep.subr.bf16.mxu0 0
    %1635 = vmatpush1.bf16.msra.mxu0 0
    %1636 = vmatprep.subr.bf16.mxu0 0
    %1637 = vmatpush1.bf16.msra.mxu0 0
    %1638 = vmatprep.subr.bf16.mxu0 0
    %1639 = vmatpush1.bf16.msra.mxu0 0
    %1640 = vmatprep.subr.bf16.mxu0 0
    %1641 = vmatpush1.bf16.msra.mxu0 0
    %1642 = vmatprep.mubr.bf16.mxu0 0
    %1643 = vmatmul.mubr.bf16.gmra.mrb[0].mxu0 %v1608
    %v1644 = vpop.f32.mrb[0].mxu0
    %v1645 = vadd.f32 0.0, %v1644
    %v1646 = vpop.f32.mrb[0].mxu0
    %v1647 = vpop.f32.mrb[0].mxu0
    %v1648 = vpop.f32.mrb[0].mxu0
    %1649 = vdwg.mxu0
    %1650 = vrot.lane.b32.xlu0 %v1360, 96
    %v1651 = vpop.permute.xlu0 %1650
    %v1654 = vsel %vm646, %v1601, 0
    %1656 = vmatprep.subr.bf16.mxu0 0
    %1657 = vmatpush1.bf16.msra.mxu0 %v1651
    %1658 = vmatprep.subr.bf16.mxu0 0
    %1659 = vmatpush1.bf16.msra.mxu0 0
    %1660 = vmatprep.subr.bf16.mxu0 0
    %1661 = vmatpush1.bf16.msra.mxu0 0
    %1662 = vmatprep.subr.bf16.mxu0 0
    %1663 = vmatpush1.bf16.msra.mxu0 0
    %1664 = vmatprep.subr.bf16.mxu0 0
    %1665 = vmatpush1.bf16.msra.mxu0 0
    %1666 = vmatprep.subr.bf16.mxu0 0
    %1667 = vmatpush1.bf16.msra.mxu0 0
    %1668 = vmatprep.subr.bf16.mxu0 0
    %1669 = vmatpush1.bf16.msra.mxu0 0
    %1670 = vmatprep.subr.bf16.mxu0 0
    %1671 = vmatpush1.bf16.msra.mxu0 0
    %1672 = vmatprep.subr.bf16.mxu0 0
    %1673 = vmatpush1.bf16.msra.mxu0 0
    %1674 = vmatprep.subr.bf16.mxu0 0
    %1675 = vmatpush1.bf16.msra.mxu0 0
    %1676 = vmatprep.subr.bf16.mxu0 0
    %1677 = vmatpush1.bf16.msra.mxu0 0
    %1678 = vmatprep.subr.bf16.mxu0 0
    %1679 = vmatpush1.bf16.msra.mxu0 0
    %1680 = vmatprep.subr.bf16.mxu0 0
    %1681 = vmatpush1.bf16.msra.mxu0 0
    %1682 = vmatprep.subr.bf16.mxu0 0
    %1683 = vmatpush1.bf16.msra.mxu0 0
    %1684 = vmatprep.subr.bf16.mxu0 0
    %1685 = vmatpush1.bf16.msra.mxu0 0
    %1686 = vmatprep.subr.bf16.mxu0 0
    %1687 = vmatpush1.bf16.msra.mxu0 0
    %1688 = vmatprep.mubr.bf16.mxu0 0
    %1689 = vmatmul.mubr.bf16.gmra.mrb[0].mxu0 %v1654
    %v1690 = vpop.f32.mrb[0].mxu0
    %v1691 = vadd.f32 0.0, %v1690
    %v1692 = vpop.f32.mrb[0].mxu0
    %v1693 = vpop.f32.mrb[0].mxu0
    %v1694 = vpop.f32.mrb[0].mxu0
    %1695 = vdwg.mxu0
    %1696 = vrot.lane.b32.xlu0 %v1364, 96
    %v1697 = vpop.permute.xlu0 %1696
    %v1700 = vsel %vm646, %v1602, 0
    %1702 = vmatprep.subr.bf16.mxu0 0
    %1703 = vmatpush1.bf16.msra.mxu0 %v1697
    %1704 = vmatprep.subr.bf16.mxu0 0
    %1705 = vmatpush1.bf16.msra.mxu0 0
    %1706 = vmatprep.subr.bf16.mxu0 0
    %1707 = vmatpush1.bf16.msra.mxu0 0
    %1708 = vmatprep.subr.bf16.mxu0 0
    %1709 = vmatpush1.bf16.msra.mxu0 0
    %1710 = vmatprep.subr.bf16.mxu0 0
    %1711 = vmatpush1.bf16.msra.mxu0 0
    %1712 = vmatprep.subr.bf16.mxu0 0
    %1713 = vmatpush1.bf16.msra.mxu0 0
    %1714 = vmatprep.subr.bf16.mxu0 0
    %1715 = vmatpush1.bf16.msra.mxu0 0
    %1716 = vmatprep.subr.bf16.mxu0 0
    %1717 = vmatpush1.bf16.msra.mxu0 0
    %1718 = vmatprep.subr.bf16.mxu0 0
    %1719 = vmatpush1.bf16.msra.mxu0 0
    %1720 = vmatprep.subr.bf16.mxu0 0
    %1721 = vmatpush1.bf16.msra.mxu0 0
    %1722 = vmatprep.subr.bf16.mxu0 0
    %1723 = vmatpush1.bf16.msra.mxu0 0
    %1724 = vmatprep.subr.bf16.mxu0 0
    %1725 = vmatpush1.bf16.msra.mxu0 0
    %1726 = vmatprep.subr.bf16.mxu0 0
    %1727 = vmatpush1.bf16.msra.mxu0 0
    %1728 = vmatprep.subr.bf16.mxu0 0
    %1729 = vmatpush1.bf16.msra.mxu0 0
    %1730 = vmatprep.subr.bf16.mxu0 0
    %1731 = vmatpush1.bf16.msra.mxu0 0
    %1732 = vmatprep.subr.bf16.mxu0 0
    %1733 = vmatpush1.bf16.msra.mxu0 0
    %1734 = vmatprep.mubr.bf16.mxu0 0
    %1735 = vmatmul.mubr.bf16.gmra.mrb[0].mxu0 %v1700
    %v1736 = vpop.f32.mrb[0].mxu0
    %v1737 = vadd.f32 0.0, %v1736
    %v1738 = vpop.f32.mrb[0].mxu0
    %v1739 = vpop.f32.mrb[0].mxu0
    %v1740 = vpop.f32.mrb[0].mxu0
    %1741 = vdwg.mxu0
    %1742 = vrot.lane.b32.xlu0 %v1368, 96
    %v1743 = vpop.permute.xlu0 %1742
    %v1746 = vsel %vm646, %v1603, 0
    %1748 = vmatprep.subr.bf16.mxu0 0
    %1749 = vmatpush1.bf16.msra.mxu0 %v1743
    %1750 = vmatprep.subr.bf16.mxu0 0
    %1751 = vmatpush1.bf16.msra.mxu0 0
    %1752 = vmatprep.subr.bf16.mxu0 0
    %1753 = vmatpush1.bf16.msra.mxu0 0
    %1754 = vmatprep.subr.bf16.mxu0 0
    %1755 = vmatpush1.bf16.msra.mxu0 0
    %1756 = vmatprep.subr.bf16.mxu0 0
    %1757 = vmatpush1.bf16.msra.mxu0 0
    %1758 = vmatprep.subr.bf16.mxu0 0
    %1759 = vmatpush1.bf16.msra.mxu0 0
    %1760 = vmatprep.subr.bf16.mxu0 0
    %1761 = vmatpush1.bf16.msra.mxu0 0
    %1762 = vmatprep.subr.bf16.mxu0 0
    %1763 = vmatpush1.bf16.msra.mxu0 0
    %1764 = vmatprep.subr.bf16.mxu0 0
    %1765 = vmatpush1.bf16.msra.mxu0 0
    %1766 = vmatprep.subr.bf16.mxu0 0
    %1767 = vmatpush1.bf16.msra.mxu0 0
    %1768 = vmatprep.subr.bf16.mxu0 0
    %1769 = vmatpush1.bf16.msra.mxu0 0
    %1770 = vmatprep.subr.bf16.mxu0 0
    %1771 = vmatpush1.bf16.msra.mxu0 0
    %1772 = vmatprep.subr.bf16.mxu0 0
    %1773 = vmatpush1.bf16.msra.mxu0 0
    %1774 = vmatprep.subr.bf16.mxu0 0
    %1775 = vmatpush1.bf16.msra.mxu0 0
    %1776 = vmatprep.subr.bf16.mxu0 0
    %1777 = vmatpush1.bf16.msra.mxu0 0
    %1778 = vmatprep.subr.bf16.mxu0 0
    %1779 = vmatpush1.bf16.msra.mxu0 0
    %1780 = vmatprep.mubr.bf16.mxu0 0
    %1781 = vmatmul.mubr.bf16.gmra.mrb[0].mxu0 %v1746
    %v1782 = vpop.f32.mrb[0].mxu0
    %v1783 = vadd.f32 0.0, %v1782
    %v1784 = vpop.f32.mrb[0].mxu0
    %v1785 = vpop.f32.mrb[0].mxu0
    %v1786 = vpop.f32.mrb[0].mxu0
    %1787 = vdwg.mxu0
    %1789 = vrot.lane.b32.xlu0 %v1691, 8
    %v1790 = vpop.permute.xlu0 %1789
    %1793 = vrot.lane.b32.xlu0 %v1737, 16
    %v1794 = vpop.permute.xlu0 %1793
    %1797 = vrot.lane.b32.xlu0 %v1783, 24
    %v1798 = vpop.permute.xlu0 %1797
    %v1800 = vsel %vm201, %v1645, %v1790
    %v1801 = vsel %vm646, %v1800, %v1794
    %v1802 = vsel %vm648, %v1801, %v1798
    %v1803 = vunpack.c.l.bf16 %v82
    %v1804 = vrot.slane %v1272, 4
    %v1806 = vsel %vm201, %v1804, 0
    %v1809 = vsel %vm201, %v1349, 0
    %1811 = vmatprep.subr.bf16.mxu0 0
    %1812 = vmatpush1.bf16.xpose.msra.mxu0 %v1809
    %1813 = vmatprep.subr.bf16.mxu0 0
    %1814 = vmatpush1.bf16.xpose.msra.mxu0 0
    %1815 = vmatprep.subr.bf16.mxu0 0
    %1816 = vmatpush1.bf16.xpose.msra.mxu0 0
    %1817 = vmatprep.subr.bf16.mxu0 0
    %1818 = vmatpush1.bf16.xpose.msra.mxu0 0
    %1819 = vmatprep.subr.bf16.mxu0 0
    %1820 = vmatpush1.bf16.xpose.msra.mxu0 0
    %1821 = vmatprep.subr.bf16.mxu0 0
    %1822 = vmatpush1.bf16.xpose.msra.mxu0 0
    %1823 = vmatprep.subr.bf16.mxu0 0
    %1824 = vmatpush1.bf16.xpose.msra.mxu0 0
    %1825 = vmatprep.subr.bf16.mxu0 0
    %1826 = vmatpush1.bf16.xpose.msra.mxu0 0
    %1827 = vmatprep.subr.bf16.mxu0 0
    %1828 = vmatpush1.bf16.xpose.msra.mxu0 0
    %1829 = vmatprep.subr.bf16.mxu0 0
    %1830 = vmatpush1.bf16.xpose.msra.mxu0 0
    %1831 = vmatprep.subr.bf16.mxu0 0
    %1832 = vmatpush1.bf16.xpose.msra.mxu0 0
    %1833 = vmatprep.subr.bf16.mxu0 0
    %1834 = vmatpush1.bf16.xpose.msra.mxu0 0
    %1835 = vmatprep.subr.bf16.mxu0 0
    %1836 = vmatpush1.bf16.xpose.msra.mxu0 0
    %1837 = vmatprep.subr.bf16.mxu0 0
    %1838 = vmatpush1.bf16.xpose.msra.mxu0 0
    %1839 = vmatprep.subr.bf16.mxu0 0
    %1840 = vmatpush1.bf16.xpose.msra.mxu0 0
    %1841 = vmatprep.subr.bf16.mxu0 0
    %1842 = vmatpush1.bf16.xpose.msra.mxu0 0
    %1843 = vmatprep.mubr.bf16.mxu0 0
    %1844 = vmatmul.mubr.bf16.gmra.mrb[0].mxu0 %v1806
    %v1845 = vpop.f32.mrb[0].mxu0
    %v1846 = vadd.f32 %v1803, %v1845
    %v1847 = vpop.f32.mrb[0].mxu0
    %v1848 = vpop.f32.mrb[0].mxu0
    %v1849 = vpop.f32.mrb[0].mxu0
    %1850 = vdwg.mxu0
    %v1851 = vrot.slane %v1352, 4
    %v1853 = vsel %vm201, %v1851, 0
    %v1856 = vsel %vm201, %v1362, 0
    %1858 = vmatprep.subr.bf16.mxu0 0
    %1859 = vmatpush1.bf16.xpose.msra.mxu0 %v1856
    %1860 = vmatprep.subr.bf16.mxu0 0
    %1861 = vmatpush1.bf16.xpose.msra.mxu0 0
    %1862 = vmatprep.subr.bf16.mxu0 0
    %1863 = vmatpush1.bf16.xpose.msra.mxu0 0
    %1864 = vmatprep.subr.bf16.mxu0 0
    %1865 = vmatpush1.bf16.xpose.msra.mxu0 0
    %1866 = vmatprep.subr.bf16.mxu0 0
    %1867 = vmatpush1.bf16.xpose.msra.mxu0 0
    %1868 = vmatprep.subr.bf16.mxu0 0
    %1869 = vmatpush1.bf16.xpose.msra.mxu0 0
    %1870 = vmatprep.subr.bf16.mxu0 0
    %1871 = vmatpush1.bf16.xpose.msra.mxu0 0
    %1872 = vmatprep.subr.bf16.mxu0 0
    %1873 = vmatpush1.bf16.xpose.msra.mxu0 0
    %1874 = vmatprep.subr.bf16.mxu0 0
    %1875 = vmatpush1.bf16.xpose.msra.mxu0 0
    %1876 = vmatprep.subr.bf16.mxu0 0
    %1877 = vmatpush1.bf16.xpose.msra.mxu0 0
    %1878 = vmatprep.subr.bf16.mxu0 0
    %1879 = vmatpush1.bf16.xpose.msra.mxu0 0
    %1880 = vmatprep.subr.bf16.mxu0 0
    %1881 = vmatpush1.bf16.xpose.msra.mxu0 0
    %1882 = vmatprep.subr.bf16.mxu0 0
    %1883 = vmatpush1.bf16.xpose.msra.mxu0 0
    %1884 = vmatprep.subr.bf16.mxu0 0
    %1885 = vmatpush1.bf16.xpose.msra.mxu0 0
    %1886 = vmatprep.subr.bf16.mxu0 0
    %1887 = vmatpush1.bf16.xpose.msra.mxu0 0
    %1888 = vmatprep.subr.bf16.mxu0 0
    %1889 = vmatpush1.bf16.xpose.msra.mxu0 0
    %1890 = vmatprep.mubr.bf16.mxu0 0
    %1891 = vmatmul.mubr.bf16.gmra.mrb[0].mxu0 %v1853
    %v1892 = vpop.f32.mrb[0].mxu0
    %v1893 = vadd.f32 %v1803, %v1892
    %v1894 = vpop.f32.mrb[0].mxu0
    %v1895 = vpop.f32.mrb[0].mxu0
    %v1896 = vpop.f32.mrb[0].mxu0
    %1897 = vdwg.mxu0
    %v1898 = vrot.slane %v1354, 4
    %v1900 = vsel %vm201, %v1898, 0
    %v1903 = vsel %vm201, %v1366, 0
    %1905 = vmatprep.subr.bf16.mxu0 0
    %1906 = vmatpush1.bf16.xpose.msra.mxu0 %v1903
    %1907 = vmatprep.subr.bf16.mxu0 0
    %1908 = vmatpush1.bf16.xpose.msra.mxu0 0
    %1909 = vmatprep.subr.bf16.mxu0 0
    %1910 = vmatpush1.bf16.xpose.msra.mxu0 0
    %1911 = vmatprep.subr.bf16.mxu0 0
    %1912 = vmatpush1.bf16.xpose.msra.mxu0 0
    %1913 = vmatprep.subr.bf16.mxu0 0
    %1914 = vmatpush1.bf16.xpose.msra.mxu0 0
    %1915 = vmatprep.subr.bf16.mxu0 0
    %1916 = vmatpush1.bf16.xpose.msra.mxu0 0
    %1917 = vmatprep.subr.bf16.mxu0 0
    %1918 = vmatpush1.bf16.xpose.msra.mxu0 0
    %1919 = vmatprep.subr.bf16.mxu0 0
    %1920 = vmatpush1.bf16.xpose.msra.mxu0 0
    %1921 = vmatprep.subr.bf16.mxu0 0
    %1922 = vmatpush1.bf16.xpose.msra.mxu0 0
    %1923 = vmatprep.subr.bf16.mxu0 0
    %1924 = vmatpush1.bf16.xpose.msra.mxu0 0
    %1925 = vmatprep.subr.bf16.mxu0 0
    %1926 = vmatpush1.bf16.xpose.msra.mxu0 0
    %1927 = vmatprep.subr.bf16.mxu0 0
    %1928 = vmatpush1.bf16.xpose.msra.mxu0 0
    %1929 = vmatprep.subr.bf16.mxu0 0
    %1930 = vmatpush1.bf16.xpose.msra.mxu0 0
    %1931 = vmatprep.subr.bf16.mxu0 0
    %1932 = vmatpush1.bf16.xpose.msra.mxu0 0
    %1933 = vmatprep.subr.bf16.mxu0 0
    %1934 = vmatpush1.bf16.xpose.msra.mxu0 0
    %1935 = vmatprep.subr.bf16.mxu0 0
    %1936 = vmatpush1.bf16.xpose.msra.mxu0 0
    %1937 = vmatprep.mubr.bf16.mxu0 0
    %1938 = vmatmul.mubr.bf16.gmra.mrb[0].mxu0 %v1900
    %v1939 = vpop.f32.mrb[0].mxu0
    %v1940 = vadd.f32 %v1803, %v1939
    %v1941 = vpop.f32.mrb[0].mxu0
    %v1942 = vpop.f32.mrb[0].mxu0
    %v1943 = vpop.f32.mrb[0].mxu0
    %1944 = vdwg.mxu0
    %v1945 = vrot.slane %v1356, 4
    %v1947 = vsel %vm201, %v1945, 0
    %v1950 = vsel %vm201, %v1370, 0
    %1952 = vmatprep.subr.bf16.mxu0 0
    %1953 = vmatpush1.bf16.xpose.msra.mxu0 %v1950
    %1954 = vmatprep.subr.bf16.mxu0 0
    %1955 = vmatpush1.bf16.xpose.msra.mxu0 0
    %1956 = vmatprep.subr.bf16.mxu0 0
    %1957 = vmatpush1.bf16.xpose.msra.mxu0 0
    %1958 = vmatprep.subr.bf16.mxu0 0
    %1959 = vmatpush1.bf16.xpose.msra.mxu0 0
    %1960 = vmatprep.subr.bf16.mxu0 0
    %1961 = vmatpush1.bf16.xpose.msra.mxu0 0
    %1962 = vmatprep.subr.bf16.mxu0 0
    %1963 = vmatpush1.bf16.xpose.msra.mxu0 0
    %1964 = vmatprep.subr.bf16.mxu0 0
    %1965 = vmatpush1.bf16.xpose.msra.mxu0 0
    %1966 = vmatprep.subr.bf16.mxu0 0
    %1967 = vmatpush1.bf16.xpose.msra.mxu0 0
    %1968 = vmatprep.subr.bf16.mxu0 0
    %1969 = vmatpush1.bf16.xpose.msra.mxu0 0
    %1970 = vmatprep.subr.bf16.mxu0 0
    %1971 = vmatpush1.bf16.xpose.msra.mxu0 0
    %1972 = vmatprep.subr.bf16.mxu0 0
    %1973 = vmatpush1.bf16.xpose.msra.mxu0 0
    %1974 = vmatprep.subr.bf16.mxu0 0
    %1975 = vmatpush1.bf16.xpose.msra.mxu0 0
    %1976 = vmatprep.subr.bf16.mxu0 0
    %1977 = vmatpush1.bf16.xpose.msra.mxu0 0
    %1978 = vmatprep.subr.bf16.mxu0 0
    %1979 = vmatpush1.bf16.xpose.msra.mxu0 0
    %1980 = vmatprep.subr.bf16.mxu0 0
    %1981 = vmatpush1.bf16.xpose.msra.mxu0 0
    %1982 = vmatprep.subr.bf16.mxu0 0
    %1983 = vmatpush1.bf16.xpose.msra.mxu0 0
    %1984 = vmatprep.mubr.bf16.mxu0 0
    %1985 = vmatmul.mubr.bf16.gmra.mrb[0].mxu0 %v1947
    %v1986 = vpop.f32.mrb[0].mxu0
    %v1987 = vadd.f32 %v1803, %v1986
    %v1988 = vpop.f32.mrb[0].mxu0
    %v1989 = vpop.f32.mrb[0].mxu0
    %v1990 = vpop.f32.mrb[0].mxu0
    %1991 = vdwg.mxu0
    %v1992 = vsel %vm646, %v1846, -inf
    %1993 = vmax.xlane.f32.xlu0 %v1992
    %v1994 = vpop.xlane.xlu0 %1993
    %v1995 = vsel %vm646, %v1893, -inf
    %1996 = vmax.xlane.f32.xlu0 %v1995
    %v1997 = vpop.xlane.xlu0 %1996
    %v1998 = vsel %vm646, %v1940, -inf
    %1999 = vmax.xlane.f32.xlu0 %v1998
    %v2000 = vpop.xlane.xlu0 %1999
    %v2001 = vsel %vm646, %v1987, -inf
    %2002 = vmax.xlane.f32.xlu0 %v2001
    %v2003 = vpop.xlane.xlu0 %2002
    %v2004 = vsub.f32 %v1846, %v1994
    %v2005 = vsub.f32 %v1893, %v1997
    %v2006 = vsub.f32 %v1940, %v2000
    %v2007 = vsub.f32 %v1987, %v2003
    %v2008 = vmul.f32 %v2004, 1.442695
    %v2009 = vpow.pop %v2008
    %v2010 = vmul.f32 %v2005, 1.442695
    %v2011 = vpow.pop %v2010
    %v2012 = vmul.f32 %v2006, 1.442695
    %v2013 = vpow.pop %v2012
    %v2014 = vmul.f32 %v2007, 1.442695
    %v2015 = vpow.pop %v2014
    %v2016 = vsel %vm646, %v2009, 0.0
    %2017 = vadd.xlane.f32.xlu0 %v2016
    %v2018 = vpop.xlane.xlu0 %2017
    %v2019 = vsel %vm646, %v2011, 0.0
    %2020 = vadd.xlane.f32.xlu0 %v2019
    %v2021 = vpop.xlane.xlu0 %2020
    %v2022 = vsel %vm646, %v2013, 0.0
    %2023 = vadd.xlane.f32.xlu0 %v2022
    %v2024 = vpop.xlane.xlu0 %2023
    %v2025 = vsel %vm646, %v2015, 0.0
    %2026 = vadd.xlane.f32.xlu0 %v2025
    %v2027 = vpop.xlane.xlu0 %2026
    %v2028 = vrcp.pop %v2018
    %v2029 = vmul.f32 %v2009, %v2028
    %v2030 = vrcp.pop %v2021
    %v2031 = vmul.f32 %v2011, %v2030
    %v2032 = vrcp.pop %v2024
    %v2033 = vmul.f32 %v2013, %v2032
    %v2034 = vrcp.pop %v2027
    %v2035 = vmul.f32 %v2015, %v2034
    %v2036 = vpack.c.bf16 %v2029, %v2029
    %v2037 = vpack.c.bf16 %v2031, %v2031
    %v2038 = vpack.c.bf16 %v2033, %v2033
    %v2039 = vpack.c.bf16 %v2035, %v2035
    %2040 = vrot.lane.b32.xlu0 %v1349, 96
    %v2041 = vpop.permute.xlu0 %2040
    %v2044 = vsel %vm646, %v2036, 0
    %2046 = vmatprep.subr.bf16.mxu0 0
    %2047 = vmatpush1.bf16.msra.mxu0 %v2041
    %2048 = vmatprep.subr.bf16.mxu0 0
    %2049 = vmatpush1.bf16.msra.mxu0 0
    %2050 = vmatprep.subr.bf16.mxu0 0
    %2051 = vmatpush1.bf16.msra.mxu0 0
    %2052 = vmatprep.subr.bf16.mxu0 0
    %2053 = vmatpush1.bf16.msra.mxu0 0
    %2054 = vmatprep.subr.bf16.mxu0 0
    %2055 = vmatpush1.bf16.msra.mxu0 0
    %2056 = vmatprep.subr.bf16.mxu0 0
    %2057 = vmatpush1.bf16.msra.mxu0 0
    %2058 = vmatprep.subr.bf16.mxu0 0
    %2059 = vmatpush1.bf16.msra.mxu0 0
    %2060 = vmatprep.subr.bf16.mxu0 0
    %2061 = vmatpush1.bf16.msra.mxu0 0
    %2062 = vmatprep.subr.bf16.mxu0 0
    %2063 = vmatpush1.bf16.msra.mxu0 0
    %2064 = vmatprep.subr.bf16.mxu0 0
    %2065 = vmatpush1.bf16.msra.mxu0 0
    %2066 = vmatprep.subr.bf16.mxu0 0
    %2067 = vmatpush1.bf16.msra.mxu0 0
    %2068 = vmatprep.subr.bf16.mxu0 0
    %2069 = vmatpush1.bf16.msra.mxu0 0
    %2070 = vmatprep.subr.bf16.mxu0 0
    %2071 = vmatpush1.bf16.msra.mxu0 0
    %2072 = vmatprep.subr.bf16.mxu0 0
    %2073 = vmatpush1.bf16.msra.mxu0 0
    %2074 = vmatprep.subr.bf16.mxu0 0
    %2075 = vmatpush1.bf16.msra.mxu0 0
    %2076 = vmatprep.subr.bf16.mxu0 0
    %2077 = vmatpush1.bf16.msra.mxu0 0
    %2078 = vmatprep.mubr.bf16.mxu0 0
    %2079 = vmatmul.mubr.bf16.gmra.mrb[0].mxu0 %v2044
    %v2080 = vpop.f32.mrb[0].mxu0
    %v2081 = vadd.f32 0.0, %v2080
    %v2082 = vpop.f32.mrb[0].mxu0
    %v2083 = vpop.f32.mrb[0].mxu0
    %v2084 = vpop.f32.mrb[0].mxu0
    %2085 = vdwg.mxu0
    %2086 = vrot.lane.b32.xlu0 %v1362, 96
    %v2087 = vpop.permute.xlu0 %2086
    %v2090 = vsel %vm646, %v2037, 0
    %2092 = vmatprep.subr.bf16.mxu0 0
    %2093 = vmatpush1.bf16.msra.mxu0 %v2087
    %2094 = vmatprep.subr.bf16.mxu0 0
    %2095 = vmatpush1.bf16.msra.mxu0 0
    %2096 = vmatprep.subr.bf16.mxu0 0
    %2097 = vmatpush1.bf16.msra.mxu0 0
    %2098 = vmatprep.subr.bf16.mxu0 0
    %2099 = vmatpush1.bf16.msra.mxu0 0
    %2100 = vmatprep.subr.bf16.mxu0 0
    %2101 = vmatpush1.bf16.msra.mxu0 0
    %2102 = vmatprep.subr.bf16.mxu0 0
    %2103 = vmatpush1.bf16.msra.mxu0 0
    %2104 = vmatprep.subr.bf16.mxu0 0
    %2105 = vmatpush1.bf16.msra.mxu0 0
    %2106 = vmatprep.subr.bf16.mxu0 0
    %2107 = vmatpush1.bf16.msra.mxu0 0
    %2108 = vmatprep.subr.bf16.mxu0 0
    %2109 = vmatpush1.bf16.msra.mxu0 0
    %2110 = vmatprep.subr.bf16.mxu0 0
    %2111 = vmatpush1.bf16.msra.mxu0 0
    %2112 = vmatprep.subr.bf16.mxu0 0
    %2113 = vmatpush1.bf16.msra.mxu0 0
    %2114 = vmatprep.subr.bf16.mxu0 0
    %2115 = vmatpush1.bf16.msra.mxu0 0
    %2116 = vmatprep.subr.bf16.mxu0 0
    %2117 = vmatpush1.bf16.msra.mxu0 0
    %2118 = vmatprep.subr.bf16.mxu0 0
    %2119 = vmatpush1.bf16.msra.mxu0 0
    %2120 = vmatprep.subr.bf16.mxu0 0
    %2121 = vmatpush1.bf16.msra.mxu0 0
    %2122 = vmatprep.subr.bf16.mxu0 0
    %2123 = vmatpush1.bf16.msra.mxu0 0
    %2124 = vmatprep.mubr.bf16.mxu0 0
    %2125 = vmatmul.mubr.bf16.gmra.mrb[0].mxu0 %v2090
    %v2126 = vpop.f32.mrb[0].mxu0
    %v2127 = vadd.f32 0.0, %v2126
    %v2128 = vpop.f32.mrb[0].mxu0
    %v2129 = vpop.f32.mrb[0].mxu0
    %v2130 = vpop.f32.mrb[0].mxu0
    %2131 = vdwg.mxu0
    %2132 = vrot.lane.b32.xlu0 %v1366, 96
    %v2133 = vpop.permute.xlu0 %2132
    %v2136 = vsel %vm646, %v2038, 0
    %2138 = vmatprep.subr.bf16.mxu0 0
    %2139 = vmatpush1.bf16.msra.mxu0 %v2133
    %2140 = vmatprep.subr.bf16.mxu0 0
    %2141 = vmatpush1.bf16.msra.mxu0 0
    %2142 = vmatprep.subr.bf16.mxu0 0
    %2143 = vmatpush1.bf16.msra.mxu0 0
    %2144 = vmatprep.subr.bf16.mxu0 0
    %2145 = vmatpush1.bf16.msra.mxu0 0
    %2146 = vmatprep.subr.bf16.mxu0 0
    %2147 = vmatpush1.bf16.msra.mxu0 0
    %2148 = vmatprep.subr.bf16.mxu0 0
    %2149 = vmatpush1.bf16.msra.mxu0 0
    %2150 = vmatprep.subr.bf16.mxu0 0
    %2151 = vmatpush1.bf16.msra.mxu0 0
    %2152 = vmatprep.subr.bf16.mxu0 0
    %2153 = vmatpush1.bf16.msra.mxu0 0
    %2154 = vmatprep.subr.bf16.mxu0 0
    %2155 = vmatpush1.bf16.msra.mxu0 0
    %2156 = vmatprep.subr.bf16.mxu0 0
    %2157 = vmatpush1.bf16.msra.mxu0 0
    %2158 = vmatprep.subr.bf16.mxu0 0
    %2159 = vmatpush1.bf16.msra.mxu0 0
    %2160 = vmatprep.subr.bf16.mxu0 0
    %2161 = vmatpush1.bf16.msra.mxu0 0
    %2162 = vmatprep.subr.bf16.mxu0 0
    %2163 = vmatpush1.bf16.msra.mxu0 0
    %2164 = vmatprep.subr.bf16.mxu0 0
    %2165 = vmatpush1.bf16.msra.mxu0 0
    %2166 = vmatprep.subr.bf16.mxu0 0
    %2167 = vmatpush1.bf16.msra.mxu0 0
    %2168 = vmatprep.subr.bf16.mxu0 0
    %2169 = vmatpush1.bf16.msra.mxu0 0
    %2170 = vmatprep.mubr.bf16.mxu0 0
    %2171 = vmatmul.mubr.bf16.gmra.mrb[0].mxu0 %v2136
    %v2172 = vpop.f32.mrb[0].mxu0
    %v2173 = vadd.f32 0.0, %v2172
    %v2174 = vpop.f32.mrb[0].mxu0
    %v2175 = vpop.f32.mrb[0].mxu0
    %v2176 = vpop.f32.mrb[0].mxu0
    %2177 = vdwg.mxu0
    %2178 = vrot.lane.b32.xlu0 %v1370, 96
    %v2179 = vpop.permute.xlu0 %2178
    %v2182 = vsel %vm646, %v2039, 0
    %2184 = vmatprep.subr.bf16.mxu0 0
    %2185 = vmatpush1.bf16.msra.mxu0 %v2179
    %2186 = vmatprep.subr.bf16.mxu0 0
    %2187 = vmatpush1.bf16.msra.mxu0 0
    %2188 = vmatprep.subr.bf16.mxu0 0
    %2189 = vmatpush1.bf16.msra.mxu0 0
    %2190 = vmatprep.subr.bf16.mxu0 0
    %2191 = vmatpush1.bf16.msra.mxu0 0
    %2192 = vmatprep.subr.bf16.mxu0 0
    %2193 = vmatpush1.bf16.msra.mxu0 0
    %2194 = vmatprep.subr.bf16.mxu0 0
    %2195 = vmatpush1.bf16.msra.mxu0 0
    %2196 = vmatprep.subr.bf16.mxu0 0
    %2197 = vmatpush1.bf16.msra.mxu0 0
    %2198 = vmatprep.subr.bf16.mxu0 0
    %2199 = vmatpush1.bf16.msra.mxu0 0
    %2200 = vmatprep.subr.bf16.mxu0 0
    %2201 = vmatpush1.bf16.msra.mxu0 0
    %2202 = vmatprep.subr.bf16.mxu0 0
    %2203 = vmatpush1.bf16.msra.mxu0 0
    %2204 = vmatprep.subr.bf16.mxu0 0
    %2205 = vmatpush1.bf16.msra.mxu0 0
    %2206 = vmatprep.subr.bf16.mxu0 0
    %2207 = vmatpush1.bf16.msra.mxu0 0
    %2208 = vmatprep.subr.bf16.mxu0 0
    %2209 = vmatpush1.bf16.msra.mxu0 0
    %2210 = vmatprep.subr.bf16.mxu0 0
    %2211 = vmatpush1.bf16.msra.mxu0 0
    %2212 = vmatprep.subr.bf16.mxu0 0
    %2213 = vmatpush1.bf16.msra.mxu0 0
    %2214 = vmatprep.subr.bf16.mxu0 0
    %2215 = vmatpush1.bf16.msra.mxu0 0
    %2216 = vmatprep.mubr.bf16.mxu0 0
    %2217 = vmatmul.mubr.bf16.gmra.mrb[0].mxu0 %v2182
    %v2218 = vpop.f32.mrb[0].mxu0
    %v2219 = vadd.f32 0.0, %v2218
    %v2220 = vpop.f32.mrb[0].mxu0
    %v2221 = vpop.f32.mrb[0].mxu0
    %v2222 = vpop.f32.mrb[0].mxu0
    %2223 = vdwg.mxu0
    %2225 = vrot.lane.b32.xlu0 %v2127, 8
    %v2226 = vpop.permute.xlu0 %2225
    %2229 = vrot.lane.b32.xlu0 %v2173, 16
    %v2230 = vpop.permute.xlu0 %2229
    %2233 = vrot.lane.b32.xlu0 %v2219, 24
    %v2234 = vpop.permute.xlu0 %2233
    %v2236 = vsel %vm201, %v2081, %v2226
    %v2237 = vsel %vm646, %v2236, %v2230
    %v2238 = vsel %vm648, %v2237, %v2234
    %v2239 = vpack.c.bf16 %v2238, %v1802
    %v2240 = vld [vmem:[#allocation2] sm:$0xf]
    %v2241 = vld [vmem:[#allocation2 + $0x4] sm:$0xf]
    %v2242 = vld [vmem:[#allocation2 + $0x8] sm:$0xf]
    %v2243 = vld [vmem:[#allocation2 + $0xc] sm:$0xf]
    %v2244 = vlaneseq
    %v2245 = vshrl.u32 %v2244, 7
    %v2246 = vsub.s32 4, %v2245
    %v2247 = vrot.slane %v83, %v2246
    %v2252 = vunpack.c.l.b16 %v2240
    %v2253 = vunpack.c.l.b16 %v2241
    %v2254 = vunpack.c.l.b16 %v2242
    %v2255 = vunpack.c.l.b16 %v2243
    %v2256 = vpack.c.b16 %v2253, %v2252
    %v2257 = vpack.c.b16 %v2255, %v2254
    %v2261 = vsel %vm85, %v2239, 0
    %2263 = vmatprep.subr.bf16.mxu0 0
    %2264 = vmatpush1.bf16.msra.mxu0 %v2256
    %2265 = vmatprep.subr.bf16.mxu0 0
    %2266 = vmatpush1.bf16.msra.mxu0 %v2257
    %2267 = vmatprep.subr.bf16.mxu0 0
    %2268 = vmatpush1.bf16.msra.mxu0 0
    %2269 = vmatprep.subr.bf16.mxu0 0
    %2270 = vmatpush1.bf16.msra.mxu0 0
    %2271 = vmatprep.subr.bf16.mxu0 0
    %2272 = vmatpush1.bf16.msra.mxu0 0
    %2273 = vmatprep.subr.bf16.mxu0 0
    %2274 = vmatpush1.bf16.msra.mxu0 0
    %2275 = vmatprep.subr.bf16.mxu0 0
    %2276 = vmatpush1.bf16.msra.mxu0 0
    %2277 = vmatprep.subr.bf16.mxu0 0
    %2278 = vmatpush1.bf16.msra.mxu0 0
    %2279 = vmatprep.subr.bf16.mxu0 0
    %2280 = vmatpush1.bf16.msra.mxu0 0
    %2281 = vmatprep.subr.bf16.mxu0 0
    %2282 = vmatpush1.bf16.msra.mxu0 0
    %2283 = vmatprep.subr.bf16.mxu0 0
    %2284 = vmatpush1.bf16.msra.mxu0 0
    %2285 = vmatprep.subr.bf16.mxu0 0
    %2286 = vmatpush1.bf16.msra.mxu0 0
    %2287 = vmatprep.subr.bf16.mxu0 0
    %2288 = vmatpush1.bf16.msra.mxu0 0
    %2289 = vmatprep.subr.bf16.mxu0 0
    %2290 = vmatpush1.bf16.msra.mxu0 0
    %2291 = vmatprep.subr.bf16.mxu0 0
    %2292 = vmatpush1.bf16.msra.mxu0 0
    %2293 = vmatprep.subr.bf16.mxu0 0
    %2294 = vmatpush1.bf16.msra.mxu0 0
    %2295 = vmatprep.mubr.bf16.mxu0 0
    %2296 = vmatmul.mubr.bf16.gmra.mrb[0].mxu0 %v2261
    %v2297 = vpop.f32.mrb[0].mxu0
    %v2298 = vadd.f32 %v2247, %v2297
    %v2299 = vpop.f32.mrb[0].mxu0
    %v2300 = vpop.f32.mrb[0].mxu0
    %v2301 = vadd.f32 %v2247, %v2300
    %v2302 = vpop.f32.mrb[0].mxu0
    %2303 = vdwg.mxu0
    %v2304 = vadd.f32 %v1167, %v2298
    %v2305 = vadd.f32 %v1168, %v2301
    %v2306 = vsel %vm85, %v2304, 0.0
    %2307 = vadd.xlane.f32.xlu0 %v2306
    %v2308 = vpop.xlane.xlu0 %2307
    %v2309 = vsel %vm85, %v2305, 0.0
    %2310 = vadd.xlane.f32.xlu0 %v2309
    %v2311 = vpop.xlane.xlu0 %2310
    %v2312 = vmul.f32 %v2308, %v92
    %v2313 = vmul.f32 %v2311, %v92
    %v2314 = vsub.f32 %v2304, %v2312
    %v2315 = vsub.f32 %v2305, %v2313
    %v2316 = vmul.f32 %v2314, %v2314
    %v2317 = vmul.f32 %v2315, %v2315
    %v2318 = vsel %vm85, %v2316, 0.0
    %2319 = vadd.xlane.f32.xlu0 %v2318
    %v2320 = vpop.xlane.xlu0 %2319
    %v2321 = vsel %vm85, %v2317, 0.0
    %2322 = vadd.xlane.f32.xlu0 %v2321
    %v2323 = vpop.xlane.xlu0 %2322
    %v2324 = vmul.f32 %v2320, %v92
    %v2325 = vmul.f32 %v2323, %v92
    %v2326 = vadd.f32 %v2324, 1e-05
    %v2327 = vadd.f32 %v2325, 1e-05
    %v2328 = vrsqrt.pop %v2326
    %v2329 = vrsqrt.pop %v2327
    %v2330 = vmul.f32 %v2314, %v2328
    %v2331 = vmul.f32 %v2315, %v2329
    %v2332 = vlaneseq
    %v2333 = vshrl.u32 %v2332, 7
    %v2334 = vsub.s32 3, %v2333
    %v2335 = vrot.slane %v84, %v2334
    %v2336 = vmul.f32 %v2330, %v2335
    %v2337 = vmul.f32 %v2331, %v2335
    %v2338 = vlaneseq
    %v2339 = vshrl.u32 %v2338, 7
    %v2340 = vsub.s32 4, %v2339
    %v2341 = vrot.slane %v84, %v2340
    %v2342 = vadd.f32 %v2336, %v2341
    %v2343 = vadd.f32 %v2337, %v2341
    %v2344 = vpack.c.bf16 %v2343, %v2342
    %v2345 = vld [vmem:[%s9] sm:$0xf]
    %v2346 = vld [vmem:[%s9 + $0x4] sm:$0xf]
    %v2347 = vld [vmem:[%s9 + $0x8] sm:$0xf]
    %v2348 = vld [vmem:[%s9 + $0xc] sm:$0xf]
    %v2349 = vlaneseq
    %v2350 = vshrl.u32 %v2349, 7
    %v2351 = vsub.s32 5, %v2350
    %v2352 = vrot.slane %v83, %v2351
    %v2357 = vunpack.c.l.b16 %v2345
    %v2358 = vunpack.c.l.b16 %v2346
    %v2359 = vunpack.c.l.b16 %v2347
    %v2360 = vunpack.c.l.b16 %v2348
    %v2361 = vpack.c.b16 %v2358, %v2357
    %v2362 = vpack.c.b16 %v2360, %v2359
    %v2366 = vsel %vm85, %v2344, 0
    %2368 = vmatprep.subr.bf16.mxu0 0
    %2369 = vmatpush1.bf16.msra.mxu0 %v2361
    %2370 = vmatprep.subr.bf16.mxu0 0
    %2371 = vmatpush1.bf16.msra.mxu0 %v2362
    %2372 = vmatprep.subr.bf16.mxu0 0
    %2373 = vmatpush1.bf16.msra.mxu0 0
    %2374 = vmatprep.subr.bf16.mxu0 0
    %2375 = vmatpush1.bf16.msra.mxu0 0
    %2376 = vmatprep.subr.bf16.mxu0 0
    %2377 = vmatpush1.bf16.msra.mxu0 0
    %2378 = vmatprep.subr.bf16.mxu0 0
    %2379 = vmatpush1.bf16.msra.mxu0 0
    %2380 = vmatprep.subr.bf16.mxu0 0
    %2381 = vmatpush1.bf16.msra.mxu0 0
    %2382 = vmatprep.subr.bf16.mxu0 0
    %2383 = vmatpush1.bf16.msra.mxu0 0
    %2384 = vmatprep.subr.bf16.mxu0 0
    %2385 = vmatpush1.bf16.msra.mxu0 0
    %2386 = vmatprep.subr.bf16.mxu0 0
    %2387 = vmatpush1.bf16.msra.mxu0 0
    %2388 = vmatprep.subr.bf16.mxu0 0
    %2389 = vmatpush1.bf16.msra.mxu0 0
    %2390 = vmatprep.subr.bf16.mxu0 0
    %2391 = vmatpush1.bf16.msra.mxu0 0
    %2392 = vmatprep.subr.bf16.mxu0 0
    %2393 = vmatpush1.bf16.msra.mxu0 0
    %2394 = vmatprep.subr.bf16.mxu0 0
    %2395 = vmatpush1.bf16.msra.mxu0 0
    %2396 = vmatprep.subr.bf16.mxu0 0
    %2397 = vmatpush1.bf16.msra.mxu0 0
    %2398 = vmatprep.subr.bf16.mxu0 0
    %2399 = vmatpush1.bf16.msra.mxu0 0
    %2400 = vmatprep.mubr.bf16.mxu0 0
    %2401 = vmatmul.mubr.bf16.gmra.mrb[0].mxu0 %v2366
    %v2402 = vpop.f32.mrb[0].mxu0
    %v2403 = vadd.f32 %v2352, %v2402
    %v2404 = vpop.f32.mrb[0].mxu0
    %v2405 = vpop.f32.mrb[0].mxu0
    %v2406 = vadd.f32 %v2352, %v2405
    %v2407 = vpop.f32.mrb[0].mxu0
    %2408 = vdwg.mxu0
    %v2409 = vmax.f32 %v2403, 0.0
    %v2410 = vmax.f32 %v2406, 0.0
    %v2411 = vpack.c.bf16 %v2410, %v2409
    %v2412 = vld [vmem:[%s10] sm:$0xf]
    %v2413 = vld [vmem:[%s10 + $0x4] sm:$0xf]
    %v2414 = vld [vmem:[%s10 + $0x8] sm:$0xf]
    %v2415 = vld [vmem:[%s10 + $0xc] sm:$0xf]
    %v2416 = vld [vmem:[%s10 + $0x10] sm:$0xf]
    %v2417 = vld [vmem:[%s10 + $0x14] sm:$0xf]
    %v2418 = vld [vmem:[%s10 + $0x18] sm:$0xf]
    %v2419 = vld [vmem:[%s10 + $0x1c] sm:$0xf]
    %v2420 = vlaneseq
    %v2421 = vshrl.u32 %v2420, 7
    %v2422 = vsub.s32 6, %v2421
    %v2423 = vrot.slane %v83, %v2422
    %v2432 = vunpack.c.l.b16 %v2412
    %v2433 = vunpack.c.l.b16 %v2413
    %v2434 = vunpack.c.l.b16 %v2414
    %v2435 = vunpack.c.l.b16 %v2415
    %v2436 = vunpack.c.l.b16 %v2416
    %v2437 = vunpack.c.l.b16 %v2417
    %v2438 = vunpack.c.l.b16 %v2418
    %v2439 = vunpack.c.l.b16 %v2419
    %v2440 = vpack.c.b16 %v2433, %v2432
    %v2441 = vpack.c.b16 %v2435, %v2434
    %v2442 = vpack.c.b16 %v2437, %v2436
    %v2443 = vpack.c.b16 %v2439, %v2438
    %vm2448 = vcmask 523264
    %v2450 = vsel %vm2448, %v2411, 0
    %2452 = vmatprep.subr.bf16.mxu0 0
    %2453 = vmatpush1.bf16.msra.mxu0 %v2440
    %2454 = vmatprep.subr.bf16.mxu0 0
    %2455 = vmatpush1.bf16.msra.mxu0 %v2441
    %2456 = vmatprep.subr.bf16.mxu0 0
    %2457 = vmatpush1.bf16.msra.mxu0 %v2442
    %2458 = vmatprep.subr.bf16.mxu0 0
    %2459 = vmatpush1.bf16.msra.mxu0 %v2443
    %2460 = vmatprep.subr.bf16.mxu0 0
    %2461 = vmatpush1.bf16.msra.mxu0 0
    %2462 = vmatprep.subr.bf16.mxu0 0
    %2463 = vmatpush1.bf16.msra.mxu0 0
    %2464 = vmatprep.subr.bf16.mxu0 0
    %2465 = vmatpush1.bf16.msra.mxu0 0
    %2466 = vmatprep.subr.bf16.mxu0 0
    %2467 = vmatpush1.bf16.msra.mxu0 0
    %2468 = vmatprep.subr.bf16.mxu0 0
    %2469 = vmatpush1.bf16.msra.mxu0 0
    %2470 = vmatprep.subr.bf16.mxu0 0
    %2471 = vmatpush1.bf16.msra.mxu0 0
    %2472 = vmatprep.subr.bf16.mxu0 0
    %2473 = vmatpush1.bf16.msra.mxu0 0
    %2474 = vmatprep.subr.bf16.mxu0 0
    %2475 = vmatpush1.bf16.msra.mxu0 0
    %2476 = vmatprep.subr.bf16.mxu0 0
    %2477 = vmatpush1.bf16.msra.mxu0 0
    %2478 = vmatprep.subr.bf16.mxu0 0
    %2479 = vmatpush1.bf16.msra.mxu0 0
    %2480 = vmatprep.subr.bf16.mxu0 0
    %2481 = vmatpush1.bf16.msra.mxu0 0
    %2482 = vmatprep.subr.bf16.mxu0 0
    %2483 = vmatpush1.bf16.msra.mxu0 0
    %2484 = vmatprep.mubr.bf16.mxu0 0
    %2485 = vmatmul.mubr.bf16.gmra.mrb[0].mxu0 %v2450
    %v2486 = vpop.f32.mrb[0].mxu0
    %v2487 = vadd.f32 %v2423, %v2486
    %v2488 = vpop.f32.mrb[0].mxu0
    %v2489 = vpop.f32.mrb[0].mxu0
    %v2490 = vadd.f32 %v2423, %v2489
    %v2491 = vpop.f32.mrb[0].mxu0
    %2492 = vdwg.mxu0
    %v2493 = vadd.f32 %v2304, %v2487
    %v2494 = vadd.f32 %v2305, %v2490
    %2495 = vst.msk [vmem:[#allocation7] sm:$0xff] %vm85, %v2493
    %2496 = vst.msk [vmem:[#allocation7 + $0x8] sm:$0xff] %vm85, %v2494
    // Predicated region
    $region58: #{fwd.1} parent=1 // pred_check
      _
    $region59: #{fwd.1} parent=1 // pred_check_branch
      %2498 = sbr.rel (0) target = $region61
    $region60: #{fwd.1} parent=1 // pred_region
      %s2500 = ssub.s32 256, 256
      %2501 = vsyncadd [#allocation4], %s2500
      %s2502 = sshll.u32 [#allocation7], 4
      %s2503 = int_to_ptr.vmem [resolvable:$true] %s2502
      %2508 = dma.vmem_to_hbm [thread:$0]  %s2503, 256, %s12, [#allocation4], 128, 128, 8
    $region61: #{fwd.1} parent=1 // pred_fallthru
      _
    // Predicated region
    $region62: #{fwd.1} parent=1 // pred_check
      _
    $region63: #{fwd.1} parent=1 // pred_check_branch
      %2510 = sbr.rel (0) target = $region65
    $region64: #{fwd.1} parent=1 // pred_region
      %2511 = dma.done [#allocation4], 256
    $region65: #{fwd.1} parent=1 // pred_fallthru
      _
    %2512 = vsyncpa [#allocation3], 1
    %2513 = vsyncpa [#allocation6], 1
    %2514 = vsyncpa [#allocation4], 1

</llo_original>
